<compile_context>
chip_gen: v7x
topology: tpu7x:2x2x1
jax: 0.10.0
libtpu: 0.0.40
codegen_flags: <defaults>
</compile_context>

<pallas_src>
import math

import jax
import jax.numpy as jnp
import numpy as np
from jax.experimental import pallas as pl
from jax.experimental.pallas import tpu as pltpu

# ---------------- hyperparameters (mirrors the module __init__) ----------------
INPUT_SIZE = 16          # d_model
OUTPUT_SIZE = 4
NUM_LAYERS = 2
NUM_HEADS = 2
DIM_FF = 2048            # nn.TransformerEncoderLayer default dim_feedforward
LN_EPS = 1e-5

SEQ = 8
BATCH = 2

NEG_INF = -1e30

VMEM_SPEC = pl.BlockSpec(memory_space=pltpu.MemorySpace.VMEM)


# ------------------------------ fused Pallas kernel -----------------------------
def fused_forward_kernel(x_ref,
                         wqkv_ref, bqkv_ref, wo_ref, bo_ref,
                         ln1g_ref, ln1b_ref,
                         w1_ref, b1_ref, w2_ref, b2_ref,
                         ln2g_ref, ln2b_ref,
                         fcw_ref, fcb_ref,
                         o_ref):
    """Both encoder layers + final fc on the flattened (S*B, E) row block."""
    R, E = x_ref.shape                       # R = SEQ * BATCH rows, r = s*B + b
    H = NUM_HEADS
    D = E // H
    B = BATCH
    scale = 1.0 / math.sqrt(D)

    # Additive batch mask on the flat (R, R) score matrix: rows/cols belong to
    # the same batch element iff (row % B) == (col % B).  Computed once, reused
    # by every head in every layer.
    rb = jax.lax.broadcasted_iota(jnp.int32, (R, R), 0) % B
    cb = jax.lax.broadcasted_iota(jnp.int32, (R, R), 1) % B
    attn_bias = jnp.where(rb == cb, 0.0, NEG_INF).astype(jnp.float32)

    def layer_norm(y, g, b):
        mu = jnp.mean(y, axis=-1, keepdims=True)
        var = jnp.mean((y - mu) ** 2, axis=-1, keepdims=True)
        return (y - mu) * jax.lax.rsqrt(var + LN_EPS) * g + b

    x = x_ref[...].astype(jnp.float32)       # (R, E)

    for l in range(NUM_LAYERS):              # static unroll (2 layers)
        # ---- fused QKV projection: one (R,E)@(E,3E) MXU matmul ----
        qkv = (jnp.dot(x, wqkv_ref[l], preferred_element_type=jnp.float32)
               + bqkv_ref[l])
        q = qkv[:, 0 * E:1 * E]
        k = qkv[:, 1 * E:2 * E]
        v = qkv[:, 2 * E:3 * E]

        # ---- per-head scaled dot-product attention (masked flat-row form) ----
        ctx = []
        for h in range(H):                   # H == 2, static
            qh = q[:, h * D:(h + 1) * D]
            kh = k[:, h * D:(h + 1) * D]
            vh = v[:, h * D:(h + 1) * D]
            s = (jnp.einsum('rd,td->rt', qh, kh,
                            preferred_element_type=jnp.float32) * scale
                 + attn_bias)
            s = s - jnp.max(s, axis=-1, keepdims=True)
            p = jnp.exp(s)
            # approx=True is possible if looser tolerance is acceptable
            p = p * pl.reciprocal(jnp.sum(p, axis=-1, keepdims=True), approx=False)
            ctx.append(jnp.dot(p, vh, preferred_element_type=jnp.float32))
        ctx = jnp.concatenate(ctx, axis=-1)                  # (R, E)

        # ---- single out-projection against full wo + residual + LayerNorm1 ----
        attn = jnp.dot(ctx, wo_ref[l], preferred_element_type=jnp.float32) + bo_ref[l]
        x = layer_norm(x + attn, ln1g_ref[l], ln1b_ref[l])

        # ---- feed-forward (bf16 weights, f32 accumulate): Linear -> ReLU -> Linear
        hdn = (jnp.dot(x, w1_ref[l].astype(jnp.float32),
                       preferred_element_type=jnp.float32) + b1_ref[l])
        hdn = jnp.maximum(hdn, 0.0)
        ff = (jnp.dot(hdn, w2_ref[l].astype(jnp.float32),
                      preferred_element_type=jnp.float32) + b2_ref[l])

        # ---- residual + LayerNorm2 ----
        x = layer_norm(x + ff, ln2g_ref[l], ln2b_ref[l])

    # ---- final fc ----
    y = jnp.dot(x, fcw_ref[...], preferred_element_type=jnp.float32) + fcb_ref[...]
    o_ref[...] = y.astype(o_ref.dtype)


# ------------------------------ wrapper ------------------------------------------
@jax.jit
def transformer_position_prediction(x_sbe, params):
    """Matches TransformerPositionPrediction.forward (inference), x is (S, B, E)."""
    S, B, E = x_sbe.shape
    x2 = x_sbe.reshape(S * B, E)             # contiguous merge, no transpose
    args = (x2,
            params['wqkv'], params['bqkv'], params['wo'], params['bo'],
            params['ln1g'], params['ln1b'],
            params['w1'], params['b1'], params['w2'], params['b2'],
            params['ln2g'], params['ln2b'],
            params['fcw'], params['fcb'])
    y = pl.pallas_call(
        fused_forward_kernel,
        out_shape=jax.ShapeDtypeStruct((S * B, OUTPUT_SIZE), jnp.float32),
        in_specs=[VMEM_SPEC] * len(args),
        out_specs=VMEM_SPEC,
    )(*args)
    return y.reshape(S, B, OUTPUT_SIZE)


# --------------------------- parameter init ---------------------------------------
# All weights are stored pre-transposed to (in_features, out_features) (= W.T of
# the PyTorch parameters) and stacked over the 2 layers along a leading axis.
def init_params(key):
    E, F, O, L = INPUT_SIZE, DIM_FF, OUTPUT_SIZE, NUM_LAYERS
    ks = jax.random.split(key, 7)
    return dict(
        wqkv=0.1 * jax.random.normal(ks[0], (L, E, 3 * E), jnp.float32),
        bqkv=0.01 * jax.random.normal(ks[1], (L, 1, 3 * E), jnp.float32),
        wo=0.1 * jax.random.normal(ks[2], (L, E, E), jnp.float32),
        bo=0.01 * jax.random.normal(ks[3], (L, 1, E), jnp.float32),
        ln1g=jnp.ones((L, 1, E), jnp.float32),
        ln1b=jnp.zeros((L, 1, E), jnp.float32),
        w1=(0.05 * jax.random.normal(ks[4], (L, E, F), jnp.float32)).astype(jnp.bfloat16),
        b1=jnp.zeros((L, 1, F), jnp.float32),
        w2=(0.05 * jax.random.normal(ks[5], (L, F, E), jnp.float32)).astype(jnp.bfloat16),
        b2=jnp.zeros((L, 1, E), jnp.float32),
        ln2g=jnp.ones((L, 1, E), jnp.float32),
        ln2b=jnp.zeros((L, 1, E), jnp.float32),
        fcw=0.1 * jax.random.normal(ks[6], (E, O), jnp.float32),
        fcb=0.01 * jnp.ones((1, O), jnp.float32),
    )


# --------------------------- pure-JAX reference -----------------------------------
def _ln(y, g, b):
    mu = y.mean(-1, keepdims=True)
    var = ((y - mu) ** 2).mean(-1, keepdims=True)
    return (y - mu) * jax.lax.rsqrt(var + LN_EPS) * g + b


def ref_forward(x_sbe, p):
    S, B, E = x_sbe.shape
    H, D = NUM_HEADS, E // NUM_HEADS
    x = x_sbe.reshape(S * B, E).astype(jnp.float32)
    for l in range(NUM_LAYERS):
        qkv = x @ p['wqkv'][l] + p['bqkv'][l, 0]
        q, k, v = qkv[:, :E], qkv[:, E:2 * E], qkv[:, 2 * E:]
        q4 = q.reshape(S, B, H, D)
        k4 = k.reshape(S, B, H, D)
        v4 = v.reshape(S, B, H, D)
        s = jnp.einsum('sbhd,tbhd->bhst', q4, k4) / math.sqrt(D)
        a = jax.nn.softmax(s, axis=-1)
        ctx = jnp.einsum('bhst,tbhd->sbhd', a, v4).reshape(S * B, E)
        x2 = x + ctx @ p['wo'][l] + p['bo'][l, 0]
        x2 = _ln(x2, p['ln1g'][l, 0], p['ln1b'][l, 0])
        h1 = jax.nn.relu(x2 @ p['w1'][l].astype(jnp.float32) + p['b1'][l, 0])
        ff = h1 @ p['w2'][l].astype(jnp.float32) + p['b2'][l, 0]
        x = _ln(x2 + ff, p['ln2g'][l, 0], p['ln2b'][l, 0])
    y = x @ p['fcw'] + p['fcb'][0]
    return y.reshape(S, B, OUTPUT_SIZE)


# ------------------------------------ main -----------------------------------------
if __name__ == "__main__":
    key = jax.random.PRNGKey(0)
    k_x, k_p = jax.random.split(key)

    # input in PyTorch convention (batch_first=False): (seq, batch, d_model)
    x = jax.random.normal(k_x, (SEQ, BATCH, INPUT_SIZE), jnp.float32)
    params = init_params(k_p)

    out = transformer_position_prediction(x, params)
    out = jax.block_until_ready(out)
    assert out.shape == (SEQ, BATCH, OUTPUT_SIZE)

    ref = ref_forward(x, params)
    np.testing.assert_allclose(np.asarray(out), np.asarray(ref), rtol=2e-4, atol=2e-4)

    print("KERNEL_OK")
</pallas_src>

<mosaic_0001>
module attributes {stable_mosaic.version = 11 : i64} {
  func.func @fused_forward_kernel(%arg0: memref<16x16xf32, #tpu.memory_space<vmem>>, %arg1: memref<2x16x48xf32, #tpu.memory_space<vmem>>, %arg2: memref<2x1x48xf32, #tpu.memory_space<vmem>>, %arg3: memref<2x16x16xf32, #tpu.memory_space<vmem>>, %arg4: memref<2x1x16xf32, #tpu.memory_space<vmem>>, %arg5: memref<2x1x16xf32, #tpu.memory_space<vmem>>, %arg6: memref<2x1x16xf32, #tpu.memory_space<vmem>>, %arg7: memref<2x16x2048xbf16, #tpu.memory_space<vmem>>, %arg8: memref<2x1x2048xf32, #tpu.memory_space<vmem>>, %arg9: memref<2x2048x16xbf16, #tpu.memory_space<vmem>>, %arg10: memref<2x1x16xf32, #tpu.memory_space<vmem>>, %arg11: memref<2x1x16xf32, #tpu.memory_space<vmem>>, %arg12: memref<2x1x16xf32, #tpu.memory_space<vmem>>, %arg13: memref<16x4xf32, #tpu.memory_space<vmem>>, %arg14: memref<1x4xf32, #tpu.memory_space<vmem>>, %arg15: memref<16x4xf32, #tpu.memory_space<vmem>>) attributes {dimension_semantics = [], scalar_prefetch = 0 : i64, scratch_operands = 0 : i64, tpu.core_type = #tpu.core_type<tc>} {
    %0 = tpu.iota {dimensions = array<i32: 0>} : vector<16x16xi32>
    %c2_i32 = arith.constant 2 : i32
    %c0_i32 = arith.constant 0 : i32
    %1 = arith.cmpi eq, %c2_i32, %c0_i32 : i32
    %c1_i32 = arith.constant 1 : i32
    %2 = arith.select %1, %c1_i32, %c2_i32 : i32
    %3 = vector.broadcast %2 : i32 to vector<16x16xi32>
    %4 = arith.remsi %0, %3 : vector<16x16xi32>
    %c0_i32_0 = arith.constant 0 : i32
    %5 = vector.broadcast %c0_i32_0 : i32 to vector<16x16xi32>
    %6 = arith.cmpi ne, %4, %5 : vector<16x16xi32>
    %c0_i32_1 = arith.constant 0 : i32
    %7 = vector.broadcast %c0_i32_1 : i32 to vector<16x16xi32>
    %8 = arith.cmpi slt, %4, %7 : vector<16x16xi32>
    %c0_i32_2 = arith.constant 0 : i32
    %9 = arith.cmpi slt, %2, %c0_i32_2 : i32
    %10 = vector.broadcast %9 : i1 to vector<16x16xi1>
    %11 = vector.broadcast %10 : vector<16x16xi1> to vector<16x16xi1>
    %12 = arith.xori %8, %11 : vector<16x16xi1>
    %13 = arith.andi %12, %6 : vector<16x16xi1>
    %14 = vector.broadcast %2 : i32 to vector<16x16xi32>
    %15 = arith.addi %4, %14 : vector<16x16xi32>
    %16 = arith.select %13, %15, %4 : vector<16x16xi1>, vector<16x16xi32>
    %17 = tpu.iota {dimensions = array<i32: 1>} : vector<16x16xi32>
    %c2_i32_3 = arith.constant 2 : i32
    %c0_i32_4 = arith.constant 0 : i32
    %18 = arith.cmpi eq, %c2_i32_3, %c0_i32_4 : i32
    %c1_i32_5 = arith.constant 1 : i32
    %19 = arith.select %18, %c1_i32_5, %c2_i32_3 : i32
    %20 = vector.broadcast %19 : i32 to vector<16x16xi32>
    %21 = arith.remsi %17, %20 : vector<16x16xi32>
    %c0_i32_6 = arith.constant 0 : i32
    %22 = vector.broadcast %c0_i32_6 : i32 to vector<16x16xi32>
    %23 = arith.cmpi ne, %21, %22 : vector<16x16xi32>
    %c0_i32_7 = arith.constant 0 : i32
    %24 = vector.broadcast %c0_i32_7 : i32 to vector<16x16xi32>
    %25 = arith.cmpi slt, %21, %24 : vector<16x16xi32>
    %c0_i32_8 = arith.constant 0 : i32
    %26 = arith.cmpi slt, %19, %c0_i32_8 : i32
    %27 = vector.broadcast %26 : i1 to vector<16x16xi1>
    %28 = vector.broadcast %27 : vector<16x16xi1> to vector<16x16xi1>
    %29 = arith.xori %25, %28 : vector<16x16xi1>
    %30 = arith.andi %29, %23 : vector<16x16xi1>
    %31 = vector.broadcast %19 : i32 to vector<16x16xi32>
    %32 = arith.addi %21, %31 : vector<16x16xi32>
    %33 = arith.select %30, %32, %21 : vector<16x16xi1>, vector<16x16xi32>
    %34 = arith.cmpi eq, %16, %33 : vector<16x16xi32>
    %cst = arith.constant 0.000000e+00 : f32
    %cst_9 = arith.constant -1.000000e+30 : f32
    %35 = vector.broadcast %cst : f32 to vector<16x16xf32>
    %36 = vector.broadcast %cst_9 : f32 to vector<16x16xf32>
    %37 = arith.select %34, %35, %36 : vector<16x16xi1>, vector<16x16xf32>
    %c0 = arith.constant 0 : index
    %c0_10 = arith.constant 0 : index
    %38 = vector.load %arg0[%c0, %c0_10] : memref<16x16xf32, #tpu.memory_space<vmem>>, vector<16x16xf32>
    %c0_11 = arith.constant 0 : index
    %c0_12 = arith.constant 0 : index
    %c0_13 = arith.constant 0 : index
    %39 = vector.load %arg1[%c0_11, %c0_12, %c0_13] : memref<2x16x48xf32, #tpu.memory_space<vmem>>, vector<1x16x48xf32>
    %40 = vector.shape_cast %39 : vector<1x16x48xf32> to vector<16x48xf32>
    %cst_14 = arith.constant dense<0.000000e+00> : vector<16x48xf32>
    %41 = tpu.matmul %38, %40, %cst_14 {dimension_numbers = #tpu.dot_dimension_numbers<[1], [0], [0], [1], [0, 0, 1, 1], [], []>} : vector<16x16xf32>, vector<16x48xf32>, vector<16x48xf32> -> vector<16x48xf32>
    %c0_15 = arith.constant 0 : index
    %c0_16 = arith.constant 0 : index
    %c0_17 = arith.constant 0 : index
    %42 = vector.load %arg2[%c0_15, %c0_16, %c0_17] : memref<2x1x48xf32, #tpu.memory_space<vmem>>, vector<1x1x48xf32>
    %43 = vector.shape_cast %42 : vector<1x1x48xf32> to vector<1x48xf32>
    %44 = vector.broadcast %43 : vector<1x48xf32> to vector<16x48xf32>
    %45 = arith.addf %41, %44 : vector<16x48xf32>
    %46 = vector.extract_strided_slice %45 {offsets = [0, 0], sizes = [16, 16], strides = [1, 1]} : vector<16x48xf32> to vector<16x16xf32>
    %47 = vector.extract_strided_slice %45 {offsets = [0, 16], sizes = [16, 16], strides = [1, 1]} : vector<16x48xf32> to vector<16x16xf32>
    %48 = vector.extract_strided_slice %45 {offsets = [0, 32], sizes = [16, 16], strides = [1, 1]} : vector<16x48xf32> to vector<16x16xf32>
    %49 = vector.extract_strided_slice %46 {offsets = [0, 0], sizes = [16, 8], strides = [1, 1]} : vector<16x16xf32> to vector<16x8xf32>
    %50 = vector.extract_strided_slice %47 {offsets = [0, 0], sizes = [16, 8], strides = [1, 1]} : vector<16x16xf32> to vector<16x8xf32>
    %51 = vector.extract_strided_slice %48 {offsets = [0, 0], sizes = [16, 8], strides = [1, 1]} : vector<16x16xf32> to vector<16x8xf32>
    "tpu.trace_start"() <{level = 10 : i32, message = "rd,td->rt"}> : () -> ()
    %cst_18 = arith.constant dense<0.000000e+00> : vector<16x16xf32>
    %52 = tpu.matmul %49, %50, %cst_18 {dimension_numbers = #tpu.dot_dimension_numbers<[1], [1], [0], [0], [0, 0, 1, 0], [], []>} : vector<16x8xf32>, vector<16x8xf32>, vector<16x16xf32> -> vector<16x16xf32>
    "tpu.trace_stop"() : () -> ()
    %cst_19 = arith.constant 0.353553385 : f32
    %53 = vector.broadcast %cst_19 : f32 to vector<16x16xf32>
    %54 = arith.mulf %52, %53 : vector<16x16xf32>
    %55 = arith.addf %54, %37 : vector<16x16xf32>
    %cst_20 = arith.constant dense<0xFF800000> : vector<16xf32>
    %56 = vector.multi_reduction <maximumf>, %55, %cst_20 [1] : vector<16x16xf32> to vector<16xf32>
    %57 = vector.shape_cast %56 : vector<16xf32> to vector<16x1xf32>
    %58 = vector.broadcast %57 : vector<16x1xf32> to vector<16x16xf32>
    %59 = arith.subf %55, %58 : vector<16x16xf32>
    %60 = math.exp %59 : vector<16x16xf32>
    %cst_21 = arith.constant dense<0.000000e+00> : vector<16xf32>
    %61 = vector.multi_reduction <add>, %60, %cst_21 [1] : vector<16x16xf32> to vector<16xf32>
    %62 = vector.shape_cast %61 : vector<16xf32> to vector<16x1xf32>
    %63 = tpu.reciprocal %62 : vector<16x1xf32> -> vector<16x1xf32>
    %64 = vector.broadcast %63 : vector<16x1xf32> to vector<16x16xf32>
    %65 = arith.mulf %60, %64 : vector<16x16xf32>
    %cst_22 = arith.constant dense<0.000000e+00> : vector<16x8xf32>
    %66 = tpu.matmul %65, %51, %cst_22 {dimension_numbers = #tpu.dot_dimension_numbers<[1], [0], [0], [1], [0, 0, 1, 1], [], []>} : vector<16x16xf32>, vector<16x8xf32>, vector<16x8xf32> -> vector<16x8xf32>
    %67 = vector.extract_strided_slice %46 {offsets = [0, 8], sizes = [16, 8], strides = [1, 1]} : vector<16x16xf32> to vector<16x8xf32>
    %68 = vector.extract_strided_slice %47 {offsets = [0, 8], sizes = [16, 8], strides = [1, 1]} : vector<16x16xf32> to vector<16x8xf32>
    %69 = vector.extract_strided_slice %48 {offsets = [0, 8], sizes = [16, 8], strides = [1, 1]} : vector<16x16xf32> to vector<16x8xf32>
    "tpu.trace_start"() <{level = 10 : i32, message = "rd,td->rt"}> : () -> ()
    %cst_23 = arith.constant dense<0.000000e+00> : vector<16x16xf32>
    %70 = tpu.matmul %67, %68, %cst_23 {dimension_numbers = #tpu.dot_dimension_numbers<[1], [1], [0], [0], [0, 0, 1, 0], [], []>} : vector<16x8xf32>, vector<16x8xf32>, vector<16x16xf32> -> vector<16x16xf32>
    "tpu.trace_stop"() : () -> ()
    %cst_24 = arith.constant 0.353553385 : f32
    %71 = vector.broadcast %cst_24 : f32 to vector<16x16xf32>
    %72 = arith.mulf %70, %71 : vector<16x16xf32>
    %73 = arith.addf %72, %37 : vector<16x16xf32>
    %cst_25 = arith.constant dense<0xFF800000> : vector<16xf32>
    %74 = vector.multi_reduction <maximumf>, %73, %cst_25 [1] : vector<16x16xf32> to vector<16xf32>
    %75 = vector.shape_cast %74 : vector<16xf32> to vector<16x1xf32>
    %76 = vector.broadcast %75 : vector<16x1xf32> to vector<16x16xf32>
    %77 = arith.subf %73, %76 : vector<16x16xf32>
    %78 = math.exp %77 : vector<16x16xf32>
    %cst_26 = arith.constant dense<0.000000e+00> : vector<16xf32>
    %79 = vector.multi_reduction <add>, %78, %cst_26 [1] : vector<16x16xf32> to vector<16xf32>
    %80 = vector.shape_cast %79 : vector<16xf32> to vector<16x1xf32>
    %81 = tpu.reciprocal %80 : vector<16x1xf32> -> vector<16x1xf32>
    %82 = vector.broadcast %81 : vector<16x1xf32> to vector<16x16xf32>
    %83 = arith.mulf %78, %82 : vector<16x16xf32>
    %cst_27 = arith.constant dense<0.000000e+00> : vector<16x8xf32>
    %84 = tpu.matmul %83, %69, %cst_27 {dimension_numbers = #tpu.dot_dimension_numbers<[1], [0], [0], [1], [0, 0, 1, 1], [], []>} : vector<16x16xf32>, vector<16x8xf32>, vector<16x8xf32> -> vector<16x8xf32>
    %85 = tpu.concatenate %66, %84 in 1 : vector<16x8xf32>, vector<16x8xf32> -> vector<16x16xf32>
    %c0_28 = arith.constant 0 : index
    %c0_29 = arith.constant 0 : index
    %c0_30 = arith.constant 0 : index
    %86 = vector.load %arg3[%c0_28, %c0_29, %c0_30] : memref<2x16x16xf32, #tpu.memory_space<vmem>>, vector<1x16x16xf32>
    %87 = vector.shape_cast %86 : vector<1x16x16xf32> to vector<16x16xf32>
    %cst_31 = arith.constant dense<0.000000e+00> : vector<16x16xf32>
    %88 = tpu.matmul %85, %87, %cst_31 {dimension_numbers = #tpu.dot_dimension_numbers<[1], [0], [0], [1], [0, 0, 1, 1], [], []>} : vector<16x16xf32>, vector<16x16xf32>, vector<16x16xf32> -> vector<16x16xf32>
    %c0_32 = arith.constant 0 : index
    %c0_33 = arith.constant 0 : index
    %c0_34 = arith.constant 0 : index
    %89 = vector.load %arg4[%c0_32, %c0_33, %c0_34] : memref<2x1x16xf32, #tpu.memory_space<vmem>>, vector<1x1x16xf32>
    %90 = vector.shape_cast %89 : vector<1x1x16xf32> to vector<1x16xf32>
    %91 = vector.broadcast %90 : vector<1x16xf32> to vector<16x16xf32>
    %92 = arith.addf %88, %91 : vector<16x16xf32>
    %93 = arith.addf %38, %92 : vector<16x16xf32>
    %c0_35 = arith.constant 0 : index
    %c0_36 = arith.constant 0 : index
    %c0_37 = arith.constant 0 : index
    %94 = vector.load %arg5[%c0_35, %c0_36, %c0_37] : memref<2x1x16xf32, #tpu.memory_space<vmem>>, vector<1x1x16xf32>
    %95 = vector.shape_cast %94 : vector<1x1x16xf32> to vector<1x16xf32>
    %c0_38 = arith.constant 0 : index
    %c0_39 = arith.constant 0 : index
    %c0_40 = arith.constant 0 : index
    %96 = vector.load %arg6[%c0_38, %c0_39, %c0_40] : memref<2x1x16xf32, #tpu.memory_space<vmem>>, vector<1x1x16xf32>
    %97 = vector.shape_cast %96 : vector<1x1x16xf32> to vector<1x16xf32>
    %cst_41 = arith.constant dense<0.000000e+00> : vector<16xf32>
    %98 = vector.multi_reduction <add>, %93, %cst_41 [1] : vector<16x16xf32> to vector<16xf32>
    %99 = vector.shape_cast %98 : vector<16xf32> to vector<16x1xf32>
    %cst_42 = arith.constant 1.600000e+01 : f32
    %100 = vector.broadcast %cst_42 : f32 to vector<16x1xf32>
    %101 = arith.divf %99, %100 : vector<16x1xf32>
    %102 = vector.broadcast %101 : vector<16x1xf32> to vector<16x16xf32>
    %103 = arith.subf %93, %102 : vector<16x16xf32>
    %104 = arith.mulf %103, %103 : vector<16x16xf32>
    %cst_43 = arith.constant dense<0.000000e+00> : vector<16xf32>
    %105 = vector.multi_reduction <add>, %104, %cst_43 [1] : vector<16x16xf32> to vector<16xf32>
    %106 = vector.shape_cast %105 : vector<16xf32> to vector<16x1xf32>
    %cst_44 = arith.constant 1.600000e+01 : f32
    %107 = vector.broadcast %cst_44 : f32 to vector<16x1xf32>
    %108 = arith.divf %106, %107 : vector<16x1xf32>
    %109 = vector.broadcast %101 : vector<16x1xf32> to vector<16x16xf32>
    %110 = arith.subf %93, %109 : vector<16x16xf32>
    %cst_45 = arith.constant 9.99999974E-6 : f32
    %111 = vector.broadcast %cst_45 : f32 to vector<16x1xf32>
    %112 = arith.addf %108, %111 : vector<16x1xf32>
    %113 = math.rsqrt %112 : vector<16x1xf32>
    %114 = vector.broadcast %113 : vector<16x1xf32> to vector<16x16xf32>
    %115 = arith.mulf %110, %114 : vector<16x16xf32>
    %116 = vector.broadcast %95 : vector<1x16xf32> to vector<16x16xf32>
    %117 = arith.mulf %115, %116 : vector<16x16xf32>
    %118 = vector.broadcast %97 : vector<1x16xf32> to vector<16x16xf32>
    %119 = arith.addf %117, %118 : vector<16x16xf32>
    %c0_46 = arith.constant 0 : index
    %c0_47 = arith.constant 0 : index
    %c0_48 = arith.constant 0 : index
    %120 = vector.load %arg7[%c0_46, %c0_47, %c0_48] : memref<2x16x2048xbf16, #tpu.memory_space<vmem>>, vector<1x16x2048xbf16>
    %121 = vector.shape_cast %120 : vector<1x16x2048xbf16> to vector<16x2048xbf16>
    %122 = arith.extf %121 : vector<16x2048xbf16> to vector<16x2048xf32>
    %cst_49 = arith.constant dense<0.000000e+00> : vector<16x2048xf32>
    %123 = tpu.matmul %119, %122, %cst_49 {dimension_numbers = #tpu.dot_dimension_numbers<[1], [0], [0], [1], [0, 0, 1, 1], [], []>} : vector<16x16xf32>, vector<16x2048xf32>, vector<16x2048xf32> -> vector<16x2048xf32>
    %c0_50 = arith.constant 0 : index
    %c0_51 = arith.constant 0 : index
    %c0_52 = arith.constant 0 : index
    %124 = vector.load %arg8[%c0_50, %c0_51, %c0_52] : memref<2x1x2048xf32, #tpu.memory_space<vmem>>, vector<1x1x2048xf32>
    %125 = vector.shape_cast %124 : vector<1x1x2048xf32> to vector<1x2048xf32>
    %126 = vector.broadcast %125 : vector<1x2048xf32> to vector<16x2048xf32>
    %127 = arith.addf %123, %126 : vector<16x2048xf32>
    %cst_53 = arith.constant 0.000000e+00 : f32
    %128 = vector.broadcast %cst_53 : f32 to vector<16x2048xf32>
    %129 = arith.maximumf %127, %128 : vector<16x2048xf32>
    %c0_54 = arith.constant 0 : index
    %c0_55 = arith.constant 0 : index
    %c0_56 = arith.constant 0 : index
    %130 = vector.load %arg9[%c0_54, %c0_55, %c0_56] : memref<2x2048x16xbf16, #tpu.memory_space<vmem>>, vector<1x2048x16xbf16>
    %131 = vector.shape_cast %130 : vector<1x2048x16xbf16> to vector<2048x16xbf16>
    %132 = arith.extf %131 : vector<2048x16xbf16> to vector<2048x16xf32>
    %cst_57 = arith.constant dense<0.000000e+00> : vector<16x16xf32>
    %133 = tpu.matmul %129, %132, %cst_57 {dimension_numbers = #tpu.dot_dimension_numbers<[1], [0], [0], [1], [0, 0, 1, 1], [], []>} : vector<16x2048xf32>, vector<2048x16xf32>, vector<16x16xf32> -> vector<16x16xf32>
    %c0_58 = arith.constant 0 : index
    %c0_59 = arith.constant 0 : index
    %c0_60 = arith.constant 0 : index
    %134 = vector.load %arg10[%c0_58, %c0_59, %c0_60] : memref<2x1x16xf32, #tpu.memory_space<vmem>>, vector<1x1x16xf32>
    %135 = vector.shape_cast %134 : vector<1x1x16xf32> to vector<1x16xf32>
    %136 = vector.broadcast %135 : vector<1x16xf32> to vector<16x16xf32>
    %137 = arith.addf %133, %136 : vector<16x16xf32>
    %138 = arith.addf %119, %137 : vector<16x16xf32>
    %c0_61 = arith.constant 0 : index
    %c0_62 = arith.constant 0 : index
    %c0_63 = arith.constant 0 : index
    %139 = vector.load %arg11[%c0_61, %c0_62, %c0_63] : memref<2x1x16xf32, #tpu.memory_space<vmem>>, vector<1x1x16xf32>
    %140 = vector.shape_cast %139 : vector<1x1x16xf32> to vector<1x16xf32>
    %c0_64 = arith.constant 0 : index
    %c0_65 = arith.constant 0 : index
    %c0_66 = arith.constant 0 : index
    %141 = vector.load %arg12[%c0_64, %c0_65, %c0_66] : memref<2x1x16xf32, #tpu.memory_space<vmem>>, vector<1x1x16xf32>
    %142 = vector.shape_cast %141 : vector<1x1x16xf32> to vector<1x16xf32>
    %cst_67 = arith.constant dense<0.000000e+00> : vector<16xf32>
    %143 = vector.multi_reduction <add>, %138, %cst_67 [1] : vector<16x16xf32> to vector<16xf32>
    %144 = vector.shape_cast %143 : vector<16xf32> to vector<16x1xf32>
    %cst_68 = arith.constant 1.600000e+01 : f32
    %145 = vector.broadcast %cst_68 : f32 to vector<16x1xf32>
    %146 = arith.divf %144, %145 : vector<16x1xf32>
    %147 = vector.broadcast %146 : vector<16x1xf32> to vector<16x16xf32>
    %148 = arith.subf %138, %147 : vector<16x16xf32>
    %149 = arith.mulf %148, %148 : vector<16x16xf32>
    %cst_69 = arith.constant dense<0.000000e+00> : vector<16xf32>
    %150 = vector.multi_reduction <add>, %149, %cst_69 [1] : vector<16x16xf32> to vector<16xf32>
    %151 = vector.shape_cast %150 : vector<16xf32> to vector<16x1xf32>
    %cst_70 = arith.constant 1.600000e+01 : f32
    %152 = vector.broadcast %cst_70 : f32 to vector<16x1xf32>
    %153 = arith.divf %151, %152 : vector<16x1xf32>
    %154 = vector.broadcast %146 : vector<16x1xf32> to vector<16x16xf32>
    %155 = arith.subf %138, %154 : vector<16x16xf32>
    %cst_71 = arith.constant 9.99999974E-6 : f32
    %156 = vector.broadcast %cst_71 : f32 to vector<16x1xf32>
    %157 = arith.addf %153, %156 : vector<16x1xf32>
    %158 = math.rsqrt %157 : vector<16x1xf32>
    %159 = vector.broadcast %158 : vector<16x1xf32> to vector<16x16xf32>
    %160 = arith.mulf %155, %159 : vector<16x16xf32>
    %161 = vector.broadcast %140 : vector<1x16xf32> to vector<16x16xf32>
    %162 = arith.mulf %160, %161 : vector<16x16xf32>
    %163 = vector.broadcast %142 : vector<1x16xf32> to vector<16x16xf32>
    %164 = arith.addf %162, %163 : vector<16x16xf32>
    %c1 = arith.constant 1 : index
    %c0_72 = arith.constant 0 : index
    %c0_73 = arith.constant 0 : index
    %165 = vector.load %arg1[%c1, %c0_72, %c0_73] : memref<2x16x48xf32, #tpu.memory_space<vmem>>, vector<1x16x48xf32>
    %166 = vector.shape_cast %165 : vector<1x16x48xf32> to vector<16x48xf32>
    %cst_74 = arith.constant dense<0.000000e+00> : vector<16x48xf32>
    %167 = tpu.matmul %164, %166, %cst_74 {dimension_numbers = #tpu.dot_dimension_numbers<[1], [0], [0], [1], [0, 0, 1, 1], [], []>} : vector<16x16xf32>, vector<16x48xf32>, vector<16x48xf32> -> vector<16x48xf32>
    %c1_75 = arith.constant 1 : index
    %c0_76 = arith.constant 0 : index
    %c0_77 = arith.constant 0 : index
    %168 = vector.load %arg2[%c1_75, %c0_76, %c0_77] : memref<2x1x48xf32, #tpu.memory_space<vmem>>, vector<1x1x48xf32>
    %169 = vector.shape_cast %168 : vector<1x1x48xf32> to vector<1x48xf32>
    %170 = vector.broadcast %169 : vector<1x48xf32> to vector<16x48xf32>
    %171 = arith.addf %167, %170 : vector<16x48xf32>
    %172 = vector.extract_strided_slice %171 {offsets = [0, 0], sizes = [16, 16], strides = [1, 1]} : vector<16x48xf32> to vector<16x16xf32>
    %173 = vector.extract_strided_slice %171 {offsets = [0, 16], sizes = [16, 16], strides = [1, 1]} : vector<16x48xf32> to vector<16x16xf32>
    %174 = vector.extract_strided_slice %171 {offsets = [0, 32], sizes = [16, 16], strides = [1, 1]} : vector<16x48xf32> to vector<16x16xf32>
    %175 = vector.extract_strided_slice %172 {offsets = [0, 0], sizes = [16, 8], strides = [1, 1]} : vector<16x16xf32> to vector<16x8xf32>
    %176 = vector.extract_strided_slice %173 {offsets = [0, 0], sizes = [16, 8], strides = [1, 1]} : vector<16x16xf32> to vector<16x8xf32>
    %177 = vector.extract_strided_slice %174 {offsets = [0, 0], sizes = [16, 8], strides = [1, 1]} : vector<16x16xf32> to vector<16x8xf32>
    "tpu.trace_start"() <{level = 10 : i32, message = "rd,td->rt"}> : () -> ()
    %cst_78 = arith.constant dense<0.000000e+00> : vector<16x16xf32>
    %178 = tpu.matmul %175, %176, %cst_78 {dimension_numbers = #tpu.dot_dimension_numbers<[1], [1], [0], [0], [0, 0, 1, 0], [], []>} : vector<16x8xf32>, vector<16x8xf32>, vector<16x16xf32> -> vector<16x16xf32>
    "tpu.trace_stop"() : () -> ()
    %cst_79 = arith.constant 0.353553385 : f32
    %179 = vector.broadcast %cst_79 : f32 to vector<16x16xf32>
    %180 = arith.mulf %178, %179 : vector<16x16xf32>
    %181 = arith.addf %180, %37 : vector<16x16xf32>
    %cst_80 = arith.constant dense<0xFF800000> : vector<16xf32>
    %182 = vector.multi_reduction <maximumf>, %181, %cst_80 [1] : vector<16x16xf32> to vector<16xf32>
    %183 = vector.shape_cast %182 : vector<16xf32> to vector<16x1xf32>
    %184 = vector.broadcast %183 : vector<16x1xf32> to vector<16x16xf32>
    %185 = arith.subf %181, %184 : vector<16x16xf32>
    %186 = math.exp %185 : vector<16x16xf32>
    %cst_81 = arith.constant dense<0.000000e+00> : vector<16xf32>
    %187 = vector.multi_reduction <add>, %186, %cst_81 [1] : vector<16x16xf32> to vector<16xf32>
    %188 = vector.shape_cast %187 : vector<16xf32> to vector<16x1xf32>
    %189 = tpu.reciprocal %188 : vector<16x1xf32> -> vector<16x1xf32>
    %190 = vector.broadcast %189 : vector<16x1xf32> to vector<16x16xf32>
    %191 = arith.mulf %186, %190 : vector<16x16xf32>
    %cst_82 = arith.constant dense<0.000000e+00> : vector<16x8xf32>
    %192 = tpu.matmul %191, %177, %cst_82 {dimension_numbers = #tpu.dot_dimension_numbers<[1], [0], [0], [1], [0, 0, 1, 1], [], []>} : vector<16x16xf32>, vector<16x8xf32>, vector<16x8xf32> -> vector<16x8xf32>
    %193 = vector.extract_strided_slice %172 {offsets = [0, 8], sizes = [16, 8], strides = [1, 1]} : vector<16x16xf32> to vector<16x8xf32>
    %194 = vector.extract_strided_slice %173 {offsets = [0, 8], sizes = [16, 8], strides = [1, 1]} : vector<16x16xf32> to vector<16x8xf32>
    %195 = vector.extract_strided_slice %174 {offsets = [0, 8], sizes = [16, 8], strides = [1, 1]} : vector<16x16xf32> to vector<16x8xf32>
    "tpu.trace_start"() <{level = 10 : i32, message = "rd,td->rt"}> : () -> ()
    %cst_83 = arith.constant dense<0.000000e+00> : vector<16x16xf32>
    %196 = tpu.matmul %193, %194, %cst_83 {dimension_numbers = #tpu.dot_dimension_numbers<[1], [1], [0], [0], [0, 0, 1, 0], [], []>} : vector<16x8xf32>, vector<16x8xf32>, vector<16x16xf32> -> vector<16x16xf32>
    "tpu.trace_stop"() : () -> ()
    %cst_84 = arith.constant 0.353553385 : f32
    %197 = vector.broadcast %cst_84 : f32 to vector<16x16xf32>
    %198 = arith.mulf %196, %197 : vector<16x16xf32>
    %199 = arith.addf %198, %37 : vector<16x16xf32>
    %cst_85 = arith.constant dense<0xFF800000> : vector<16xf32>
    %200 = vector.multi_reduction <maximumf>, %199, %cst_85 [1] : vector<16x16xf32> to vector<16xf32>
    %201 = vector.shape_cast %200 : vector<16xf32> to vector<16x1xf32>
    %202 = vector.broadcast %201 : vector<16x1xf32> to vector<16x16xf32>
    %203 = arith.subf %199, %202 : vector<16x16xf32>
    %204 = math.exp %203 : vector<16x16xf32>
    %cst_86 = arith.constant dense<0.000000e+00> : vector<16xf32>
    %205 = vector.multi_reduction <add>, %204, %cst_86 [1] : vector<16x16xf32> to vector<16xf32>
    %206 = vector.shape_cast %205 : vector<16xf32> to vector<16x1xf32>
    %207 = tpu.reciprocal %206 : vector<16x1xf32> -> vector<16x1xf32>
    %208 = vector.broadcast %207 : vector<16x1xf32> to vector<16x16xf32>
    %209 = arith.mulf %204, %208 : vector<16x16xf32>
    %cst_87 = arith.constant dense<0.000000e+00> : vector<16x8xf32>
    %210 = tpu.matmul %209, %195, %cst_87 {dimension_numbers = #tpu.dot_dimension_numbers<[1], [0], [0], [1], [0, 0, 1, 1], [], []>} : vector<16x16xf32>, vector<16x8xf32>, vector<16x8xf32> -> vector<16x8xf32>
    %211 = tpu.concatenate %192, %210 in 1 : vector<16x8xf32>, vector<16x8xf32> -> vector<16x16xf32>
    %c1_88 = arith.constant 1 : index
    %c0_89 = arith.constant 0 : index
    %c0_90 = arith.constant 0 : index
    %212 = vector.load %arg3[%c1_88, %c0_89, %c0_90] : memref<2x16x16xf32, #tpu.memory_space<vmem>>, vector<1x16x16xf32>
    %213 = vector.shape_cast %212 : vector<1x16x16xf32> to vector<16x16xf32>
    %cst_91 = arith.constant dense<0.000000e+00> : vector<16x16xf32>
    %214 = tpu.matmul %211, %213, %cst_91 {dimension_numbers = #tpu.dot_dimension_numbers<[1], [0], [0], [1], [0, 0, 1, 1], [], []>} : vector<16x16xf32>, vector<16x16xf32>, vector<16x16xf32> -> vector<16x16xf32>
    %c1_92 = arith.constant 1 : index
    %c0_93 = arith.constant 0 : index
    %c0_94 = arith.constant 0 : index
    %215 = vector.load %arg4[%c1_92, %c0_93, %c0_94] : memref<2x1x16xf32, #tpu.memory_space<vmem>>, vector<1x1x16xf32>
    %216 = vector.shape_cast %215 : vector<1x1x16xf32> to vector<1x16xf32>
    %217 = vector.broadcast %216 : vector<1x16xf32> to vector<16x16xf32>
    %218 = arith.addf %214, %217 : vector<16x16xf32>
    %219 = arith.addf %164, %218 : vector<16x16xf32>
    %c1_95 = arith.constant 1 : index
    %c0_96 = arith.constant 0 : index
    %c0_97 = arith.constant 0 : index
    %220 = vector.load %arg5[%c1_95, %c0_96, %c0_97] : memref<2x1x16xf32, #tpu.memory_space<vmem>>, vector<1x1x16xf32>
    %221 = vector.shape_cast %220 : vector<1x1x16xf32> to vector<1x16xf32>
    %c1_98 = arith.constant 1 : index
    %c0_99 = arith.constant 0 : index
    %c0_100 = arith.constant 0 : index
    %222 = vector.load %arg6[%c1_98, %c0_99, %c0_100] : memref<2x1x16xf32, #tpu.memory_space<vmem>>, vector<1x1x16xf32>
    %223 = vector.shape_cast %222 : vector<1x1x16xf32> to vector<1x16xf32>
    %cst_101 = arith.constant dense<0.000000e+00> : vector<16xf32>
    %224 = vector.multi_reduction <add>, %219, %cst_101 [1] : vector<16x16xf32> to vector<16xf32>
    %225 = vector.shape_cast %224 : vector<16xf32> to vector<16x1xf32>
    %cst_102 = arith.constant 1.600000e+01 : f32
    %226 = vector.broadcast %cst_102 : f32 to vector<16x1xf32>
    %227 = arith.divf %225, %226 : vector<16x1xf32>
    %228 = vector.broadcast %227 : vector<16x1xf32> to vector<16x16xf32>
    %229 = arith.subf %219, %228 : vector<16x16xf32>
    %230 = arith.mulf %229, %229 : vector<16x16xf32>
    %cst_103 = arith.constant dense<0.000000e+00> : vector<16xf32>
    %231 = vector.multi_reduction <add>, %230, %cst_103 [1] : vector<16x16xf32> to vector<16xf32>
    %232 = vector.shape_cast %231 : vector<16xf32> to vector<16x1xf32>
    %cst_104 = arith.constant 1.600000e+01 : f32
    %233 = vector.broadcast %cst_104 : f32 to vector<16x1xf32>
    %234 = arith.divf %232, %233 : vector<16x1xf32>
    %235 = vector.broadcast %227 : vector<16x1xf32> to vector<16x16xf32>
    %236 = arith.subf %219, %235 : vector<16x16xf32>
    %cst_105 = arith.constant 9.99999974E-6 : f32
    %237 = vector.broadcast %cst_105 : f32 to vector<16x1xf32>
    %238 = arith.addf %234, %237 : vector<16x1xf32>
    %239 = math.rsqrt %238 : vector<16x1xf32>
    %240 = vector.broadcast %239 : vector<16x1xf32> to vector<16x16xf32>
    %241 = arith.mulf %236, %240 : vector<16x16xf32>
    %242 = vector.broadcast %221 : vector<1x16xf32> to vector<16x16xf32>
    %243 = arith.mulf %241, %242 : vector<16x16xf32>
    %244 = vector.broadcast %223 : vector<1x16xf32> to vector<16x16xf32>
    %245 = arith.addf %243, %244 : vector<16x16xf32>
    %c1_106 = arith.constant 1 : index
    %c0_107 = arith.constant 0 : index
    %c0_108 = arith.constant 0 : index
    %246 = vector.load %arg7[%c1_106, %c0_107, %c0_108] : memref<2x16x2048xbf16, #tpu.memory_space<vmem>>, vector<1x16x2048xbf16>
    %247 = vector.shape_cast %246 : vector<1x16x2048xbf16> to vector<16x2048xbf16>
    %248 = arith.extf %247 : vector<16x2048xbf16> to vector<16x2048xf32>
    %cst_109 = arith.constant dense<0.000000e+00> : vector<16x2048xf32>
    %249 = tpu.matmul %245, %248, %cst_109 {dimension_numbers = #tpu.dot_dimension_numbers<[1], [0], [0], [1], [0, 0, 1, 1], [], []>} : vector<16x16xf32>, vector<16x2048xf32>, vector<16x2048xf32> -> vector<16x2048xf32>
    %c1_110 = arith.constant 1 : index
    %c0_111 = arith.constant 0 : index
    %c0_112 = arith.constant 0 : index
    %250 = vector.load %arg8[%c1_110, %c0_111, %c0_112] : memref<2x1x2048xf32, #tpu.memory_space<vmem>>, vector<1x1x2048xf32>
    %251 = vector.shape_cast %250 : vector<1x1x2048xf32> to vector<1x2048xf32>
    %252 = vector.broadcast %251 : vector<1x2048xf32> to vector<16x2048xf32>
    %253 = arith.addf %249, %252 : vector<16x2048xf32>
    %cst_113 = arith.constant 0.000000e+00 : f32
    %254 = vector.broadcast %cst_113 : f32 to vector<16x2048xf32>
    %255 = arith.maximumf %253, %254 : vector<16x2048xf32>
    %c1_114 = arith.constant 1 : index
    %c0_115 = arith.constant 0 : index
    %c0_116 = arith.constant 0 : index
    %256 = vector.load %arg9[%c1_114, %c0_115, %c0_116] : memref<2x2048x16xbf16, #tpu.memory_space<vmem>>, vector<1x2048x16xbf16>
    %257 = vector.shape_cast %256 : vector<1x2048x16xbf16> to vector<2048x16xbf16>
    %258 = arith.extf %257 : vector<2048x16xbf16> to vector<2048x16xf32>
    %cst_117 = arith.constant dense<0.000000e+00> : vector<16x16xf32>
    %259 = tpu.matmul %255, %258, %cst_117 {dimension_numbers = #tpu.dot_dimension_numbers<[1], [0], [0], [1], [0, 0, 1, 1], [], []>} : vector<16x2048xf32>, vector<2048x16xf32>, vector<16x16xf32> -> vector<16x16xf32>
    %c1_118 = arith.constant 1 : index
    %c0_119 = arith.constant 0 : index
    %c0_120 = arith.constant 0 : index
    %260 = vector.load %arg10[%c1_118, %c0_119, %c0_120] : memref<2x1x16xf32, #tpu.memory_space<vmem>>, vector<1x1x16xf32>
    %261 = vector.shape_cast %260 : vector<1x1x16xf32> to vector<1x16xf32>
    %262 = vector.broadcast %261 : vector<1x16xf32> to vector<16x16xf32>
    %263 = arith.addf %259, %262 : vector<16x16xf32>
    %264 = arith.addf %245, %263 : vector<16x16xf32>
    %c1_121 = arith.constant 1 : index
    %c0_122 = arith.constant 0 : index
    %c0_123 = arith.constant 0 : index
    %265 = vector.load %arg11[%c1_121, %c0_122, %c0_123] : memref<2x1x16xf32, #tpu.memory_space<vmem>>, vector<1x1x16xf32>
    %266 = vector.shape_cast %265 : vector<1x1x16xf32> to vector<1x16xf32>
    %c1_124 = arith.constant 1 : index
    %c0_125 = arith.constant 0 : index
    %c0_126 = arith.constant 0 : index
    %267 = vector.load %arg12[%c1_124, %c0_125, %c0_126] : memref<2x1x16xf32, #tpu.memory_space<vmem>>, vector<1x1x16xf32>
    %268 = vector.shape_cast %267 : vector<1x1x16xf32> to vector<1x16xf32>
    %cst_127 = arith.constant dense<0.000000e+00> : vector<16xf32>
    %269 = vector.multi_reduction <add>, %264, %cst_127 [1] : vector<16x16xf32> to vector<16xf32>
    %270 = vector.shape_cast %269 : vector<16xf32> to vector<16x1xf32>
    %cst_128 = arith.constant 1.600000e+01 : f32
    %271 = vector.broadcast %cst_128 : f32 to vector<16x1xf32>
    %272 = arith.divf %270, %271 : vector<16x1xf32>
    %273 = vector.broadcast %272 : vector<16x1xf32> to vector<16x16xf32>
    %274 = arith.subf %264, %273 : vector<16x16xf32>
    %275 = arith.mulf %274, %274 : vector<16x16xf32>
    %cst_129 = arith.constant dense<0.000000e+00> : vector<16xf32>
    %276 = vector.multi_reduction <add>, %275, %cst_129 [1] : vector<16x16xf32> to vector<16xf32>
    %277 = vector.shape_cast %276 : vector<16xf32> to vector<16x1xf32>
    %cst_130 = arith.constant 1.600000e+01 : f32
    %278 = vector.broadcast %cst_130 : f32 to vector<16x1xf32>
    %279 = arith.divf %277, %278 : vector<16x1xf32>
    %280 = vector.broadcast %272 : vector<16x1xf32> to vector<16x16xf32>
    %281 = arith.subf %264, %280 : vector<16x16xf32>
    %cst_131 = arith.constant 9.99999974E-6 : f32
    %282 = vector.broadcast %cst_131 : f32 to vector<16x1xf32>
    %283 = arith.addf %279, %282 : vector<16x1xf32>
    %284 = math.rsqrt %283 : vector<16x1xf32>
    %285 = vector.broadcast %284 : vector<16x1xf32> to vector<16x16xf32>
    %286 = arith.mulf %281, %285 : vector<16x16xf32>
    %287 = vector.broadcast %266 : vector<1x16xf32> to vector<16x16xf32>
    %288 = arith.mulf %286, %287 : vector<16x16xf32>
    %289 = vector.broadcast %268 : vector<1x16xf32> to vector<16x16xf32>
    %290 = arith.addf %288, %289 : vector<16x16xf32>
    %c0_132 = arith.constant 0 : index
    %c0_133 = arith.constant 0 : index
    %291 = vector.load %arg13[%c0_132, %c0_133] : memref<16x4xf32, #tpu.memory_space<vmem>>, vector<16x4xf32>
    %cst_134 = arith.constant dense<0.000000e+00> : vector<16x4xf32>
    %292 = tpu.matmul %290, %291, %cst_134 {dimension_numbers = #tpu.dot_dimension_numbers<[1], [0], [0], [1], [0, 0, 1, 1], [], []>} : vector<16x16xf32>, vector<16x4xf32>, vector<16x4xf32> -> vector<16x4xf32>
    %c0_135 = arith.constant 0 : index
    %c0_136 = arith.constant 0 : index
    %293 = vector.load %arg14[%c0_135, %c0_136] : memref<1x4xf32, #tpu.memory_space<vmem>>, vector<1x4xf32>
    %294 = vector.broadcast %293 : vector<1x4xf32> to vector<16x4xf32>
    %295 = arith.addf %292, %294 : vector<16x4xf32>
    %c0_137 = arith.constant 0 : index
    %c0_138 = arith.constant 0 : index
    %296 = vector.load %arg15[%c0_137, %c0_138] : memref<16x4xf32, #tpu.memory_space<vmem>>, vector<16x4xf32>
    tpu.vector_store %arg15[%c0_137, %c0_138], %295 {strides = array<i32>} : memref<16x4xf32, #tpu.memory_space<vmem>>, vector<16x4xf32>,
    return
  }
}

</mosaic_0001>

<llo_original>
// kernel: transformer_position_prediction.1
$region0: #{transformer_position_prediction.1}
  #allocation0 [shape = 'u32[]', space=smem, size = 0x4, offset = 0x4, fixed_abs, tag = 'smem constant byte address 0x4 - core index']
  #allocation1 [shape = 'u32[144,128]{1,0:T(1,128)}', space=vmem, size = 0x12000, scoped, tag = 'internal scratch']
  %s0 = inlined_call_operand.vmem [shape: f32[16,16], index: 0, kind: input, shape index: {}]
  %s1 = inlined_call_operand.vmem [shape: f32[2,16,48], index: 1, kind: input, shape index: {}]
  %s2 = inlined_call_operand.vmem [shape: f32[2,1,48], index: 2, kind: input, shape index: {}]
  %s3 = inlined_call_operand.vmem [shape: f32[2,16,16], index: 3, kind: input, shape index: {}]
  %s4 = inlined_call_operand.vmem [shape: f32[2,1,16], index: 4, kind: input, shape index: {}]
  %s5 = inlined_call_operand.vmem [shape: f32[2,1,16], index: 5, kind: input, shape index: {}]
  %s6 = inlined_call_operand.vmem [shape: f32[2,1,16], index: 6, kind: input, shape index: {}]
  %s7 = inlined_call_operand.vmem [shape: bf16[2,16,2048], index: 7, kind: input, shape index: {}]
  %s8 = inlined_call_operand.vmem [shape: f32[2,1,2048], index: 8, kind: input, shape index: {}]
  %s9 = inlined_call_operand.vmem [shape: bf16[2,2048,16], index: 9, kind: input, shape index: {}]
  %s10 = inlined_call_operand.vmem [shape: f32[2,1,16], index: 10, kind: input, shape index: {}]
  %s11 = inlined_call_operand.vmem [shape: f32[2,1,16], index: 11, kind: input, shape index: {}]
  %s12 = inlined_call_operand.vmem [shape: f32[2,1,16], index: 12, kind: input, shape index: {}]
  %s13 = inlined_call_operand.vmem [shape: f32[16,4], index: 13, kind: input, shape index: {}]
  %s14 = inlined_call_operand.vmem [shape: f32[1,4], index: 14, kind: input, shape index: {}]
  %s15 = inlined_call_operand.vmem [shape: f32[16,4], index: 15, kind: output, shape index: {}]
  %s16 = sld [smem:[#allocation0]]
  $region70: #{transformer_position_prediction.1} parent=0
    _
  %s18 = ssub.s32 1, %s16
  %s19 = scalar_select 0, %s18, %s16
  // Predicated region
  $region2: #{transformer_position_prediction.1} parent=0 // pred_check
    _
  $region3: #{transformer_position_prediction.1} parent=0 // pred_check_branch
    %21 = sbr.rel (0) target = $region5
  $region4: #{transformer_position_prediction.1} parent=0 // pred_region
    _
  $region5: #{transformer_position_prediction.1} parent=0 // pred_fallthru
    _
  // Predicated region
  $region6: #{transformer_position_prediction.1} parent=0 // pred_check
    _
  $region7: #{transformer_position_prediction.1} parent=0 // pred_check_branch
    %23 = sbr.rel (0) target = $region9
  $region8: #{transformer_position_prediction.1} parent=0 // pred_region
    _
  $region9: #{transformer_position_prediction.1} parent=0 // pred_fallthru
    _
  // Predicated region
  $region10: #{transformer_position_prediction.1} parent=0 // pred_check
    _
  $region11: #{transformer_position_prediction.1} parent=0 // pred_check_branch
    %25 = sbr.rel (0) target = $region13
  $region12: #{transformer_position_prediction.1} parent=0 // pred_region
    _
  $region13: #{transformer_position_prediction.1} parent=0 // pred_fallthru
    _
  // Predicated region
  $region14: #{transformer_position_prediction.1} parent=0 // pred_check
    _
  $region15: #{transformer_position_prediction.1} parent=0 // pred_check_branch
    %27 = sbr.rel (0) target = $region17
  $region16: #{transformer_position_prediction.1} parent=0 // pred_region
    _
  $region17: #{transformer_position_prediction.1} parent=0 // pred_fallthru
    _
  // Predicated region
  $region18: #{transformer_position_prediction.1} parent=0 // pred_check
    _
  $region19: #{transformer_position_prediction.1} parent=0 // pred_check_branch
    %29 = sbr.rel (0) target = $region21
  $region20: #{transformer_position_prediction.1} parent=0 // pred_region
    _
  $region21: #{transformer_position_prediction.1} parent=0 // pred_fallthru
    _
  // Predicated region
  $region22: #{transformer_position_prediction.1} parent=0 // pred_check
    _
  $region23: #{transformer_position_prediction.1} parent=0 // pred_check_branch
    %31 = sbr.rel (0) target = $region25
  $region24: #{transformer_position_prediction.1} parent=0 // pred_region
    _
  $region25: #{transformer_position_prediction.1} parent=0 // pred_fallthru
    _
  // Predicated region
  $region26: #{transformer_position_prediction.1} parent=0 // pred_check
    _
  $region27: #{transformer_position_prediction.1} parent=0 // pred_check_branch
    %33 = sbr.rel (0) target = $region29
  $region28: #{transformer_position_prediction.1} parent=0 // pred_region
    _
  $region29: #{transformer_position_prediction.1} parent=0 // pred_fallthru
    _
  // Predicated region
  $region30: #{transformer_position_prediction.1} parent=0 // pred_check
    _
  $region31: #{transformer_position_prediction.1} parent=0 // pred_check_branch
    %35 = sbr.rel (0) target = $region33
  $region32: #{transformer_position_prediction.1} parent=0 // pred_region
    _
  $region33: #{transformer_position_prediction.1} parent=0 // pred_fallthru
    _
  // Predicated region
  $region34: #{transformer_position_prediction.1} parent=0 // pred_check
    _
  $region35: #{transformer_position_prediction.1} parent=0 // pred_check_branch
    %37 = sbr.rel (0) target = $region37
  $region36: #{transformer_position_prediction.1} parent=0 // pred_region
    _
  $region37: #{transformer_position_prediction.1} parent=0 // pred_fallthru
    _
  // Predicated region
  $region38: #{transformer_position_prediction.1} parent=0 // pred_check
    _
  $region39: #{transformer_position_prediction.1} parent=0 // pred_check_branch
    %39 = sbr.rel (0) target = $region41
  $region40: #{transformer_position_prediction.1} parent=0 // pred_region
    _
  $region41: #{transformer_position_prediction.1} parent=0 // pred_fallthru
    _
  // Predicated region
  $region42: #{transformer_position_prediction.1} parent=0 // pred_check
    _
  $region43: #{transformer_position_prediction.1} parent=0 // pred_check_branch
    %41 = sbr.rel (0) target = $region45
  $region44: #{transformer_position_prediction.1} parent=0 // pred_region
    _
  $region45: #{transformer_position_prediction.1} parent=0 // pred_fallthru
    _
  // Predicated region
  $region46: #{transformer_position_prediction.1} parent=0 // pred_check
    _
  $region47: #{transformer_position_prediction.1} parent=0 // pred_check_branch
    %43 = sbr.rel (0) target = $region49
  $region48: #{transformer_position_prediction.1} parent=0 // pred_region
    _
  $region49: #{transformer_position_prediction.1} parent=0 // pred_fallthru
    _
  // Predicated region
  $region50: #{transformer_position_prediction.1} parent=0 // pred_check
    _
  $region51: #{transformer_position_prediction.1} parent=0 // pred_check_branch
    %45 = sbr.rel (0) target = $region53
  $region52: #{transformer_position_prediction.1} parent=0 // pred_region
    _
  $region53: #{transformer_position_prediction.1} parent=0 // pred_fallthru
    _
  // Predicated region
  $region54: #{transformer_position_prediction.1} parent=0 // pred_check
    _
  $region55: #{transformer_position_prediction.1} parent=0 // pred_check_branch
    %47 = sbr.rel (0) target = $region57
  $region56: #{transformer_position_prediction.1} parent=0 // pred_region
    _
  $region57: #{transformer_position_prediction.1} parent=0 // pred_fallthru
    _
  // Predicated region
  $region58: #{transformer_position_prediction.1} parent=0 // pred_check
    _
  $region59: #{transformer_position_prediction.1} parent=0 // pred_check_branch
    %49 = sbr.rel (0) target = $region61
  $region60: #{transformer_position_prediction.1} parent=0 // pred_region
    _
  $region61: #{transformer_position_prediction.1} parent=0 // pred_fallthru
    _
  %v50 = vlaneseq
  %v51 = vshrl.u32 %v50, 7
  %v52 = vadd.s32 %v51, 8
  %vm53 = vcmp.lt.s32.totalorder %v51, 0
  %v54 = vsub.s32 0, %v51
  %v55 = vsel %vm53, %v54, %v51
  %v56 = vshrl.u32 %v55, 1
  %v57 = vand.u32 %v55, 1
  %v58 = vsub.s32 0, %v57
  %v59 = vsel %vm53, %v58, %v57
  %vm60 = vcmp.lt.s32.totalorder %v52, 0
  %v61 = vsub.s32 0, %v52
  %v62 = vsel %vm60, %v61, %v52
  %v63 = vshrl.u32 %v62, 1
  %v64 = vand.u32 %v62, 1
  %v65 = vsub.s32 0, %v64
  %v66 = vsel %vm60, %v65, %v64
  %vm67 = vcmp.ne.s32.totalorder %v59, 0
  %vm68 = vcmp.ne.s32.totalorder %v66, 0
  %vm69 = vcmp.lt.s32.totalorder %v59, 0
  %vm70 = vcmp.lt.s32.totalorder %v66, 0
  %vm71 = vmand %vm69, %vm67
  %vm72 = vmand %vm70, %vm68
  %v73 = vadd.s32 %v59, 2
  %v74 = vadd.s32 %v66, 2
  %v75 = vsel %vm71, %v73, %v59
  %v76 = vsel %vm72, %v74, %v66
  %v77 = vlaneseq
  %v78 = vand.u32 %v77, 127
  %vm79 = vcmp.lt.s32.totalorder %v78, 0
  %v80 = vsub.s32 0, %v78
  %v81 = vsel %vm79, %v80, %v78
  %v82 = vshrl.u32 %v81, 1
  %v83 = vand.u32 %v81, 1
  %v84 = vsub.s32 0, %v83
  %v85 = vsel %vm79, %v84, %v83
  %vm86 = vcmp.ne.s32.totalorder %v85, 0
  %vm87 = vcmp.lt.s32.totalorder %v85, 0
  %vm88 = vmand %vm87, %vm86
  %v89 = vadd.s32 %v85, 2
  %v90 = vsel %vm88, %v89, %v85
  %vm91 = vcmp.eq.s32.totalorder %v75, %v90
  %vm92 = vcmp.eq.s32.totalorder %v76, %v90
  %v93 = vsel %vm91, 0.0, -1e+30
  %v94 = vsel %vm92, 0.0, -1e+30
  %v95 = vld [vmem:[%s0] sm:$0xff]
  %v96 = vld [vmem:[%s0 + $0x8] sm:$0xff]
  %v97 = vld [vmem:[%s1] sm:$0xff]
  %v98 = vld [vmem:[%s1 + $0x8] sm:$0xff]
  %v99 = vld [vmem:[%s2] sm:$0x1]
  %v101 = vlaneseq
  %v102 = vshrl.u32 %v101, 7
  %v103 = vsub.s32 0, %v102
  %v104 = vrot.slane %v99, %v103
  %vm106 = vcmask 130048
  %v108 = vsel %vm106, %v95, 0
  %v111 = vsel %vm106, %v96, 0
  %113 = vmatprep.subr.mxu0 0.0
  %114 = vmatpush1.msra.mxu0 %v97
  %115 = vmatprep.subr.mxu0 0.0
  %116 = vmatpush1.msra.mxu0 %v98
  %117 = vmatprep.subr.mxu0 0.0
  %118 = vmatpush1.msra.mxu0 0.0
  %119 = vmatprep.subr.mxu0 0.0
  %120 = vmatpush1.msra.mxu0 0.0
  %121 = vmatprep.subr.mxu0 0.0
  %122 = vmatpush1.msra.mxu0 0.0
  %123 = vmatprep.subr.mxu0 0.0
  %124 = vmatpush1.msra.mxu0 0.0
  %125 = vmatprep.subr.mxu0 0.0
  %126 = vmatpush1.msra.mxu0 0.0
  %127 = vmatprep.subr.mxu0 0.0
  %128 = vmatpush1.msra.mxu0 0.0
  %129 = vmatprep.subr.mxu0 0.0
  %130 = vmatpush1.msra.mxu0 0.0
  %131 = vmatprep.subr.mxu0 0.0
  %132 = vmatpush1.msra.mxu0 0.0
  %133 = vmatprep.subr.mxu0 0.0
  %134 = vmatpush1.msra.mxu0 0.0
  %135 = vmatprep.subr.mxu0 0.0
  %136 = vmatpush1.msra.mxu0 0.0
  %137 = vmatprep.subr.mxu0 0.0
  %138 = vmatpush1.msra.mxu0 0.0
  %139 = vmatprep.subr.mxu0 0.0
  %140 = vmatpush1.msra.mxu0 0.0
  %141 = vmatprep.subr.mxu0 0.0
  %142 = vmatpush1.msra.mxu0 0.0
  %143 = vmatprep.subr.mxu0 0.0
  %144 = vmatpush1.msra.mxu0 0.0
  %145 = vmatprep.subr.mxu0 0.0
  %146 = vmatpush1.msra.mxu0 0.0
  %147 = vmatprep.subr.mxu0 0.0
  %148 = vmatpush1.msra.mxu0 0.0
  %149 = vmatprep.subr.mxu0 0.0
  %150 = vmatpush1.msra.mxu0 0.0
  %151 = vmatprep.subr.mxu0 0.0
  %152 = vmatpush1.msra.mxu0 0.0
  %153 = vmatprep.subr.mxu0 0.0
  %154 = vmatpush1.msra.mxu0 0.0
  %155 = vmatprep.subr.mxu0 0.0
  %156 = vmatpush1.msra.mxu0 0.0
  %157 = vmatprep.subr.mxu0 0.0
  %158 = vmatpush1.msra.mxu0 0.0
  %159 = vmatprep.subr.mxu0 0.0
  %160 = vmatpush1.msra.mxu0 0.0
  %161 = vmatprep.subr.mxu0 0.0
  %162 = vmatpush1.msra.mxu0 0.0
  %163 = vmatprep.subr.mxu0 0.0
  %164 = vmatpush1.msra.mxu0 0.0
  %165 = vmatprep.subr.mxu0 0.0
  %166 = vmatpush1.msra.mxu0 0.0
  %167 = vmatprep.subr.mxu0 0.0
  %168 = vmatpush1.msra.mxu0 0.0
  %169 = vmatprep.subr.mxu0 0.0
  %170 = vmatpush1.msra.mxu0 0.0
  %171 = vmatprep.subr.mxu0 0.0
  %172 = vmatpush1.msra.mxu0 0.0
  %173 = vmatprep.subr.mxu0 0.0
  %174 = vmatpush1.msra.mxu0 0.0
  %175 = vmatprep.subr.mxu0 0.0
  %176 = vmatpush1.msra.mxu0 0.0
  %177 = vmatprep.mubr.f32.mxu0 0.0
  %178 = vmatmul.mubr.f32.gmra.mrb[0].mxu0 %v108
  %v179 = vpop.f32.mrb[0].mxu0
  %v180 = vadd.f32 %v104, %v179
  %v181 = vpop.f32.mrb[0].mxu0
  %182 = vmatprep.mubr.f32.mxu0 0.0
  %183 = vmatmul.mubr.f32.gmra.mrb[0].mxu0 %v111
  %v184 = vpop.f32.mrb[0].mxu0
  %v185 = vadd.f32 %v104, %v184
  %v186 = vpop.f32.mrb[0].mxu0
  %187 = vdwg.mxu0
  %190 = vrot.lane.b32.xlu0 %v180, 112
  %v191 = vpop.permute.xlu0 %190
  %192 = vrot.lane.b32.xlu0 %v185, 112
  %v193 = vpop.permute.xlu0 %192
  %vm194 = vcmask 64512
  %v195 = vsel %vm194, %v180, 0
  %v197 = vsel %vm194, %v185, 0
  %v199 = vsel %vm194, %v191, 0
  %v201 = vsel %vm194, %v193, 0
  %203 = vmatprep.subr.mxu0 0.0
  %204 = vmatpush1.xpose.msra.mxu0 %v199
  %205 = vmatprep.subr.mxu0 0.0
  %206 = vmatpush1.xpose.msra.mxu0 %v201
  %207 = vmatprep.subr.mxu0 0.0
  %208 = vmatpush1.xpose.msra.mxu0 0.0
  %209 = vmatprep.subr.mxu0 0.0
  %210 = vmatpush1.xpose.msra.mxu0 0.0
  %211 = vmatprep.subr.mxu0 0.0
  %212 = vmatpush1.xpose.msra.mxu0 0.0
  %213 = vmatprep.subr.mxu0 0.0
  %214 = vmatpush1.xpose.msra.mxu0 0.0
  %215 = vmatprep.subr.mxu0 0.0
  %216 = vmatpush1.xpose.msra.mxu0 0.0
  %217 = vmatprep.subr.mxu0 0.0
  %218 = vmatpush1.xpose.msra.mxu0 0.0
  %219 = vmatprep.subr.mxu0 0.0
  %220 = vmatpush1.xpose.msra.mxu0 0.0
  %221 = vmatprep.subr.mxu0 0.0
  %222 = vmatpush1.xpose.msra.mxu0 0.0
  %223 = vmatprep.subr.mxu0 0.0
  %224 = vmatpush1.xpose.msra.mxu0 0.0
  %225 = vmatprep.subr.mxu0 0.0
  %226 = vmatpush1.xpose.msra.mxu0 0.0
  %227 = vmatprep.subr.mxu0 0.0
  %228 = vmatpush1.xpose.msra.mxu0 0.0
  %229 = vmatprep.subr.mxu0 0.0
  %230 = vmatpush1.xpose.msra.mxu0 0.0
  %231 = vmatprep.subr.mxu0 0.0
  %232 = vmatpush1.xpose.msra.mxu0 0.0
  %233 = vmatprep.subr.mxu0 0.0
  %234 = vmatpush1.xpose.msra.mxu0 0.0
  %235 = vmatprep.subr.mxu0 0.0
  %236 = vmatpush1.xpose.msra.mxu0 0.0
  %237 = vmatprep.subr.mxu0 0.0
  %238 = vmatpush1.xpose.msra.mxu0 0.0
  %239 = vmatprep.subr.mxu0 0.0
  %240 = vmatpush1.xpose.msra.mxu0 0.0
  %241 = vmatprep.subr.mxu0 0.0
  %242 = vmatpush1.xpose.msra.mxu0 0.0
  %243 = vmatprep.subr.mxu0 0.0
  %244 = vmatpush1.xpose.msra.mxu0 0.0
  %245 = vmatprep.subr.mxu0 0.0
  %246 = vmatpush1.xpose.msra.mxu0 0.0
  %247 = vmatprep.subr.mxu0 0.0
  %248 = vmatpush1.xpose.msra.mxu0 0.0
  %249 = vmatprep.subr.mxu0 0.0
  %250 = vmatpush1.xpose.msra.mxu0 0.0
  %251 = vmatprep.subr.mxu0 0.0
  %252 = vmatpush1.xpose.msra.mxu0 0.0
  %253 = vmatprep.subr.mxu0 0.0
  %254 = vmatpush1.xpose.msra.mxu0 0.0
  %255 = vmatprep.subr.mxu0 0.0
  %256 = vmatpush1.xpose.msra.mxu0 0.0
  %257 = vmatprep.subr.mxu0 0.0
  %258 = vmatpush1.xpose.msra.mxu0 0.0
  %259 = vmatprep.subr.mxu0 0.0
  %260 = vmatpush1.xpose.msra.mxu0 0.0
  %261 = vmatprep.subr.mxu0 0.0
  %262 = vmatpush1.xpose.msra.mxu0 0.0
  %263 = vmatprep.subr.mxu0 0.0
  %264 = vmatpush1.xpose.msra.mxu0 0.0
  %265 = vmatprep.subr.mxu0 0.0
  %266 = vmatpush1.xpose.msra.mxu0 0.0
  %267 = vmatprep.mubr.f32.mxu0 0.0
  %268 = vmatmul.mubr.f32.gmra.mrb[0].mxu0 %v195
  %v269 = vpop.f32.mrb[0].mxu0
  %v270 = vadd.f32 0.0, %v269
  %v271 = vpop.f32.mrb[0].mxu0
  %272 = vmatprep.mubr.f32.mxu0 0.0
  %273 = vmatmul.mubr.f32.gmra.mrb[0].mxu0 %v197
  %v274 = vpop.f32.mrb[0].mxu0
  %v275 = vadd.f32 0.0, %v274
  %v276 = vpop.f32.mrb[0].mxu0
  %277 = vdwg.mxu0
  %v278 = vmul.f32 %v270, 0.35355338
  %v279 = vmul.f32 %v275, 0.35355338
  %v280 = vadd.f32 %v278, %v93
  %v281 = vadd.f32 %v279, %v94
  %v282 = vsel %vm106, %v280, -inf
  %283 = vmax.xlane.f32.xlu0 %v282
  %v284 = vpop.xlane.xlu0 %283
  %v285 = vsel %vm106, %v281, -inf
  %286 = vmax.xlane.f32.xlu0 %v285
  %v287 = vpop.xlane.xlu0 %286
  %v288 = vsub.f32 %v280, %v284
  %v289 = vsub.f32 %v281, %v287
  %v290 = vmul.f32 %v288, 1.442695
  %v291 = vpow.pop %v290
  %v292 = vmul.f32 %v289, 1.442695
  %v293 = vpow.pop %v292
  %v294 = vsel %vm106, %v291, 0.0
  %295 = vadd.xlane.f32.xlu0 %v294
  %v296 = vpop.xlane.xlu0 %295
  %v297 = vsel %vm106, %v293, 0.0
  %298 = vadd.xlane.f32.xlu0 %v297
  %v299 = vpop.xlane.xlu0 %298
  %v300 = vrcp.pop %v296
  %v301 = vrcp.pop %v299
  %v302 = vmul.f32 %v291, %v300
  %v303 = vmul.f32 %v293, %v301
  %304 = vrot.lane.b32.xlu0 %v180, 96
  %v305 = vpop.permute.xlu0 %304
  %306 = vrot.lane.b32.xlu0 %v185, 96
  %v307 = vpop.permute.xlu0 %306
  %v311 = vsel %vm106, %v302, 0
  %v314 = vsel %vm106, %v303, 0
  %316 = vmatprep.subr.mxu0 0.0
  %317 = vmatpush1.msra.mxu0 %v305
  %318 = vmatprep.subr.mxu0 0.0
  %319 = vmatpush1.msra.mxu0 %v307
  %320 = vmatprep.subr.mxu0 0.0
  %321 = vmatpush1.msra.mxu0 0.0
  %322 = vmatprep.subr.mxu0 0.0
  %323 = vmatpush1.msra.mxu0 0.0
  %324 = vmatprep.subr.mxu0 0.0
  %325 = vmatpush1.msra.mxu0 0.0
  %326 = vmatprep.subr.mxu0 0.0
  %327 = vmatpush1.msra.mxu0 0.0
  %328 = vmatprep.subr.mxu0 0.0
  %329 = vmatpush1.msra.mxu0 0.0
  %330 = vmatprep.subr.mxu0 0.0
  %331 = vmatpush1.msra.mxu0 0.0
  %332 = vmatprep.subr.mxu0 0.0
  %333 = vmatpush1.msra.mxu0 0.0
  %334 = vmatprep.subr.mxu0 0.0
  %335 = vmatpush1.msra.mxu0 0.0
  %336 = vmatprep.subr.mxu0 0.0
  %337 = vmatpush1.msra.mxu0 0.0
  %338 = vmatprep.subr.mxu0 0.0
  %339 = vmatpush1.msra.mxu0 0.0
  %340 = vmatprep.subr.mxu0 0.0
  %341 = vmatpush1.msra.mxu0 0.0
  %342 = vmatprep.subr.mxu0 0.0
  %343 = vmatpush1.msra.mxu0 0.0
  %344 = vmatprep.subr.mxu0 0.0
  %345 = vmatpush1.msra.mxu0 0.0
  %346 = vmatprep.subr.mxu0 0.0
  %347 = vmatpush1.msra.mxu0 0.0
  %348 = vmatprep.subr.mxu0 0.0
  %349 = vmatpush1.msra.mxu0 0.0
  %350 = vmatprep.subr.mxu0 0.0
  %351 = vmatpush1.msra.mxu0 0.0
  %352 = vmatprep.subr.mxu0 0.0
  %353 = vmatpush1.msra.mxu0 0.0
  %354 = vmatprep.subr.mxu0 0.0
  %355 = vmatpush1.msra.mxu0 0.0
  %356 = vmatprep.subr.mxu0 0.0
  %357 = vmatpush1.msra.mxu0 0.0
  %358 = vmatprep.subr.mxu0 0.0
  %359 = vmatpush1.msra.mxu0 0.0
  %360 = vmatprep.subr.mxu0 0.0
  %361 = vmatpush1.msra.mxu0 0.0
  %362 = vmatprep.subr.mxu0 0.0
  %363 = vmatpush1.msra.mxu0 0.0
  %364 = vmatprep.subr.mxu0 0.0
  %365 = vmatpush1.msra.mxu0 0.0
  %366 = vmatprep.subr.mxu0 0.0
  %367 = vmatpush1.msra.mxu0 0.0
  %368 = vmatprep.subr.mxu0 0.0
  %369 = vmatpush1.msra.mxu0 0.0
  %370 = vmatprep.subr.mxu0 0.0
  %371 = vmatpush1.msra.mxu0 0.0
  %372 = vmatprep.subr.mxu0 0.0
  %373 = vmatpush1.msra.mxu0 0.0
  %374 = vmatprep.subr.mxu0 0.0
  %375 = vmatpush1.msra.mxu0 0.0
  %376 = vmatprep.subr.mxu0 0.0
  %377 = vmatpush1.msra.mxu0 0.0
  %378 = vmatprep.subr.mxu0 0.0
  %379 = vmatpush1.msra.mxu0 0.0
  %380 = vmatprep.mubr.f32.mxu0 0.0
  %381 = vmatmul.mubr.f32.gmra.mrb[0].mxu0 %v311
  %v382 = vpop.f32.mrb[0].mxu0
  %v383 = vadd.f32 0.0, %v382
  %v384 = vpop.f32.mrb[0].mxu0
  %385 = vmatprep.mubr.f32.mxu0 0.0
  %386 = vmatmul.mubr.f32.gmra.mrb[0].mxu0 %v314
  %v387 = vpop.f32.mrb[0].mxu0
  %v388 = vadd.f32 0.0, %v387
  %v389 = vpop.f32.mrb[0].mxu0
  %390 = vdwg.mxu0
  %391 = vrot.lane.b32.xlu0 %v180, 120
  %v392 = vpop.permute.xlu0 %391
  %393 = vrot.lane.b32.xlu0 %v185, 120
  %v394 = vpop.permute.xlu0 %393
  %395 = vrot.lane.b32.xlu0 %v180, 104
  %v396 = vpop.permute.xlu0 %395
  %397 = vrot.lane.b32.xlu0 %v185, 104
  %v398 = vpop.permute.xlu0 %397
  %v399 = vsel %vm194, %v392, 0
  %v401 = vsel %vm194, %v394, 0
  %v403 = vsel %vm194, %v396, 0
  %v405 = vsel %vm194, %v398, 0
  %407 = vmatprep.subr.mxu0 0.0
  %408 = vmatpush1.xpose.msra.mxu0 %v403
  %409 = vmatprep.subr.mxu0 0.0
  %410 = vmatpush1.xpose.msra.mxu0 %v405
  %411 = vmatprep.subr.mxu0 0.0
  %412 = vmatpush1.xpose.msra.mxu0 0.0
  %413 = vmatprep.subr.mxu0 0.0
  %414 = vmatpush1.xpose.msra.mxu0 0.0
  %415 = vmatprep.subr.mxu0 0.0
  %416 = vmatpush1.xpose.msra.mxu0 0.0
  %417 = vmatprep.subr.mxu0 0.0
  %418 = vmatpush1.xpose.msra.mxu0 0.0
  %419 = vmatprep.subr.mxu0 0.0
  %420 = vmatpush1.xpose.msra.mxu0 0.0
  %421 = vmatprep.subr.mxu0 0.0
  %422 = vmatpush1.xpose.msra.mxu0 0.0
  %423 = vmatprep.subr.mxu0 0.0
  %424 = vmatpush1.xpose.msra.mxu0 0.0
  %425 = vmatprep.subr.mxu0 0.0
  %426 = vmatpush1.xpose.msra.mxu0 0.0
  %427 = vmatprep.subr.mxu0 0.0
  %428 = vmatpush1.xpose.msra.mxu0 0.0
  %429 = vmatprep.subr.mxu0 0.0
  %430 = vmatpush1.xpose.msra.mxu0 0.0
  %431 = vmatprep.subr.mxu0 0.0
  %432 = vmatpush1.xpose.msra.mxu0 0.0
  %433 = vmatprep.subr.mxu0 0.0
  %434 = vmatpush1.xpose.msra.mxu0 0.0
  %435 = vmatprep.subr.mxu0 0.0
  %436 = vmatpush1.xpose.msra.mxu0 0.0
  %437 = vmatprep.subr.mxu0 0.0
  %438 = vmatpush1.xpose.msra.mxu0 0.0
  %439 = vmatprep.subr.mxu0 0.0
  %440 = vmatpush1.xpose.msra.mxu0 0.0
  %441 = vmatprep.subr.mxu0 0.0
  %442 = vmatpush1.xpose.msra.mxu0 0.0
  %443 = vmatprep.subr.mxu0 0.0
  %444 = vmatpush1.xpose.msra.mxu0 0.0
  %445 = vmatprep.subr.mxu0 0.0
  %446 = vmatpush1.xpose.msra.mxu0 0.0
  %447 = vmatprep.subr.mxu0 0.0
  %448 = vmatpush1.xpose.msra.mxu0 0.0
  %449 = vmatprep.subr.mxu0 0.0
  %450 = vmatpush1.xpose.msra.mxu0 0.0
  %451 = vmatprep.subr.mxu0 0.0
  %452 = vmatpush1.xpose.msra.mxu0 0.0
  %453 = vmatprep.subr.mxu0 0.0
  %454 = vmatpush1.xpose.msra.mxu0 0.0
  %455 = vmatprep.subr.mxu0 0.0
  %456 = vmatpush1.xpose.msra.mxu0 0.0
  %457 = vmatprep.subr.mxu0 0.0
  %458 = vmatpush1.xpose.msra.mxu0 0.0
  %459 = vmatprep.subr.mxu0 0.0
  %460 = vmatpush1.xpose.msra.mxu0 0.0
  %461 = vmatprep.subr.mxu0 0.0
  %462 = vmatpush1.xpose.msra.mxu0 0.0
  %463 = vmatprep.subr.mxu0 0.0
  %464 = vmatpush1.xpose.msra.mxu0 0.0
  %465 = vmatprep.subr.mxu0 0.0
  %466 = vmatpush1.xpose.msra.mxu0 0.0
  %467 = vmatprep.subr.mxu0 0.0
  %468 = vmatpush1.xpose.msra.mxu0 0.0
  %469 = vmatprep.subr.mxu0 0.0
  %470 = vmatpush1.xpose.msra.mxu0 0.0
  %471 = vmatprep.mubr.f32.mxu0 0.0
  %472 = vmatmul.mubr.f32.gmra.mrb[0].mxu0 %v399
  %v473 = vpop.f32.mrb[0].mxu0
  %v474 = vadd.f32 0.0, %v473
  %v475 = vpop.f32.mrb[0].mxu0
  %476 = vmatprep.mubr.f32.mxu0 0.0
  %477 = vmatmul.mubr.f32.gmra.mrb[0].mxu0 %v401
  %v478 = vpop.f32.mrb[0].mxu0
  %v479 = vadd.f32 0.0, %v478
  %v480 = vpop.f32.mrb[0].mxu0
  %481 = vdwg.mxu0
  %v482 = vmul.f32 %v474, 0.35355338
  %v483 = vmul.f32 %v479, 0.35355338
  %v484 = vadd.f32 %v482, %v93
  %v485 = vadd.f32 %v483, %v94
  %v486 = vsel %vm106, %v484, -inf
  %487 = vmax.xlane.f32.xlu0 %v486
  %v488 = vpop.xlane.xlu0 %487
  %v489 = vsel %vm106, %v485, -inf
  %490 = vmax.xlane.f32.xlu0 %v489
  %v491 = vpop.xlane.xlu0 %490
  %v492 = vsub.f32 %v484, %v488
  %v493 = vsub.f32 %v485, %v491
  %v494 = vmul.f32 %v492, 1.442695
  %v495 = vpow.pop %v494
  %v496 = vmul.f32 %v493, 1.442695
  %v497 = vpow.pop %v496
  %v498 = vsel %vm106, %v495, 0.0
  %499 = vadd.xlane.f32.xlu0 %v498
  %v500 = vpop.xlane.xlu0 %499
  %v501 = vsel %vm106, %v497, 0.0
  %502 = vadd.xlane.f32.xlu0 %v501
  %v503 = vpop.xlane.xlu0 %502
  %v504 = vrcp.pop %v500
  %v505 = vrcp.pop %v503
  %v506 = vmul.f32 %v495, %v504
  %v507 = vmul.f32 %v497, %v505
  %508 = vrot.lane.b32.xlu0 %v180, 88
  %v509 = vpop.permute.xlu0 %508
  %510 = vrot.lane.b32.xlu0 %v185, 88
  %v511 = vpop.permute.xlu0 %510
  %v515 = vsel %vm106, %v506, 0
  %v518 = vsel %vm106, %v507, 0
  %520 = vmatprep.subr.mxu0 0.0
  %521 = vmatpush1.msra.mxu0 %v509
  %522 = vmatprep.subr.mxu0 0.0
  %523 = vmatpush1.msra.mxu0 %v511
  %524 = vmatprep.subr.mxu0 0.0
  %525 = vmatpush1.msra.mxu0 0.0
  %526 = vmatprep.subr.mxu0 0.0
  %527 = vmatpush1.msra.mxu0 0.0
  %528 = vmatprep.subr.mxu0 0.0
  %529 = vmatpush1.msra.mxu0 0.0
  %530 = vmatprep.subr.mxu0 0.0
  %531 = vmatpush1.msra.mxu0 0.0
  %532 = vmatprep.subr.mxu0 0.0
  %533 = vmatpush1.msra.mxu0 0.0
  %534 = vmatprep.subr.mxu0 0.0
  %535 = vmatpush1.msra.mxu0 0.0
  %536 = vmatprep.subr.mxu0 0.0
  %537 = vmatpush1.msra.mxu0 0.0
  %538 = vmatprep.subr.mxu0 0.0
  %539 = vmatpush1.msra.mxu0 0.0
  %540 = vmatprep.subr.mxu0 0.0
  %541 = vmatpush1.msra.mxu0 0.0
  %542 = vmatprep.subr.mxu0 0.0
  %543 = vmatpush1.msra.mxu0 0.0
  %544 = vmatprep.subr.mxu0 0.0
  %545 = vmatpush1.msra.mxu0 0.0
  %546 = vmatprep.subr.mxu0 0.0
  %547 = vmatpush1.msra.mxu0 0.0
  %548 = vmatprep.subr.mxu0 0.0
  %549 = vmatpush1.msra.mxu0 0.0
  %550 = vmatprep.subr.mxu0 0.0
  %551 = vmatpush1.msra.mxu0 0.0
  %552 = vmatprep.subr.mxu0 0.0
  %553 = vmatpush1.msra.mxu0 0.0
  %554 = vmatprep.subr.mxu0 0.0
  %555 = vmatpush1.msra.mxu0 0.0
  %556 = vmatprep.subr.mxu0 0.0
  %557 = vmatpush1.msra.mxu0 0.0
  %558 = vmatprep.subr.mxu0 0.0
  %559 = vmatpush1.msra.mxu0 0.0
  %560 = vmatprep.subr.mxu0 0.0
  %561 = vmatpush1.msra.mxu0 0.0
  %562 = vmatprep.subr.mxu0 0.0
  %563 = vmatpush1.msra.mxu0 0.0
  %564 = vmatprep.subr.mxu0 0.0
  %565 = vmatpush1.msra.mxu0 0.0
  %566 = vmatprep.subr.mxu0 0.0
  %567 = vmatpush1.msra.mxu0 0.0
  %568 = vmatprep.subr.mxu0 0.0
  %569 = vmatpush1.msra.mxu0 0.0
  %570 = vmatprep.subr.mxu0 0.0
  %571 = vmatpush1.msra.mxu0 0.0
  %572 = vmatprep.subr.mxu0 0.0
  %573 = vmatpush1.msra.mxu0 0.0
  %574 = vmatprep.subr.mxu0 0.0
  %575 = vmatpush1.msra.mxu0 0.0
  %576 = vmatprep.subr.mxu0 0.0
  %577 = vmatpush1.msra.mxu0 0.0
  %578 = vmatprep.subr.mxu0 0.0
  %579 = vmatpush1.msra.mxu0 0.0
  %580 = vmatprep.subr.mxu0 0.0
  %581 = vmatpush1.msra.mxu0 0.0
  %582 = vmatprep.subr.mxu0 0.0
  %583 = vmatpush1.msra.mxu0 0.0
  %584 = vmatprep.mubr.f32.mxu0 0.0
  %585 = vmatmul.mubr.f32.gmra.mrb[0].mxu0 %v515
  %v586 = vpop.f32.mrb[0].mxu0
  %v587 = vadd.f32 0.0, %v586
  %v588 = vpop.f32.mrb[0].mxu0
  %589 = vmatprep.mubr.f32.mxu0 0.0
  %590 = vmatmul.mubr.f32.gmra.mrb[0].mxu0 %v518
  %v591 = vpop.f32.mrb[0].mxu0
  %v592 = vadd.f32 0.0, %v591
  %v593 = vpop.f32.mrb[0].mxu0
  %594 = vdwg.mxu0
  %597 = vrot.lane.b32.xlu0 %v587, 8
  %v598 = vpop.permute.xlu0 %597
  %599 = vrot.lane.b32.xlu0 %v592, 8
  %v600 = vpop.permute.xlu0 %599
  %v603 = vsel %vm194, %v383, %v598
  %v604 = vsel %vm194, %v388, %v600
  %v605 = vld [vmem:[%s3] sm:$0xff]
  %v606 = vld [vmem:[%s3 + $0x8] sm:$0xff]
  %v607 = vld [vmem:[%s4] sm:$0x1]
  %v609 = vlaneseq
  %v610 = vshrl.u32 %v609, 7
  %v611 = vsub.s32 0, %v610
  %v612 = vrot.slane %v607, %v611
  %v615 = vsel %vm106, %v603, 0
  %v618 = vsel %vm106, %v604, 0
  %620 = vmatprep.subr.mxu0 0.0
  %621 = vmatpush1.msra.mxu0 %v605
  %622 = vmatprep.subr.mxu0 0.0
  %623 = vmatpush1.msra.mxu0 %v606
  %624 = vmatprep.subr.mxu0 0.0
  %625 = vmatpush1.msra.mxu0 0.0
  %626 = vmatprep.subr.mxu0 0.0
  %627 = vmatpush1.msra.mxu0 0.0
  %628 = vmatprep.subr.mxu0 0.0
  %629 = vmatpush1.msra.mxu0 0.0
  %630 = vmatprep.subr.mxu0 0.0
  %631 = vmatpush1.msra.mxu0 0.0
  %632 = vmatprep.subr.mxu0 0.0
  %633 = vmatpush1.msra.mxu0 0.0
  %634 = vmatprep.subr.mxu0 0.0
  %635 = vmatpush1.msra.mxu0 0.0
  %636 = vmatprep.subr.mxu0 0.0
  %637 = vmatpush1.msra.mxu0 0.0
  %638 = vmatprep.subr.mxu0 0.0
  %639 = vmatpush1.msra.mxu0 0.0
  %640 = vmatprep.subr.mxu0 0.0
  %641 = vmatpush1.msra.mxu0 0.0
  %642 = vmatprep.subr.mxu0 0.0
  %643 = vmatpush1.msra.mxu0 0.0
  %644 = vmatprep.subr.mxu0 0.0
  %645 = vmatpush1.msra.mxu0 0.0
  %646 = vmatprep.subr.mxu0 0.0
  %647 = vmatpush1.msra.mxu0 0.0
  %648 = vmatprep.subr.mxu0 0.0
  %649 = vmatpush1.msra.mxu0 0.0
  %650 = vmatprep.subr.mxu0 0.0
  %651 = vmatpush1.msra.mxu0 0.0
  %652 = vmatprep.subr.mxu0 0.0
  %653 = vmatpush1.msra.mxu0 0.0
  %654 = vmatprep.subr.mxu0 0.0
  %655 = vmatpush1.msra.mxu0 0.0
  %656 = vmatprep.subr.mxu0 0.0
  %657 = vmatpush1.msra.mxu0 0.0
  %658 = vmatprep.subr.mxu0 0.0
  %659 = vmatpush1.msra.mxu0 0.0
  %660 = vmatprep.subr.mxu0 0.0
  %661 = vmatpush1.msra.mxu0 0.0
  %662 = vmatprep.subr.mxu0 0.0
  %663 = vmatpush1.msra.mxu0 0.0
  %664 = vmatprep.subr.mxu0 0.0
  %665 = vmatpush1.msra.mxu0 0.0
  %666 = vmatprep.subr.mxu0 0.0
  %667 = vmatpush1.msra.mxu0 0.0
  %668 = vmatprep.subr.mxu0 0.0
  %669 = vmatpush1.msra.mxu0 0.0
  %670 = vmatprep.subr.mxu0 0.0
  %671 = vmatpush1.msra.mxu0 0.0
  %672 = vmatprep.subr.mxu0 0.0
  %673 = vmatpush1.msra.mxu0 0.0
  %674 = vmatprep.subr.mxu0 0.0
  %675 = vmatpush1.msra.mxu0 0.0
  %676 = vmatprep.subr.mxu0 0.0
  %677 = vmatpush1.msra.mxu0 0.0
  %678 = vmatprep.subr.mxu0 0.0
  %679 = vmatpush1.msra.mxu0 0.0
  %680 = vmatprep.subr.mxu0 0.0
  %681 = vmatpush1.msra.mxu0 0.0
  %682 = vmatprep.subr.mxu0 0.0
  %683 = vmatpush1.msra.mxu0 0.0
  %684 = vmatprep.mubr.f32.mxu0 0.0
  %685 = vmatmul.mubr.f32.gmra.mrb[0].mxu0 %v615
  %v686 = vpop.f32.mrb[0].mxu0
  %v687 = vadd.f32 %v612, %v686
  %v688 = vpop.f32.mrb[0].mxu0
  %689 = vmatprep.mubr.f32.mxu0 0.0
  %690 = vmatmul.mubr.f32.gmra.mrb[0].mxu0 %v618
  %v691 = vpop.f32.mrb[0].mxu0
  %v692 = vadd.f32 %v612, %v691
  %v693 = vpop.f32.mrb[0].mxu0
  %694 = vdwg.mxu0
  %v695 = vadd.f32 %v95, %v687
  %v696 = vadd.f32 %v96, %v692
  %v697 = vld [vmem:[%s5] sm:$0x1]
  %v698 = vld [vmem:[%s6] sm:$0x1]
  %v699 = vsel %vm106, %v695, 0.0
  %700 = vadd.xlane.f32.xlu0 %v699
  %v701 = vpop.xlane.xlu0 %700
  %v702 = vsel %vm106, %v696, 0.0
  %703 = vadd.xlane.f32.xlu0 %v702
  %v704 = vpop.xlane.xlu0 %703
  %v705 = vrcp.pop 16.0
  %v706 = vmul.f32 %v701, %v705
  %v707 = vmul.f32 %v704, %v705
  %v708 = vsub.f32 %v695, %v706
  %v709 = vsub.f32 %v696, %v707
  %v710 = vmul.f32 %v708, %v708
  %v711 = vmul.f32 %v709, %v709
  %v712 = vsel %vm106, %v710, 0.0
  %713 = vadd.xlane.f32.xlu0 %v712
  %v714 = vpop.xlane.xlu0 %713
  %v715 = vsel %vm106, %v711, 0.0
  %716 = vadd.xlane.f32.xlu0 %v715
  %v717 = vpop.xlane.xlu0 %716
  %v718 = vmul.f32 %v714, %v705
  %v719 = vmul.f32 %v717, %v705
  %v720 = vadd.f32 %v718, 1e-05
  %v721 = vadd.f32 %v719, 1e-05
  %v722 = vrsqrt.pop %v720
  %v723 = vrsqrt.pop %v721
  %v724 = vmul.f32 %v708, %v722
  %v725 = vmul.f32 %v709, %v723
  %v727 = vlaneseq
  %v728 = vshrl.u32 %v727, 7
  %v729 = vsub.s32 0, %v728
  %v730 = vrot.slane %v697, %v729
  %v732 = vmul.f32 %v724, %v730
  %v733 = vmul.f32 %v725, %v730
  %v735 = vlaneseq
  %v736 = vshrl.u32 %v735, 7
  %v737 = vsub.s32 0, %v736
  %v738 = vrot.slane %v698, %v737
  %v740 = vadd.f32 %v732, %v738
  %v741 = vadd.f32 %v733, %v738
  %v742 = vld [vmem:[%s7] sm:$0xff]
  %v743 = vld [vmem:[%s7 + $0x8] sm:$0xff]
  %v744 = vld [vmem:[%s7 + $0x10] sm:$0xff]
  %v745 = vld [vmem:[%s7 + $0x18] sm:$0xff]
  %v746 = vld [vmem:[%s7 + $0x20] sm:$0xff]
  %v747 = vld [vmem:[%s7 + $0x28] sm:$0xff]
  %v748 = vld [vmem:[%s7 + $0x30] sm:$0xff]
  %v749 = vld [vmem:[%s7 + $0x38] sm:$0xff]
  %v750 = vld [vmem:[%s7 + $0x40] sm:$0xff]
  %v751 = vld [vmem:[%s7 + $0x48] sm:$0xff]
  %v752 = vld [vmem:[%s7 + $0x50] sm:$0xff]
  %v753 = vld [vmem:[%s7 + $0x58] sm:$0xff]
  %v754 = vld [vmem:[%s7 + $0x60] sm:$0xff]
  %v755 = vld [vmem:[%s7 + $0x68] sm:$0xff]
  %v756 = vld [vmem:[%s7 + $0x70] sm:$0xff]
  %v757 = vld [vmem:[%s7 + $0x78] sm:$0xff]
  %v758 = vunpack.c.l.bf16 %v742
  %v759 = vunpack.c.h.bf16 %v742
  %v760 = vunpack.c.l.bf16 %v743
  %v761 = vunpack.c.h.bf16 %v743
  %v762 = vunpack.c.l.bf16 %v744
  %v763 = vunpack.c.h.bf16 %v744
  %v764 = vunpack.c.l.bf16 %v745
  %v765 = vunpack.c.h.bf16 %v745
  %v766 = vunpack.c.l.bf16 %v746
  %v767 = vunpack.c.h.bf16 %v746
  %v768 = vunpack.c.l.bf16 %v747
  %v769 = vunpack.c.h.bf16 %v747
  %v770 = vunpack.c.l.bf16 %v748
  %v771 = vunpack.c.h.bf16 %v748
  %v772 = vunpack.c.l.bf16 %v749
  %v773 = vunpack.c.h.bf16 %v749
  %v774 = vunpack.c.l.bf16 %v750
  %v775 = vunpack.c.h.bf16 %v750
  %v776 = vunpack.c.l.bf16 %v751
  %v777 = vunpack.c.h.bf16 %v751
  %v778 = vunpack.c.l.bf16 %v752
  %v779 = vunpack.c.h.bf16 %v752
  %v780 = vunpack.c.l.bf16 %v753
  %v781 = vunpack.c.h.bf16 %v753
  %v782 = vunpack.c.l.bf16 %v754
  %v783 = vunpack.c.h.bf16 %v754
  %v784 = vunpack.c.l.bf16 %v755
  %v785 = vunpack.c.h.bf16 %v755
  %v786 = vunpack.c.l.bf16 %v756
  %v787 = vunpack.c.h.bf16 %v756
  %v788 = vunpack.c.l.bf16 %v757
  %v789 = vunpack.c.h.bf16 %v757
  %v790 = vld [vmem:[%s8] sm:$0xff]
  %v791 = vld [vmem:[%s8 + $0x8] sm:$0xff]
  %v794 = vlaneseq
  %v795 = vshrl.u32 %v794, 7
  %v796 = vsub.s32 0, %v795
  %v797 = vrot.slane %v790, %v796
  %v798 = vlaneseq
  %v799 = vshrl.u32 %v798, 7
  %v800 = vsub.s32 1, %v799
  %v801 = vrot.slane %v790, %v800
  %v802 = vlaneseq
  %v803 = vshrl.u32 %v802, 7
  %v804 = vsub.s32 2, %v803
  %v805 = vrot.slane %v790, %v804
  %v806 = vlaneseq
  %v807 = vshrl.u32 %v806, 7
  %v808 = vsub.s32 3, %v807
  %v809 = vrot.slane %v790, %v808
  %v810 = vlaneseq
  %v811 = vshrl.u32 %v810, 7
  %v812 = vsub.s32 4, %v811
  %v813 = vrot.slane %v790, %v812
  %v814 = vlaneseq
  %v815 = vshrl.u32 %v814, 7
  %v816 = vsub.s32 5, %v815
  %v817 = vrot.slane %v790, %v816
  %v818 = vlaneseq
  %v819 = vshrl.u32 %v818, 7
  %v820 = vsub.s32 6, %v819
  %v821 = vrot.slane %v790, %v820
  %v822 = vlaneseq
  %v823 = vshrl.u32 %v822, 7
  %v824 = vsub.s32 7, %v823
  %v825 = vrot.slane %v790, %v824
  %v826 = vlaneseq
  %v827 = vshrl.u32 %v826, 7
  %v828 = vsub.s32 0, %v827
  %v829 = vrot.slane %v791, %v828
  %v830 = vlaneseq
  %v831 = vshrl.u32 %v830, 7
  %v832 = vsub.s32 1, %v831
  %v833 = vrot.slane %v791, %v832
  %v834 = vlaneseq
  %v835 = vshrl.u32 %v834, 7
  %v836 = vsub.s32 2, %v835
  %v837 = vrot.slane %v791, %v836
  %v838 = vlaneseq
  %v839 = vshrl.u32 %v838, 7
  %v840 = vsub.s32 3, %v839
  %v841 = vrot.slane %v791, %v840
  %v842 = vlaneseq
  %v843 = vshrl.u32 %v842, 7
  %v844 = vsub.s32 4, %v843
  %v845 = vrot.slane %v791, %v844
  %v846 = vlaneseq
  %v847 = vshrl.u32 %v846, 7
  %v848 = vsub.s32 5, %v847
  %v849 = vrot.slane %v791, %v848
  %v850 = vlaneseq
  %v851 = vshrl.u32 %v850, 7
  %v852 = vsub.s32 6, %v851
  %v853 = vrot.slane %v791, %v852
  %v854 = vlaneseq
  %v855 = vshrl.u32 %v854, 7
  %v856 = vsub.s32 7, %v855
  %v857 = vrot.slane %v791, %v856
  %v875 = vsel %vm106, %v740, 0
  %v878 = vsel %vm106, %v741, 0
  %880 = vmatprep.subr.mxu0 %v759
  %881 = vmatpush1.msra.mxu0 %v758
  %882 = vmatprep.subr.mxu0 %v775
  %883 = vmatpush1.msra.mxu0 %v774
  %884 = vmatprep.subr.mxu0 0.0
  %885 = vmatpush1.msra.mxu0 0.0
  %886 = vmatprep.subr.mxu0 0.0
  %887 = vmatpush1.msra.mxu0 0.0
  %888 = vmatprep.subr.mxu0 0.0
  %889 = vmatpush1.msra.mxu0 0.0
  %890 = vmatprep.subr.mxu0 0.0
  %891 = vmatpush1.msra.mxu0 0.0
  %892 = vmatprep.subr.mxu0 0.0
  %893 = vmatpush1.msra.mxu0 0.0
  %894 = vmatprep.subr.mxu0 0.0
  %895 = vmatpush1.msra.mxu0 0.0
  %896 = vmatprep.subr.mxu0 0.0
  %897 = vmatpush1.msra.mxu0 0.0
  %898 = vmatprep.subr.mxu0 0.0
  %899 = vmatpush1.msra.mxu0 0.0
  %900 = vmatprep.subr.mxu0 0.0
  %901 = vmatpush1.msra.mxu0 0.0
  %902 = vmatprep.subr.mxu0 0.0
  %903 = vmatpush1.msra.mxu0 0.0
  %904 = vmatprep.subr.mxu0 0.0
  %905 = vmatpush1.msra.mxu0 0.0
  %906 = vmatprep.subr.mxu0 0.0
  %907 = vmatpush1.msra.mxu0 0.0
  %908 = vmatprep.subr.mxu0 0.0
  %909 = vmatpush1.msra.mxu0 0.0
  %910 = vmatprep.subr.mxu0 0.0
  %911 = vmatpush1.msra.mxu0 0.0
  %912 = vmatprep.subr.mxu0 0.0
  %913 = vmatpush1.msra.mxu0 0.0
  %914 = vmatprep.subr.mxu0 0.0
  %915 = vmatpush1.msra.mxu0 0.0
  %916 = vmatprep.subr.mxu0 0.0
  %917 = vmatpush1.msra.mxu0 0.0
  %918 = vmatprep.subr.mxu0 0.0
  %919 = vmatpush1.msra.mxu0 0.0
  %920 = vmatprep.subr.mxu0 0.0
  %921 = vmatpush1.msra.mxu0 0.0
  %922 = vmatprep.subr.mxu0 0.0
  %923 = vmatpush1.msra.mxu0 0.0
  %924 = vmatprep.subr.mxu0 0.0
  %925 = vmatpush1.msra.mxu0 0.0
  %926 = vmatprep.subr.mxu0 0.0
  %927 = vmatpush1.msra.mxu0 0.0
  %928 = vmatprep.subr.mxu0 0.0
  %929 = vmatpush1.msra.mxu0 0.0
  %930 = vmatprep.subr.mxu0 0.0
  %931 = vmatpush1.msra.mxu0 0.0
  %932 = vmatprep.subr.mxu0 0.0
  %933 = vmatpush1.msra.mxu0 0.0
  %934 = vmatprep.subr.mxu0 0.0
  %935 = vmatpush1.msra.mxu0 0.0
  %936 = vmatprep.subr.mxu0 0.0
  %937 = vmatpush1.msra.mxu0 0.0
  %938 = vmatprep.subr.mxu0 0.0
  %939 = vmatpush1.msra.mxu0 0.0
  %940 = vmatprep.subr.mxu0 0.0
  %941 = vmatpush1.msra.mxu0 0.0
  %942 = vmatprep.subr.mxu0 0.0
  %943 = vmatpush1.msra.mxu0 0.0
  %944 = vmatprep.mubr.f32.mxu0 0.0
  %945 = vmatmul.mubr.f32.gmra.mrb[0].mxu0 %v875
  %v946 = vpop.f32.mrb[0].mxu0
  %v947 = vadd.f32 %v797, %v946
  %v948 = vpop.f32.mrb[0].mxu0
  %v949 = vadd.f32 %v801, %v948
  %950 = vmatprep.mubr.f32.mxu0 0.0
  %951 = vmatmul.mubr.f32.gmra.mrb[0].mxu0 %v878
  %v952 = vpop.f32.mrb[0].mxu0
  %v953 = vadd.f32 %v797, %v952
  %v954 = vpop.f32.mrb[0].mxu0
  %v955 = vadd.f32 %v801, %v954
  %956 = vdwg.mxu0
  %957 = vmatprep.subr.mxu0 %v761
  %958 = vmatpush1.msra.mxu0 %v760
  %959 = vmatprep.subr.mxu0 %v777
  %960 = vmatpush1.msra.mxu0 %v776
  %961 = vmatprep.subr.mxu0 0.0
  %962 = vmatpush1.msra.mxu0 0.0
  %963 = vmatprep.subr.mxu0 0.0
  %964 = vmatpush1.msra.mxu0 0.0
  %965 = vmatprep.subr.mxu0 0.0
  %966 = vmatpush1.msra.mxu0 0.0
  %967 = vmatprep.subr.mxu0 0.0
  %968 = vmatpush1.msra.mxu0 0.0
  %969 = vmatprep.subr.mxu0 0.0
  %970 = vmatpush1.msra.mxu0 0.0
  %971 = vmatprep.subr.mxu0 0.0
  %972 = vmatpush1.msra.mxu0 0.0
  %973 = vmatprep.subr.mxu0 0.0
  %974 = vmatpush1.msra.mxu0 0.0
  %975 = vmatprep.subr.mxu0 0.0
  %976 = vmatpush1.msra.mxu0 0.0
  %977 = vmatprep.subr.mxu0 0.0
  %978 = vmatpush1.msra.mxu0 0.0
  %979 = vmatprep.subr.mxu0 0.0
  %980 = vmatpush1.msra.mxu0 0.0
  %981 = vmatprep.subr.mxu0 0.0
  %982 = vmatpush1.msra.mxu0 0.0
  %983 = vmatprep.subr.mxu0 0.0
  %984 = vmatpush1.msra.mxu0 0.0
  %985 = vmatprep.subr.mxu0 0.0
  %986 = vmatpush1.msra.mxu0 0.0
  %987 = vmatprep.subr.mxu0 0.0
  %988 = vmatpush1.msra.mxu0 0.0
  %989 = vmatprep.subr.mxu0 0.0
  %990 = vmatpush1.msra.mxu0 0.0
  %991 = vmatprep.subr.mxu0 0.0
  %992 = vmatpush1.msra.mxu0 0.0
  %993 = vmatprep.subr.mxu0 0.0
  %994 = vmatpush1.msra.mxu0 0.0
  %995 = vmatprep.subr.mxu0 0.0
  %996 = vmatpush1.msra.mxu0 0.0
  %997 = vmatprep.subr.mxu0 0.0
  %998 = vmatpush1.msra.mxu0 0.0
  %999 = vmatprep.subr.mxu0 0.0
  %1000 = vmatpush1.msra.mxu0 0.0
  %1001 = vmatprep.subr.mxu0 0.0
  %1002 = vmatpush1.msra.mxu0 0.0
  %1003 = vmatprep.subr.mxu0 0.0
  %1004 = vmatpush1.msra.mxu0 0.0
  %1005 = vmatprep.subr.mxu0 0.0
  %1006 = vmatpush1.msra.mxu0 0.0
  %1007 = vmatprep.subr.mxu0 0.0
  %1008 = vmatpush1.msra.mxu0 0.0
  %1009 = vmatprep.subr.mxu0 0.0
  %1010 = vmatpush1.msra.mxu0 0.0
  %1011 = vmatprep.subr.mxu0 0.0
  %1012 = vmatpush1.msra.mxu0 0.0
  %1013 = vmatprep.subr.mxu0 0.0
  %1014 = vmatpush1.msra.mxu0 0.0
  %1015 = vmatprep.subr.mxu0 0.0
  %1016 = vmatpush1.msra.mxu0 0.0
  %1017 = vmatprep.subr.mxu0 0.0
  %1018 = vmatpush1.msra.mxu0 0.0
  %1019 = vmatprep.subr.mxu0 0.0
  %1020 = vmatpush1.msra.mxu0 0.0
  %1021 = vmatprep.mubr.f32.mxu0 0.0
  %1022 = vmatmul.mubr.f32.gmra.mrb[0].mxu0 %v875
  %v1023 = vpop.f32.mrb[0].mxu0
  %v1024 = vadd.f32 %v805, %v1023
  %v1025 = vpop.f32.mrb[0].mxu0
  %v1026 = vadd.f32 %v809, %v1025
  %1027 = vmatprep.mubr.f32.mxu0 0.0
  %1028 = vmatmul.mubr.f32.gmra.mrb[0].mxu0 %v878
  %v1029 = vpop.f32.mrb[0].mxu0
  %v1030 = vadd.f32 %v805, %v1029
  %v1031 = vpop.f32.mrb[0].mxu0
  %v1032 = vadd.f32 %v809, %v1031
  %1033 = vdwg.mxu0
  %1034 = vmatprep.subr.mxu0 %v763
  %1035 = vmatpush1.msra.mxu0 %v762
  %1036 = vmatprep.subr.mxu0 %v779
  %1037 = vmatpush1.msra.mxu0 %v778
  %1038 = vmatprep.subr.mxu0 0.0
  %1039 = vmatpush1.msra.mxu0 0.0
  %1040 = vmatprep.subr.mxu0 0.0
  %1041 = vmatpush1.msra.mxu0 0.0
  %1042 = vmatprep.subr.mxu0 0.0
  %1043 = vmatpush1.msra.mxu0 0.0
  %1044 = vmatprep.subr.mxu0 0.0
  %1045 = vmatpush1.msra.mxu0 0.0
  %1046 = vmatprep.subr.mxu0 0.0
  %1047 = vmatpush1.msra.mxu0 0.0
  %1048 = vmatprep.subr.mxu0 0.0
  %1049 = vmatpush1.msra.mxu0 0.0
  %1050 = vmatprep.subr.mxu0 0.0
  %1051 = vmatpush1.msra.mxu0 0.0
  %1052 = vmatprep.subr.mxu0 0.0
  %1053 = vmatpush1.msra.mxu0 0.0
  %1054 = vmatprep.subr.mxu0 0.0
  %1055 = vmatpush1.msra.mxu0 0.0
  %1056 = vmatprep.subr.mxu0 0.0
  %1057 = vmatpush1.msra.mxu0 0.0
  %1058 = vmatprep.subr.mxu0 0.0
  %1059 = vmatpush1.msra.mxu0 0.0
  %1060 = vmatprep.subr.mxu0 0.0
  %1061 = vmatpush1.msra.mxu0 0.0
  %1062 = vmatprep.subr.mxu0 0.0
  %1063 = vmatpush1.msra.mxu0 0.0
  %1064 = vmatprep.subr.mxu0 0.0
  %1065 = vmatpush1.msra.mxu0 0.0
  %1066 = vmatprep.subr.mxu0 0.0
  %1067 = vmatpush1.msra.mxu0 0.0
  %1068 = vmatprep.subr.mxu0 0.0
  %1069 = vmatpush1.msra.mxu0 0.0
  %1070 = vmatprep.subr.mxu0 0.0
  %1071 = vmatpush1.msra.mxu0 0.0
  %1072 = vmatprep.subr.mxu0 0.0
  %1073 = vmatpush1.msra.mxu0 0.0
  %1074 = vmatprep.subr.mxu0 0.0
  %1075 = vmatpush1.msra.mxu0 0.0
  %1076 = vmatprep.subr.mxu0 0.0
  %1077 = vmatpush1.msra.mxu0 0.0
  %1078 = vmatprep.subr.mxu0 0.0
  %1079 = vmatpush1.msra.mxu0 0.0
  %1080 = vmatprep.subr.mxu0 0.0
  %1081 = vmatpush1.msra.mxu0 0.0
  %1082 = vmatprep.subr.mxu0 0.0
  %1083 = vmatpush1.msra.mxu0 0.0
  %1084 = vmatprep.subr.mxu0 0.0
  %1085 = vmatpush1.msra.mxu0 0.0
  %1086 = vmatprep.subr.mxu0 0.0
  %1087 = vmatpush1.msra.mxu0 0.0
  %1088 = vmatprep.subr.mxu0 0.0
  %1089 = vmatpush1.msra.mxu0 0.0
  %1090 = vmatprep.subr.mxu0 0.0
  %1091 = vmatpush1.msra.mxu0 0.0
  %1092 = vmatprep.subr.mxu0 0.0
  %1093 = vmatpush1.msra.mxu0 0.0
  %1094 = vmatprep.subr.mxu0 0.0
  %1095 = vmatpush1.msra.mxu0 0.0
  %1096 = vmatprep.subr.mxu0 0.0
  %1097 = vmatpush1.msra.mxu0 0.0
  %1098 = vmatprep.mubr.f32.mxu0 0.0
  %1099 = vmatmul.mubr.f32.gmra.mrb[0].mxu0 %v875
  %v1100 = vpop.f32.mrb[0].mxu0
  %v1101 = vadd.f32 %v813, %v1100
  %v1102 = vpop.f32.mrb[0].mxu0
  %v1103 = vadd.f32 %v817, %v1102
  %1104 = vmatprep.mubr.f32.mxu0 0.0
  %1105 = vmatmul.mubr.f32.gmra.mrb[0].mxu0 %v878
  %v1106 = vpop.f32.mrb[0].mxu0
  %v1107 = vadd.f32 %v813, %v1106
  %v1108 = vpop.f32.mrb[0].mxu0
  %v1109 = vadd.f32 %v817, %v1108
  %1110 = vdwg.mxu0
  %1111 = vmatprep.subr.mxu0 %v765
  %1112 = vmatpush1.msra.mxu0 %v764
  %1113 = vmatprep.subr.mxu0 %v781
  %1114 = vmatpush1.msra.mxu0 %v780
  %1115 = vmatprep.subr.mxu0 0.0
  %1116 = vmatpush1.msra.mxu0 0.0
  %1117 = vmatprep.subr.mxu0 0.0
  %1118 = vmatpush1.msra.mxu0 0.0
  %1119 = vmatprep.subr.mxu0 0.0
  %1120 = vmatpush1.msra.mxu0 0.0
  %1121 = vmatprep.subr.mxu0 0.0
  %1122 = vmatpush1.msra.mxu0 0.0
  %1123 = vmatprep.subr.mxu0 0.0
  %1124 = vmatpush1.msra.mxu0 0.0
  %1125 = vmatprep.subr.mxu0 0.0
  %1126 = vmatpush1.msra.mxu0 0.0
  %1127 = vmatprep.subr.mxu0 0.0
  %1128 = vmatpush1.msra.mxu0 0.0
  %1129 = vmatprep.subr.mxu0 0.0
  %1130 = vmatpush1.msra.mxu0 0.0
  %1131 = vmatprep.subr.mxu0 0.0
  %1132 = vmatpush1.msra.mxu0 0.0
  %1133 = vmatprep.subr.mxu0 0.0
  %1134 = vmatpush1.msra.mxu0 0.0
  %1135 = vmatprep.subr.mxu0 0.0
  %1136 = vmatpush1.msra.mxu0 0.0
  %1137 = vmatprep.subr.mxu0 0.0
  %1138 = vmatpush1.msra.mxu0 0.0
  %1139 = vmatprep.subr.mxu0 0.0
  %1140 = vmatpush1.msra.mxu0 0.0
  %1141 = vmatprep.subr.mxu0 0.0
  %1142 = vmatpush1.msra.mxu0 0.0
  %1143 = vmatprep.subr.mxu0 0.0
  %1144 = vmatpush1.msra.mxu0 0.0
  %1145 = vmatprep.subr.mxu0 0.0
  %1146 = vmatpush1.msra.mxu0 0.0
  %1147 = vmatprep.subr.mxu0 0.0
  %1148 = vmatpush1.msra.mxu0 0.0
  %1149 = vmatprep.subr.mxu0 0.0
  %1150 = vmatpush1.msra.mxu0 0.0
  %1151 = vmatprep.subr.mxu0 0.0
  %1152 = vmatpush1.msra.mxu0 0.0
  %1153 = vmatprep.subr.mxu0 0.0
  %1154 = vmatpush1.msra.mxu0 0.0
  %1155 = vmatprep.subr.mxu0 0.0
  %1156 = vmatpush1.msra.mxu0 0.0
  %1157 = vmatprep.subr.mxu0 0.0
  %1158 = vmatpush1.msra.mxu0 0.0
  %1159 = vmatprep.subr.mxu0 0.0
  %1160 = vmatpush1.msra.mxu0 0.0
  %1161 = vmatprep.subr.mxu0 0.0
  %1162 = vmatpush1.msra.mxu0 0.0
  %1163 = vmatprep.subr.mxu0 0.0
  %1164 = vmatpush1.msra.mxu0 0.0
  %1165 = vmatprep.subr.mxu0 0.0
  %1166 = vmatpush1.msra.mxu0 0.0
  %1167 = vmatprep.subr.mxu0 0.0
  %1168 = vmatpush1.msra.mxu0 0.0
  %1169 = vmatprep.subr.mxu0 0.0
  %1170 = vmatpush1.msra.mxu0 0.0
  %1171 = vmatprep.subr.mxu0 0.0
  %1172 = vmatpush1.msra.mxu0 0.0
  %1173 = vmatprep.subr.mxu0 0.0
  %1174 = vmatpush1.msra.mxu0 0.0
  %1175 = vmatprep.mubr.f32.mxu0 0.0
  %1176 = vmatmul.mubr.f32.gmra.mrb[0].mxu0 %v875
  %v1177 = vpop.f32.mrb[0].mxu0
  %v1178 = vadd.f32 %v821, %v1177
  %v1179 = vpop.f32.mrb[0].mxu0
  %v1180 = vadd.f32 %v825, %v1179
  %1181 = vmatprep.mubr.f32.mxu0 0.0
  %1182 = vmatmul.mubr.f32.gmra.mrb[0].mxu0 %v878
  %v1183 = vpop.f32.mrb[0].mxu0
  %v1184 = vadd.f32 %v821, %v1183
  %v1185 = vpop.f32.mrb[0].mxu0
  %v1186 = vadd.f32 %v825, %v1185
  %1187 = vdwg.mxu0
  %1188 = vmatprep.subr.mxu0 %v767
  %1189 = vmatpush1.msra.mxu0 %v766
  %1190 = vmatprep.subr.mxu0 %v783
  %1191 = vmatpush1.msra.mxu0 %v782
  %1192 = vmatprep.subr.mxu0 0.0
  %1193 = vmatpush1.msra.mxu0 0.0
  %1194 = vmatprep.subr.mxu0 0.0
  %1195 = vmatpush1.msra.mxu0 0.0
  %1196 = vmatprep.subr.mxu0 0.0
  %1197 = vmatpush1.msra.mxu0 0.0
  %1198 = vmatprep.subr.mxu0 0.0
  %1199 = vmatpush1.msra.mxu0 0.0
  %1200 = vmatprep.subr.mxu0 0.0
  %1201 = vmatpush1.msra.mxu0 0.0
  %1202 = vmatprep.subr.mxu0 0.0
  %1203 = vmatpush1.msra.mxu0 0.0
  %1204 = vmatprep.subr.mxu0 0.0
  %1205 = vmatpush1.msra.mxu0 0.0
  %1206 = vmatprep.subr.mxu0 0.0
  %1207 = vmatpush1.msra.mxu0 0.0
  %1208 = vmatprep.subr.mxu0 0.0
  %1209 = vmatpush1.msra.mxu0 0.0
  %1210 = vmatprep.subr.mxu0 0.0
  %1211 = vmatpush1.msra.mxu0 0.0
  %1212 = vmatprep.subr.mxu0 0.0
  %1213 = vmatpush1.msra.mxu0 0.0
  %1214 = vmatprep.subr.mxu0 0.0
  %1215 = vmatpush1.msra.mxu0 0.0
  %1216 = vmatprep.subr.mxu0 0.0
  %1217 = vmatpush1.msra.mxu0 0.0
  %1218 = vmatprep.subr.mxu0 0.0
  %1219 = vmatpush1.msra.mxu0 0.0
  %1220 = vmatprep.subr.mxu0 0.0
  %1221 = vmatpush1.msra.mxu0 0.0
  %1222 = vmatprep.subr.mxu0 0.0
  %1223 = vmatpush1.msra.mxu0 0.0
  %1224 = vmatprep.subr.mxu0 0.0
  %1225 = vmatpush1.msra.mxu0 0.0
  %1226 = vmatprep.subr.mxu0 0.0
  %1227 = vmatpush1.msra.mxu0 0.0
  %1228 = vmatprep.subr.mxu0 0.0
  %1229 = vmatpush1.msra.mxu0 0.0
  %1230 = vmatprep.subr.mxu0 0.0
  %1231 = vmatpush1.msra.mxu0 0.0
  %1232 = vmatprep.subr.mxu0 0.0
  %1233 = vmatpush1.msra.mxu0 0.0
  %1234 = vmatprep.subr.mxu0 0.0
  %1235 = vmatpush1.msra.mxu0 0.0
  %1236 = vmatprep.subr.mxu0 0.0
  %1237 = vmatpush1.msra.mxu0 0.0
  %1238 = vmatprep.subr.mxu0 0.0
  %1239 = vmatpush1.msra.mxu0 0.0
  %1240 = vmatprep.subr.mxu0 0.0
  %1241 = vmatpush1.msra.mxu0 0.0
  %1242 = vmatprep.subr.mxu0 0.0
  %1243 = vmatpush1.msra.mxu0 0.0
  %1244 = vmatprep.subr.mxu0 0.0
  %1245 = vmatpush1.msra.mxu0 0.0
  %1246 = vmatprep.subr.mxu0 0.0
  %1247 = vmatpush1.msra.mxu0 0.0
  %1248 = vmatprep.subr.mxu0 0.0
  %1249 = vmatpush1.msra.mxu0 0.0
  %1250 = vmatprep.subr.mxu0 0.0
  %1251 = vmatpush1.msra.mxu0 0.0
  %1252 = vmatprep.mubr.f32.mxu0 0.0
  %1253 = vmatmul.mubr.f32.gmra.mrb[0].mxu0 %v875
  %v1254 = vpop.f32.mrb[0].mxu0
  %v1255 = vadd.f32 %v829, %v1254
  %v1256 = vpop.f32.mrb[0].mxu0
  %v1257 = vadd.f32 %v833, %v1256
  %1258 = vmatprep.mubr.f32.mxu0 0.0
  %1259 = vmatmul.mubr.f32.gmra.mrb[0].mxu0 %v878
  %v1260 = vpop.f32.mrb[0].mxu0
  %v1261 = vadd.f32 %v829, %v1260
  %v1262 = vpop.f32.mrb[0].mxu0
  %v1263 = vadd.f32 %v833, %v1262
  %1264 = vdwg.mxu0
  %1265 = vmatprep.subr.mxu0 %v769
  %1266 = vmatpush1.msra.mxu0 %v768
  %1267 = vmatprep.subr.mxu0 %v785
  %1268 = vmatpush1.msra.mxu0 %v784
  %1269 = vmatprep.subr.mxu0 0.0
  %1270 = vmatpush1.msra.mxu0 0.0
  %1271 = vmatprep.subr.mxu0 0.0
  %1272 = vmatpush1.msra.mxu0 0.0
  %1273 = vmatprep.subr.mxu0 0.0
  %1274 = vmatpush1.msra.mxu0 0.0
  %1275 = vmatprep.subr.mxu0 0.0
  %1276 = vmatpush1.msra.mxu0 0.0
  %1277 = vmatprep.subr.mxu0 0.0
  %1278 = vmatpush1.msra.mxu0 0.0
  %1279 = vmatprep.subr.mxu0 0.0
  %1280 = vmatpush1.msra.mxu0 0.0
  %1281 = vmatprep.subr.mxu0 0.0
  %1282 = vmatpush1.msra.mxu0 0.0
  %1283 = vmatprep.subr.mxu0 0.0
  %1284 = vmatpush1.msra.mxu0 0.0
  %1285 = vmatprep.subr.mxu0 0.0
  %1286 = vmatpush1.msra.mxu0 0.0
  %1287 = vmatprep.subr.mxu0 0.0
  %1288 = vmatpush1.msra.mxu0 0.0
  %1289 = vmatprep.subr.mxu0 0.0
  %1290 = vmatpush1.msra.mxu0 0.0
  %1291 = vmatprep.subr.mxu0 0.0
  %1292 = vmatpush1.msra.mxu0 0.0
  %1293 = vmatprep.subr.mxu0 0.0
  %1294 = vmatpush1.msra.mxu0 0.0
  %1295 = vmatprep.subr.mxu0 0.0
  %1296 = vmatpush1.msra.mxu0 0.0
  %1297 = vmatprep.subr.mxu0 0.0
  %1298 = vmatpush1.msra.mxu0 0.0
  %1299 = vmatprep.subr.mxu0 0.0
  %1300 = vmatpush1.msra.mxu0 0.0
  %1301 = vmatprep.subr.mxu0 0.0
  %1302 = vmatpush1.msra.mxu0 0.0
  %1303 = vmatprep.subr.mxu0 0.0
  %1304 = vmatpush1.msra.mxu0 0.0
  %1305 = vmatprep.subr.mxu0 0.0
  %1306 = vmatpush1.msra.mxu0 0.0
  %1307 = vmatprep.subr.mxu0 0.0
  %1308 = vmatpush1.msra.mxu0 0.0
  %1309 = vmatprep.subr.mxu0 0.0
  %1310 = vmatpush1.msra.mxu0 0.0
  %1311 = vmatprep.subr.mxu0 0.0
  %1312 = vmatpush1.msra.mxu0 0.0
  %1313 = vmatprep.subr.mxu0 0.0
  %1314 = vmatpush1.msra.mxu0 0.0
  %1315 = vmatprep.subr.mxu0 0.0
  %1316 = vmatpush1.msra.mxu0 0.0
  %1317 = vmatprep.subr.mxu0 0.0
  %1318 = vmatpush1.msra.mxu0 0.0
  %1319 = vmatprep.subr.mxu0 0.0
  %1320 = vmatpush1.msra.mxu0 0.0
  %1321 = vmatprep.subr.mxu0 0.0
  %1322 = vmatpush1.msra.mxu0 0.0
  %1323 = vmatprep.subr.mxu0 0.0
  %1324 = vmatpush1.msra.mxu0 0.0
  %1325 = vmatprep.subr.mxu0 0.0
  %1326 = vmatpush1.msra.mxu0 0.0
  %1327 = vmatprep.subr.mxu0 0.0
  %1328 = vmatpush1.msra.mxu0 0.0
  %1329 = vmatprep.mubr.f32.mxu0 0.0
  %1330 = vmatmul.mubr.f32.gmra.mrb[0].mxu0 %v875
  %v1331 = vpop.f32.mrb[0].mxu0
  %v1332 = vadd.f32 %v837, %v1331
  %v1333 = vpop.f32.mrb[0].mxu0
  %v1334 = vadd.f32 %v841, %v1333
  %1335 = vmatprep.mubr.f32.mxu0 0.0
  %1336 = vmatmul.mubr.f32.gmra.mrb[0].mxu0 %v878
  %v1337 = vpop.f32.mrb[0].mxu0
  %v1338 = vadd.f32 %v837, %v1337
  %v1339 = vpop.f32.mrb[0].mxu0
  %v1340 = vadd.f32 %v841, %v1339
  %1341 = vdwg.mxu0
  %1342 = vmatprep.subr.mxu0 %v771
  %1343 = vmatpush1.msra.mxu0 %v770
  %1344 = vmatprep.subr.mxu0 %v787
  %1345 = vmatpush1.msra.mxu0 %v786
  %1346 = vmatprep.subr.mxu0 0.0
  %1347 = vmatpush1.msra.mxu0 0.0
  %1348 = vmatprep.subr.mxu0 0.0
  %1349 = vmatpush1.msra.mxu0 0.0
  %1350 = vmatprep.subr.mxu0 0.0
  %1351 = vmatpush1.msra.mxu0 0.0
  %1352 = vmatprep.subr.mxu0 0.0
  %1353 = vmatpush1.msra.mxu0 0.0
  %1354 = vmatprep.subr.mxu0 0.0
  %1355 = vmatpush1.msra.mxu0 0.0
  %1356 = vmatprep.subr.mxu0 0.0
  %1357 = vmatpush1.msra.mxu0 0.0
  %1358 = vmatprep.subr.mxu0 0.0
  %1359 = vmatpush1.msra.mxu0 0.0
  %1360 = vmatprep.subr.mxu0 0.0
  %1361 = vmatpush1.msra.mxu0 0.0
  %1362 = vmatprep.subr.mxu0 0.0
  %1363 = vmatpush1.msra.mxu0 0.0
  %1364 = vmatprep.subr.mxu0 0.0
  %1365 = vmatpush1.msra.mxu0 0.0
  %1366 = vmatprep.subr.mxu0 0.0
  %1367 = vmatpush1.msra.mxu0 0.0
  %1368 = vmatprep.subr.mxu0 0.0
  %1369 = vmatpush1.msra.mxu0 0.0
  %1370 = vmatprep.subr.mxu0 0.0
  %1371 = vmatpush1.msra.mxu0 0.0
  %1372 = vmatprep.subr.mxu0 0.0
  %1373 = vmatpush1.msra.mxu0 0.0
  %1374 = vmatprep.subr.mxu0 0.0
  %1375 = vmatpush1.msra.mxu0 0.0
  %1376 = vmatprep.subr.mxu0 0.0
  %1377 = vmatpush1.msra.mxu0 0.0
  %1378 = vmatprep.subr.mxu0 0.0
  %1379 = vmatpush1.msra.mxu0 0.0
  %1380 = vmatprep.subr.mxu0 0.0
  %1381 = vmatpush1.msra.mxu0 0.0
  %1382 = vmatprep.subr.mxu0 0.0
  %1383 = vmatpush1.msra.mxu0 0.0
  %1384 = vmatprep.subr.mxu0 0.0
  %1385 = vmatpush1.msra.mxu0 0.0
  %1386 = vmatprep.subr.mxu0 0.0
  %1387 = vmatpush1.msra.mxu0 0.0
  %1388 = vmatprep.subr.mxu0 0.0
  %1389 = vmatpush1.msra.mxu0 0.0
  %1390 = vmatprep.subr.mxu0 0.0
  %1391 = vmatpush1.msra.mxu0 0.0
  %1392 = vmatprep.subr.mxu0 0.0
  %1393 = vmatpush1.msra.mxu0 0.0
  %1394 = vmatprep.subr.mxu0 0.0
  %1395 = vmatpush1.msra.mxu0 0.0
  %1396 = vmatprep.subr.mxu0 0.0
  %1397 = vmatpush1.msra.mxu0 0.0
  %1398 = vmatprep.subr.mxu0 0.0
  %1399 = vmatpush1.msra.mxu0 0.0
  %1400 = vmatprep.subr.mxu0 0.0
  %1401 = vmatpush1.msra.mxu0 0.0
  %1402 = vmatprep.subr.mxu0 0.0
  %1403 = vmatpush1.msra.mxu0 0.0
  %1404 = vmatprep.subr.mxu0 0.0
  %1405 = vmatpush1.msra.mxu0 0.0
  %1406 = vmatprep.mubr.f32.mxu0 0.0
  %1407 = vmatmul.mubr.f32.gmra.mrb[0].mxu0 %v875
  %v1408 = vpop.f32.mrb[0].mxu0
  %v1409 = vadd.f32 %v845, %v1408
  %v1410 = vpop.f32.mrb[0].mxu0
  %v1411 = vadd.f32 %v849, %v1410
  %1412 = vmatprep.mubr.f32.mxu0 0.0
  %1413 = vmatmul.mubr.f32.gmra.mrb[0].mxu0 %v878
  %v1414 = vpop.f32.mrb[0].mxu0
  %v1415 = vadd.f32 %v845, %v1414
  %v1416 = vpop.f32.mrb[0].mxu0
  %v1417 = vadd.f32 %v849, %v1416
  %1418 = vdwg.mxu0
  %1419 = vmatprep.subr.mxu0 %v773
  %1420 = vmatpush1.msra.mxu0 %v772
  %1421 = vmatprep.subr.mxu0 %v789
  %1422 = vmatpush1.msra.mxu0 %v788
  %1423 = vmatprep.subr.mxu0 0.0
  %1424 = vmatpush1.msra.mxu0 0.0
  %1425 = vmatprep.subr.mxu0 0.0
  %1426 = vmatpush1.msra.mxu0 0.0
  %1427 = vmatprep.subr.mxu0 0.0
  %1428 = vmatpush1.msra.mxu0 0.0
  %1429 = vmatprep.subr.mxu0 0.0
  %1430 = vmatpush1.msra.mxu0 0.0
  %1431 = vmatprep.subr.mxu0 0.0
  %1432 = vmatpush1.msra.mxu0 0.0
  %1433 = vmatprep.subr.mxu0 0.0
  %1434 = vmatpush1.msra.mxu0 0.0
  %1435 = vmatprep.subr.mxu0 0.0
  %1436 = vmatpush1.msra.mxu0 0.0
  %1437 = vmatprep.subr.mxu0 0.0
  %1438 = vmatpush1.msra.mxu0 0.0
  %1439 = vmatprep.subr.mxu0 0.0
  %1440 = vmatpush1.msra.mxu0 0.0
  %1441 = vmatprep.subr.mxu0 0.0
  %1442 = vmatpush1.msra.mxu0 0.0
  %1443 = vmatprep.subr.mxu0 0.0
  %1444 = vmatpush1.msra.mxu0 0.0
  %1445 = vmatprep.subr.mxu0 0.0
  %1446 = vmatpush1.msra.mxu0 0.0
  %1447 = vmatprep.subr.mxu0 0.0
  %1448 = vmatpush1.msra.mxu0 0.0
  %1449 = vmatprep.subr.mxu0 0.0
  %1450 = vmatpush1.msra.mxu0 0.0
  %1451 = vmatprep.subr.mxu0 0.0
  %1452 = vmatpush1.msra.mxu0 0.0
  %1453 = vmatprep.subr.mxu0 0.0
  %1454 = vmatpush1.msra.mxu0 0.0
  %1455 = vmatprep.subr.mxu0 0.0
  %1456 = vmatpush1.msra.mxu0 0.0
  %1457 = vmatprep.subr.mxu0 0.0
  %1458 = vmatpush1.msra.mxu0 0.0
  %1459 = vmatprep.subr.mxu0 0.0
  %1460 = vmatpush1.msra.mxu0 0.0
  %1461 = vmatprep.subr.mxu0 0.0
  %1462 = vmatpush1.msra.mxu0 0.0
  %1463 = vmatprep.subr.mxu0 0.0
  %1464 = vmatpush1.msra.mxu0 0.0
  %1465 = vmatprep.subr.mxu0 0.0
  %1466 = vmatpush1.msra.mxu0 0.0
  %1467 = vmatprep.subr.mxu0 0.0
  %1468 = vmatpush1.msra.mxu0 0.0
  %1469 = vmatprep.subr.mxu0 0.0
  %1470 = vmatpush1.msra.mxu0 0.0
  %1471 = vmatprep.subr.mxu0 0.0
  %1472 = vmatpush1.msra.mxu0 0.0
  %1473 = vmatprep.subr.mxu0 0.0
  %1474 = vmatpush1.msra.mxu0 0.0
  %1475 = vmatprep.subr.mxu0 0.0
  %1476 = vmatpush1.msra.mxu0 0.0
  %1477 = vmatprep.subr.mxu0 0.0
  %1478 = vmatpush1.msra.mxu0 0.0
  %1479 = vmatprep.subr.mxu0 0.0
  %1480 = vmatpush1.msra.mxu0 0.0
  %1481 = vmatprep.subr.mxu0 0.0
  %1482 = vmatpush1.msra.mxu0 0.0
  %1483 = vmatprep.mubr.f32.mxu0 0.0
  %1484 = vmatmul.mubr.f32.gmra.mrb[0].mxu0 %v875
  %v1485 = vpop.f32.mrb[0].mxu0
  %v1486 = vadd.f32 %v853, %v1485
  %v1487 = vpop.f32.mrb[0].mxu0
  %v1488 = vadd.f32 %v857, %v1487
  %1489 = vmatprep.mubr.f32.mxu0 0.0
  %1490 = vmatmul.mubr.f32.gmra.mrb[0].mxu0 %v878
  %v1491 = vpop.f32.mrb[0].mxu0
  %v1492 = vadd.f32 %v853, %v1491
  %v1493 = vpop.f32.mrb[0].mxu0
  %v1494 = vadd.f32 %v857, %v1493
  %1495 = vdwg.mxu0
  %v1496 = vmax.f32 %v947, 0.0
  %v1497 = vmax.f32 %v949, 0.0
  %v1498 = vmax.f32 %v1024, 0.0
  %v1499 = vmax.f32 %v1026, 0.0
  %v1500 = vmax.f32 %v1101, 0.0
  %v1501 = vmax.f32 %v1103, 0.0
  %v1502 = vmax.f32 %v1178, 0.0
  %v1503 = vmax.f32 %v1180, 0.0
  %v1504 = vmax.f32 %v1255, 0.0
  %v1505 = vmax.f32 %v1257, 0.0
  %v1506 = vmax.f32 %v1332, 0.0
  %v1507 = vmax.f32 %v1334, 0.0
  %v1508 = vmax.f32 %v1409, 0.0
  %v1509 = vmax.f32 %v1411, 0.0
  %v1510 = vmax.f32 %v1486, 0.0
  %v1511 = vmax.f32 %v1488, 0.0
  %v1512 = vmax.f32 %v953, 0.0
  %v1513 = vmax.f32 %v955, 0.0
  %v1514 = vmax.f32 %v1030, 0.0
  %v1515 = vmax.f32 %v1032, 0.0
  %v1516 = vmax.f32 %v1107, 0.0
  %v1517 = vmax.f32 %v1109, 0.0
  %v1518 = vmax.f32 %v1184, 0.0
  %v1519 = vmax.f32 %v1186, 0.0
  %v1520 = vmax.f32 %v1261, 0.0
  %v1521 = vmax.f32 %v1263, 0.0
  %v1522 = vmax.f32 %v1338, 0.0
  %v1523 = vmax.f32 %v1340, 0.0
  %v1524 = vmax.f32 %v1415, 0.0
  %v1525 = vmax.f32 %v1417, 0.0
  %v1526 = vmax.f32 %v1492, 0.0
  %v1527 = vmax.f32 %v1494, 0.0
  %v1528 = vld [vmem:[%s9] sm:$0xf]
  %v1529 = vld [vmem:[%s9 + $0x4] sm:$0xf]
  %v1530 = vld [vmem:[%s9 + $0x8] sm:$0xf]
  %v1531 = vld [vmem:[%s9 + $0xc] sm:$0xf]
  %v1532 = vld [vmem:[%s9 + $0x10] sm:$0xf]
  %v1533 = vld [vmem:[%s9 + $0x14] sm:$0xf]
  %v1534 = vld [vmem:[%s9 + $0x18] sm:$0xf]
  %v1535 = vld [vmem:[%s9 + $0x1c] sm:$0xf]
  %v1536 = vld [vmem:[%s9 + $0x20] sm:$0xf]
  %v1537 = vld [vmem:[%s9 + $0x24] sm:$0xf]
  %v1538 = vld [vmem:[%s9 + $0x28] sm:$0xf]
  %v1539 = vld [vmem:[%s9 + $0x2c] sm:$0xf]
  %v1540 = vld [vmem:[%s9 + $0x30] sm:$0xf]
  %v1541 = vld [vmem:[%s9 + $0x34] sm:$0xf]
  %v1542 = vld [vmem:[%s9 + $0x38] sm:$0xf]
  %v1543 = vld [vmem:[%s9 + $0x3c] sm:$0xf]
  %v1544 = vld [vmem:[%s9 + $0x40] sm:$0xf]
  %v1545 = vld [vmem:[%s9 + $0x44] sm:$0xf]
  %v1546 = vld [vmem:[%s9 + $0x48] sm:$0xf]
  %v1547 = vld [vmem:[%s9 + $0x4c] sm:$0xf]
  %v1548 = vld [vmem:[%s9 + $0x50] sm:$0xf]
  %v1549 = vld [vmem:[%s9 + $0x54] sm:$0xf]
  %v1550 = vld [vmem:[%s9 + $0x58] sm:$0xf]
  %v1551 = vld [vmem:[%s9 + $0x5c] sm:$0xf]
  %v1552 = vld [vmem:[%s9 + $0x60] sm:$0xf]
  %v1553 = vld [vmem:[%s9 + $0x64] sm:$0xf]
  %v1554 = vld [vmem:[%s9 + $0x68] sm:$0xf]
  %v1555 = vld [vmem:[%s9 + $0x6c] sm:$0xf]
  %v1556 = vld [vmem:[%s9 + $0x70] sm:$0xf]
  %v1557 = vld [vmem:[%s9 + $0x74] sm:$0xf]
  %v1558 = vld [vmem:[%s9 + $0x78] sm:$0xf]
  %v1559 = vld [vmem:[%s9 + $0x7c] sm:$0xf]
  %v1560 = vld [vmem:[%s9 + $0x80] sm:$0xf]
  %v1561 = vld [vmem:[%s9 + $0x84] sm:$0xf]
  %v1562 = vld [vmem:[%s9 + $0x88] sm:$0xf]
  %v1563 = vld [vmem:[%s9 + $0x8c] sm:$0xf]
  %v1564 = vld [vmem:[%s9 + $0x90] sm:$0xf]
  %v1565 = vld [vmem:[%s9 + $0x94] sm:$0xf]
  %v1566 = vld [vmem:[%s9 + $0x98] sm:$0xf]
  %v1567 = vld [vmem:[%s9 + $0x9c] sm:$0xf]
  %v1568 = vld [vmem:[%s9 + $0xa0] sm:$0xf]
  %v1569 = vld [vmem:[%s9 + $0xa4] sm:$0xf]
  %v1570 = vld [vmem:[%s9 + $0xa8] sm:$0xf]
  %v1571 = vld [vmem:[%s9 + $0xac] sm:$0xf]
  %v1572 = vld [vmem:[%s9 + $0xb0] sm:$0xf]
  %v1573 = vld [vmem:[%s9 + $0xb4] sm:$0xf]
  %v1574 = vld [vmem:[%s9 + $0xb8] sm:$0xf]
  %v1575 = vld [vmem:[%s9 + $0xbc] sm:$0xf]
  %v1576 = vld [vmem:[%s9 + $0xc0] sm:$0xf]
  %v1577 = vld [vmem:[%s9 + $0xc4] sm:$0xf]
  %v1578 = vld [vmem:[%s9 + $0xc8] sm:$0xf]
  %v1579 = vld [vmem:[%s9 + $0xcc] sm:$0xf]
  %v1580 = vld [vmem:[%s9 + $0xd0] sm:$0xf]
  %v1581 = vld [vmem:[%s9 + $0xd4] sm:$0xf]
  %v1582 = vld [vmem:[%s9 + $0xd8] sm:$0xf]
  %v1583 = vld [vmem:[%s9 + $0xdc] sm:$0xf]
  %v1584 = vld [vmem:[%s9 + $0xe0] sm:$0xf]
  %v1585 = vld [vmem:[%s9 + $0xe4] sm:$0xf]
  %v1586 = vld [vmem:[%s9 + $0xe8] sm:$0xf]
  %v1587 = vld [vmem:[%s9 + $0xec] sm:$0xf]
  %v1588 = vld [vmem:[%s9 + $0xf0] sm:$0xf]
  %v1589 = vld [vmem:[%s9 + $0xf4] sm:$0xf]
  %v1590 = vld [vmem:[%s9 + $0xf8] sm:$0xf]
  %v1591 = vld [vmem:[%s9 + $0xfc] sm:$0xf]
  %v1592 = vld [vmem:[%s9 + $0x100] sm:$0xf]
  %v1593 = vld [vmem:[%s9 + $0x104] sm:$0xf]
  %v1594 = vld [vmem:[%s9 + $0x108] sm:$0xf]
  %v1595 = vld [vmem:[%s9 + $0x10c] sm:$0xf]
  %v1596 = vld [vmem:[%s9 + $0x110] sm:$0xf]
  %v1597 = vld [vmem:[%s9 + $0x114] sm:$0xf]
  %v1598 = vld [vmem:[%s9 + $0x118] sm:$0xf]
  %v1599 = vld [vmem:[%s9 + $0x11c] sm:$0xf]
  %v1600 = vld [vmem:[%s9 + $0x120] sm:$0xf]
  %v1601 = vld [vmem:[%s9 + $0x124] sm:$0xf]
  %v1602 = vld [vmem:[%s9 + $0x128] sm:$0xf]
  %v1603 = vld [vmem:[%s9 + $0x12c] sm:$0xf]
  %v1604 = vld [vmem:[%s9 + $0x130] sm:$0xf]
  %v1605 = vld [vmem:[%s9 + $0x134] sm:$0xf]
  %v1606 = vld [vmem:[%s9 + $0x138] sm:$0xf]
  %v1607 = vld [vmem:[%s9 + $0x13c] sm:$0xf]
  %v1608 = vld [vmem:[%s9 + $0x140] sm:$0xf]
  %v1609 = vld [vmem:[%s9 + $0x144] sm:$0xf]
  %v1610 = vld [vmem:[%s9 + $0x148] sm:$0xf]
  %v1611 = vld [vmem:[%s9 + $0x14c] sm:$0xf]
  %v1612 = vld [vmem:[%s9 + $0x150] sm:$0xf]
  %v1613 = vld [vmem:[%s9 + $0x154] sm:$0xf]
  %v1614 = vld [vmem:[%s9 + $0x158] sm:$0xf]
  %v1615 = vld [vmem:[%s9 + $0x15c] sm:$0xf]
  %v1616 = vld [vmem:[%s9 + $0x160] sm:$0xf]
  %v1617 = vld [vmem:[%s9 + $0x164] sm:$0xf]
  %v1618 = vld [vmem:[%s9 + $0x168] sm:$0xf]
  %v1619 = vld [vmem:[%s9 + $0x16c] sm:$0xf]
  %v1620 = vld [vmem:[%s9 + $0x170] sm:$0xf]
  %v1621 = vld [vmem:[%s9 + $0x174] sm:$0xf]
  %v1622 = vld [vmem:[%s9 + $0x178] sm:$0xf]
  %v1623 = vld [vmem:[%s9 + $0x17c] sm:$0xf]
  %v1624 = vld [vmem:[%s9 + $0x180] sm:$0xf]
  %v1625 = vld [vmem:[%s9 + $0x184] sm:$0xf]
  %v1626 = vld [vmem:[%s9 + $0x188] sm:$0xf]
  %v1627 = vld [vmem:[%s9 + $0x18c] sm:$0xf]
  %v1628 = vld [vmem:[%s9 + $0x190] sm:$0xf]
  %v1629 = vld [vmem:[%s9 + $0x194] sm:$0xf]
  %v1630 = vld [vmem:[%s9 + $0x198] sm:$0xf]
  %v1631 = vld [vmem:[%s9 + $0x19c] sm:$0xf]
  %v1632 = vld [vmem:[%s9 + $0x1a0] sm:$0xf]
  %v1633 = vld [vmem:[%s9 + $0x1a4] sm:$0xf]
  %v1634 = vld [vmem:[%s9 + $0x1a8] sm:$0xf]
  %v1635 = vld [vmem:[%s9 + $0x1ac] sm:$0xf]
  %v1636 = vld [vmem:[%s9 + $0x1b0] sm:$0xf]
  %v1637 = vld [vmem:[%s9 + $0x1b4] sm:$0xf]
  %v1638 = vld [vmem:[%s9 + $0x1b8] sm:$0xf]
  %v1639 = vld [vmem:[%s9 + $0x1bc] sm:$0xf]
  %v1640 = vld [vmem:[%s9 + $0x1c0] sm:$0xf]
  %v1641 = vld [vmem:[%s9 + $0x1c4] sm:$0xf]
  %v1642 = vld [vmem:[%s9 + $0x1c8] sm:$0xf]
  %v1643 = vld [vmem:[%s9 + $0x1cc] sm:$0xf]
  %v1644 = vld [vmem:[%s9 + $0x1d0] sm:$0xf]
  %v1645 = vld [vmem:[%s9 + $0x1d4] sm:$0xf]
  %v1646 = vld [vmem:[%s9 + $0x1d8] sm:$0xf]
  %v1647 = vld [vmem:[%s9 + $0x1dc] sm:$0xf]
  %v1648 = vld [vmem:[%s9 + $0x1e0] sm:$0xf]
  %v1649 = vld [vmem:[%s9 + $0x1e4] sm:$0xf]
  %v1650 = vld [vmem:[%s9 + $0x1e8] sm:$0xf]
  %v1651 = vld [vmem:[%s9 + $0x1ec] sm:$0xf]
  %v1652 = vld [vmem:[%s9 + $0x1f0] sm:$0xf]
  %v1653 = vld [vmem:[%s9 + $0x1f4] sm:$0xf]
  %v1654 = vld [vmem:[%s9 + $0x1f8] sm:$0xf]
  %v1655 = vld [vmem:[%s9 + $0x1fc] sm:$0xf]
  %v1656 = vld [vmem:[%s9 + $0x200] sm:$0xf]
  %v1657 = vld [vmem:[%s9 + $0x204] sm:$0xf]
  %v1658 = vld [vmem:[%s9 + $0x208] sm:$0xf]
  %v1659 = vld [vmem:[%s9 + $0x20c] sm:$0xf]
  %v1660 = vld [vmem:[%s9 + $0x210] sm:$0xf]
  %v1661 = vld [vmem:[%s9 + $0x214] sm:$0xf]
  %v1662 = vld [vmem:[%s9 + $0x218] sm:$0xf]
  %v1663 = vld [vmem:[%s9 + $0x21c] sm:$0xf]
  %v1664 = vld [vmem:[%s9 + $0x220] sm:$0xf]
  %v1665 = vld [vmem:[%s9 + $0x224] sm:$0xf]
  %v1666 = vld [vmem:[%s9 + $0x228] sm:$0xf]
  %v1667 = vld [vmem:[%s9 + $0x22c] sm:$0xf]
  %v1668 = vld [vmem:[%s9 + $0x230] sm:$0xf]
  %v1669 = vld [vmem:[%s9 + $0x234] sm:$0xf]
  %v1670 = vld [vmem:[%s9 + $0x238] sm:$0xf]
  %v1671 = vld [vmem:[%s9 + $0x23c] sm:$0xf]
  %v1672 = vld [vmem:[%s9 + $0x240] sm:$0xf]
  %v1673 = vld [vmem:[%s9 + $0x244] sm:$0xf]
  %v1674 = vld [vmem:[%s9 + $0x248] sm:$0xf]
  %v1675 = vld [vmem:[%s9 + $0x24c] sm:$0xf]
  %v1676 = vld [vmem:[%s9 + $0x250] sm:$0xf]
  %v1677 = vld [vmem:[%s9 + $0x254] sm:$0xf]
  %v1678 = vld [vmem:[%s9 + $0x258] sm:$0xf]
  %v1679 = vld [vmem:[%s9 + $0x25c] sm:$0xf]
  %v1680 = vld [vmem:[%s9 + $0x260] sm:$0xf]
  %v1681 = vld [vmem:[%s9 + $0x264] sm:$0xf]
  %v1682 = vld [vmem:[%s9 + $0x268] sm:$0xf]
  %v1683 = vld [vmem:[%s9 + $0x26c] sm:$0xf]
  %v1684 = vld [vmem:[%s9 + $0x270] sm:$0xf]
  %v1685 = vld [vmem:[%s9 + $0x274] sm:$0xf]
  %v1686 = vld [vmem:[%s9 + $0x278] sm:$0xf]
  %v1687 = vld [vmem:[%s9 + $0x27c] sm:$0xf]
  %v1688 = vld [vmem:[%s9 + $0x280] sm:$0xf]
  %v1689 = vld [vmem:[%s9 + $0x284] sm:$0xf]
  %v1690 = vld [vmem:[%s9 + $0x288] sm:$0xf]
  %v1691 = vld [vmem:[%s9 + $0x28c] sm:$0xf]
  %v1692 = vld [vmem:[%s9 + $0x290] sm:$0xf]
  %v1693 = vld [vmem:[%s9 + $0x294] sm:$0xf]
  %v1694 = vld [vmem:[%s9 + $0x298] sm:$0xf]
  %v1695 = vld [vmem:[%s9 + $0x29c] sm:$0xf]
  %v1696 = vld [vmem:[%s9 + $0x2a0] sm:$0xf]
  %v1697 = vld [vmem:[%s9 + $0x2a4] sm:$0xf]
  %v1698 = vld [vmem:[%s9 + $0x2a8] sm:$0xf]
  %v1699 = vld [vmem:[%s9 + $0x2ac] sm:$0xf]
  %v1700 = vld [vmem:[%s9 + $0x2b0] sm:$0xf]
  %v1701 = vld [vmem:[%s9 + $0x2b4] sm:$0xf]
  %v1702 = vld [vmem:[%s9 + $0x2b8] sm:$0xf]
  %v1703 = vld [vmem:[%s9 + $0x2bc] sm:$0xf]
  %v1704 = vld [vmem:[%s9 + $0x2c0] sm:$0xf]
  %v1705 = vld [vmem:[%s9 + $0x2c4] sm:$0xf]
  %v1706 = vld [vmem:[%s9 + $0x2c8] sm:$0xf]
  %v1707 = vld [vmem:[%s9 + $0x2cc] sm:$0xf]
  %v1708 = vld [vmem:[%s9 + $0x2d0] sm:$0xf]
  %v1709 = vld [vmem:[%s9 + $0x2d4] sm:$0xf]
  %v1710 = vld [vmem:[%s9 + $0x2d8] sm:$0xf]
  %v1711 = vld [vmem:[%s9 + $0x2dc] sm:$0xf]
  %v1712 = vld [vmem:[%s9 + $0x2e0] sm:$0xf]
  %v1713 = vld [vmem:[%s9 + $0x2e4] sm:$0xf]
  %v1714 = vld [vmem:[%s9 + $0x2e8] sm:$0xf]
  %v1715 = vld [vmem:[%s9 + $0x2ec] sm:$0xf]
  %v1716 = vld [vmem:[%s9 + $0x2f0] sm:$0xf]
  %v1717 = vld [vmem:[%s9 + $0x2f4] sm:$0xf]
  %v1718 = vld [vmem:[%s9 + $0x2f8] sm:$0xf]
  %v1719 = vld [vmem:[%s9 + $0x2fc] sm:$0xf]
  %v1720 = vld [vmem:[%s9 + $0x300] sm:$0xf]
  %v1721 = vld [vmem:[%s9 + $0x304] sm:$0xf]
  %v1722 = vld [vmem:[%s9 + $0x308] sm:$0xf]
  %v1723 = vld [vmem:[%s9 + $0x30c] sm:$0xf]
  %v1724 = vld [vmem:[%s9 + $0x310] sm:$0xf]
  %v1725 = vld [vmem:[%s9 + $0x314] sm:$0xf]
  %v1726 = vld [vmem:[%s9 + $0x318] sm:$0xf]
  %v1727 = vld [vmem:[%s9 + $0x31c] sm:$0xf]
  %v1728 = vld [vmem:[%s9 + $0x320] sm:$0xf]
  %v1729 = vld [vmem:[%s9 + $0x324] sm:$0xf]
  %v1730 = vld [vmem:[%s9 + $0x328] sm:$0xf]
  %v1731 = vld [vmem:[%s9 + $0x32c] sm:$0xf]
  %v1732 = vld [vmem:[%s9 + $0x330] sm:$0xf]
  %v1733 = vld [vmem:[%s9 + $0x334] sm:$0xf]
  %v1734 = vld [vmem:[%s9 + $0x338] sm:$0xf]
  %v1735 = vld [vmem:[%s9 + $0x33c] sm:$0xf]
  %v1736 = vld [vmem:[%s9 + $0x340] sm:$0xf]
  %v1737 = vld [vmem:[%s9 + $0x344] sm:$0xf]
  %v1738 = vld [vmem:[%s9 + $0x348] sm:$0xf]
  %v1739 = vld [vmem:[%s9 + $0x34c] sm:$0xf]
  %v1740 = vld [vmem:[%s9 + $0x350] sm:$0xf]
  %v1741 = vld [vmem:[%s9 + $0x354] sm:$0xf]
  %v1742 = vld [vmem:[%s9 + $0x358] sm:$0xf]
  %v1743 = vld [vmem:[%s9 + $0x35c] sm:$0xf]
  %v1744 = vld [vmem:[%s9 + $0x360] sm:$0xf]
  %v1745 = vld [vmem:[%s9 + $0x364] sm:$0xf]
  %v1746 = vld [vmem:[%s9 + $0x368] sm:$0xf]
  %v1747 = vld [vmem:[%s9 + $0x36c] sm:$0xf]
  %v1748 = vld [vmem:[%s9 + $0x370] sm:$0xf]
  %v1749 = vld [vmem:[%s9 + $0x374] sm:$0xf]
  %v1750 = vld [vmem:[%s9 + $0x378] sm:$0xf]
  %v1751 = vld [vmem:[%s9 + $0x37c] sm:$0xf]
  %v1752 = vld [vmem:[%s9 + $0x380] sm:$0xf]
  %v1753 = vld [vmem:[%s9 + $0x384] sm:$0xf]
  %v1754 = vld [vmem:[%s9 + $0x388] sm:$0xf]
  %v1755 = vld [vmem:[%s9 + $0x38c] sm:$0xf]
  %v1756 = vld [vmem:[%s9 + $0x390] sm:$0xf]
  %v1757 = vld [vmem:[%s9 + $0x394] sm:$0xf]
  %v1758 = vld [vmem:[%s9 + $0x398] sm:$0xf]
  %v1759 = vld [vmem:[%s9 + $0x39c] sm:$0xf]
  %v1760 = vld [vmem:[%s9 + $0x3a0] sm:$0xf]
  %v1761 = vld [vmem:[%s9 + $0x3a4] sm:$0xf]
  %v1762 = vld [vmem:[%s9 + $0x3a8] sm:$0xf]
  %v1763 = vld [vmem:[%s9 + $0x3ac] sm:$0xf]
  %v1764 = vld [vmem:[%s9 + $0x3b0] sm:$0xf]
  %v1765 = vld [vmem:[%s9 + $0x3b4] sm:$0xf]
  %v1766 = vld [vmem:[%s9 + $0x3b8] sm:$0xf]
  %v1767 = vld [vmem:[%s9 + $0x3bc] sm:$0xf]
  %v1768 = vld [vmem:[%s9 + $0x3c0] sm:$0xf]
  %v1769 = vld [vmem:[%s9 + $0x3c4] sm:$0xf]
  %v1770 = vld [vmem:[%s9 + $0x3c8] sm:$0xf]
  %v1771 = vld [vmem:[%s9 + $0x3cc] sm:$0xf]
  %v1772 = vld [vmem:[%s9 + $0x3d0] sm:$0xf]
  %v1773 = vld [vmem:[%s9 + $0x3d4] sm:$0xf]
  %v1774 = vld [vmem:[%s9 + $0x3d8] sm:$0xf]
  %v1775 = vld [vmem:[%s9 + $0x3dc] sm:$0xf]
  %v1776 = vld [vmem:[%s9 + $0x3e0] sm:$0xf]
  %v1777 = vld [vmem:[%s9 + $0x3e4] sm:$0xf]
  %v1778 = vld [vmem:[%s9 + $0x3e8] sm:$0xf]
  %v1779 = vld [vmem:[%s9 + $0x3ec] sm:$0xf]
  %v1780 = vld [vmem:[%s9 + $0x3f0] sm:$0xf]
  %v1781 = vld [vmem:[%s9 + $0x3f4] sm:$0xf]
  %v1782 = vld [vmem:[%s9 + $0x3f8] sm:$0xf]
  %v1783 = vld [vmem:[%s9 + $0x3fc] sm:$0xf]
  %v1784 = vunpack.c.l.bf16 %v1528
  %v1785 = vunpack.c.l.bf16 %v1529
  %v1786 = vunpack.c.l.bf16 %v1530
  %v1787 = vunpack.c.l.bf16 %v1531
  %v1788 = vunpack.c.l.bf16 %v1532
  %v1789 = vunpack.c.l.bf16 %v1533
  %v1790 = vunpack.c.l.bf16 %v1534
  %v1791 = vunpack.c.l.bf16 %v1535
  %v1792 = vunpack.c.l.bf16 %v1536
  %v1793 = vunpack.c.l.bf16 %v1537
  %v1794 = vunpack.c.l.bf16 %v1538
  %v1795 = vunpack.c.l.bf16 %v1539
  %v1796 = vunpack.c.l.bf16 %v1540
  %v1797 = vunpack.c.l.bf16 %v1541
  %v1798 = vunpack.c.l.bf16 %v1542
  %v1799 = vunpack.c.l.bf16 %v1543
  %v1800 = vunpack.c.l.bf16 %v1544
  %v1801 = vunpack.c.l.bf16 %v1545
  %v1802 = vunpack.c.l.bf16 %v1546
  %v1803 = vunpack.c.l.bf16 %v1547
  %v1804 = vunpack.c.l.bf16 %v1548
  %v1805 = vunpack.c.l.bf16 %v1549
  %v1806 = vunpack.c.l.bf16 %v1550
  %v1807 = vunpack.c.l.bf16 %v1551
  %v1808 = vunpack.c.l.bf16 %v1552
  %v1809 = vunpack.c.l.bf16 %v1553
  %v1810 = vunpack.c.l.bf16 %v1554
  %v1811 = vunpack.c.l.bf16 %v1555
  %v1812 = vunpack.c.l.bf16 %v1556
  %v1813 = vunpack.c.l.bf16 %v1557
  %v1814 = vunpack.c.l.bf16 %v1558
  %v1815 = vunpack.c.l.bf16 %v1559
  %v1816 = vunpack.c.l.bf16 %v1560
  %v1817 = vunpack.c.l.bf16 %v1561
  %v1818 = vunpack.c.l.bf16 %v1562
  %v1819 = vunpack.c.l.bf16 %v1563
  %v1820 = vunpack.c.l.bf16 %v1564
  %v1821 = vunpack.c.l.bf16 %v1565
  %v1822 = vunpack.c.l.bf16 %v1566
  %v1823 = vunpack.c.l.bf16 %v1567
  %v1824 = vunpack.c.l.bf16 %v1568
  %v1825 = vunpack.c.l.bf16 %v1569
  %v1826 = vunpack.c.l.bf16 %v1570
  %v1827 = vunpack.c.l.bf16 %v1571
  %v1828 = vunpack.c.l.bf16 %v1572
  %v1829 = vunpack.c.l.bf16 %v1573
  %v1830 = vunpack.c.l.bf16 %v1574
  %v1831 = vunpack.c.l.bf16 %v1575
  %v1832 = vunpack.c.l.bf16 %v1576
  %v1833 = vunpack.c.l.bf16 %v1577
  %v1834 = vunpack.c.l.bf16 %v1578
  %v1835 = vunpack.c.l.bf16 %v1579
  %v1836 = vunpack.c.l.bf16 %v1580
  %v1837 = vunpack.c.l.bf16 %v1581
  %v1838 = vunpack.c.l.bf16 %v1582
  %v1839 = vunpack.c.l.bf16 %v1583
  %v1840 = vunpack.c.l.bf16 %v1584
  %v1841 = vunpack.c.l.bf16 %v1585
  %v1842 = vunpack.c.l.bf16 %v1586
  %v1843 = vunpack.c.l.bf16 %v1587
  %v1844 = vunpack.c.l.bf16 %v1588
  %v1845 = vunpack.c.l.bf16 %v1589
  %v1846 = vunpack.c.l.bf16 %v1590
  %v1847 = vunpack.c.l.bf16 %v1591
  %v1848 = vunpack.c.l.bf16 %v1592
  %v1849 = vunpack.c.l.bf16 %v1593
  %v1850 = vunpack.c.l.bf16 %v1594
  %v1851 = vunpack.c.l.bf16 %v1595
  %v1852 = vunpack.c.l.bf16 %v1596
  %v1853 = vunpack.c.l.bf16 %v1597
  %v1854 = vunpack.c.l.bf16 %v1598
  %v1855 = vunpack.c.l.bf16 %v1599
  %v1856 = vunpack.c.l.bf16 %v1600
  %v1857 = vunpack.c.l.bf16 %v1601
  %v1858 = vunpack.c.l.bf16 %v1602
  %v1859 = vunpack.c.l.bf16 %v1603
  %v1860 = vunpack.c.l.bf16 %v1604
  %v1861 = vunpack.c.l.bf16 %v1605
  %v1862 = vunpack.c.l.bf16 %v1606
  %v1863 = vunpack.c.l.bf16 %v1607
  %v1864 = vunpack.c.l.bf16 %v1608
  %v1865 = vunpack.c.l.bf16 %v1609
  %v1866 = vunpack.c.l.bf16 %v1610
  %v1867 = vunpack.c.l.bf16 %v1611
  %v1868 = vunpack.c.l.bf16 %v1612
  %v1869 = vunpack.c.l.bf16 %v1613
  %v1870 = vunpack.c.l.bf16 %v1614
  %v1871 = vunpack.c.l.bf16 %v1615
  %v1872 = vunpack.c.l.bf16 %v1616
  %v1873 = vunpack.c.l.bf16 %v1617
  %v1874 = vunpack.c.l.bf16 %v1618
  %v1875 = vunpack.c.l.bf16 %v1619
  %v1876 = vunpack.c.l.bf16 %v1620
  %v1877 = vunpack.c.l.bf16 %v1621
  %v1878 = vunpack.c.l.bf16 %v1622
  %v1879 = vunpack.c.l.bf16 %v1623
  %v1880 = vunpack.c.l.bf16 %v1624
  %v1881 = vunpack.c.l.bf16 %v1625
  %v1882 = vunpack.c.l.bf16 %v1626
  %v1883 = vunpack.c.l.bf16 %v1627
  %v1884 = vunpack.c.l.bf16 %v1628
  %v1885 = vunpack.c.l.bf16 %v1629
  %v1886 = vunpack.c.l.bf16 %v1630
  %v1887 = vunpack.c.l.bf16 %v1631
  %v1888 = vunpack.c.l.bf16 %v1632
  %v1889 = vunpack.c.l.bf16 %v1633
  %v1890 = vunpack.c.l.bf16 %v1634
  %v1891 = vunpack.c.l.bf16 %v1635
  %v1892 = vunpack.c.l.bf16 %v1636
  %v1893 = vunpack.c.l.bf16 %v1637
  %v1894 = vunpack.c.l.bf16 %v1638
  %v1895 = vunpack.c.l.bf16 %v1639
  %v1896 = vunpack.c.l.bf16 %v1640
  %v1897 = vunpack.c.l.bf16 %v1641
  %v1898 = vunpack.c.l.bf16 %v1642
  %v1899 = vunpack.c.l.bf16 %v1643
  %v1900 = vunpack.c.l.bf16 %v1644
  %v1901 = vunpack.c.l.bf16 %v1645
  %v1902 = vunpack.c.l.bf16 %v1646
  %v1903 = vunpack.c.l.bf16 %v1647
  %v1904 = vunpack.c.l.bf16 %v1648
  %v1905 = vunpack.c.l.bf16 %v1649
  %v1906 = vunpack.c.l.bf16 %v1650
  %v1907 = vunpack.c.l.bf16 %v1651
  %v1908 = vunpack.c.l.bf16 %v1652
  %v1909 = vunpack.c.l.bf16 %v1653
  %v1910 = vunpack.c.l.bf16 %v1654
  %v1911 = vunpack.c.l.bf16 %v1655
  %v1912 = vunpack.c.l.bf16 %v1656
  %v1913 = vunpack.c.l.bf16 %v1657
  %v1914 = vunpack.c.l.bf16 %v1658
  %v1915 = vunpack.c.l.bf16 %v1659
  %v1916 = vunpack.c.l.bf16 %v1660
  %v1917 = vunpack.c.l.bf16 %v1661
  %v1918 = vunpack.c.l.bf16 %v1662
  %v1919 = vunpack.c.l.bf16 %v1663
  %v1920 = vunpack.c.l.bf16 %v1664
  %v1921 = vunpack.c.l.bf16 %v1665
  %v1922 = vunpack.c.l.bf16 %v1666
  %v1923 = vunpack.c.l.bf16 %v1667
  %v1924 = vunpack.c.l.bf16 %v1668
  %v1925 = vunpack.c.l.bf16 %v1669
  %v1926 = vunpack.c.l.bf16 %v1670
  %v1927 = vunpack.c.l.bf16 %v1671
  %v1928 = vunpack.c.l.bf16 %v1672
  %v1929 = vunpack.c.l.bf16 %v1673
  %v1930 = vunpack.c.l.bf16 %v1674
  %v1931 = vunpack.c.l.bf16 %v1675
  %v1932 = vunpack.c.l.bf16 %v1676
  %v1933 = vunpack.c.l.bf16 %v1677
  %v1934 = vunpack.c.l.bf16 %v1678
  %v1935 = vunpack.c.l.bf16 %v1679
  %v1936 = vunpack.c.l.bf16 %v1680
  %v1937 = vunpack.c.l.bf16 %v1681
  %v1938 = vunpack.c.l.bf16 %v1682
  %v1939 = vunpack.c.l.bf16 %v1683
  %v1940 = vunpack.c.l.bf16 %v1684
  %v1941 = vunpack.c.l.bf16 %v1685
  %v1942 = vunpack.c.l.bf16 %v1686
  %v1943 = vunpack.c.l.bf16 %v1687
  %v1944 = vunpack.c.l.bf16 %v1688
  %v1945 = vunpack.c.l.bf16 %v1689
  %v1946 = vunpack.c.l.bf16 %v1690
  %v1947 = vunpack.c.l.bf16 %v1691
  %v1948 = vunpack.c.l.bf16 %v1692
  %v1949 = vunpack.c.l.bf16 %v1693
  %v1950 = vunpack.c.l.bf16 %v1694
  %v1951 = vunpack.c.l.bf16 %v1695
  %v1952 = vunpack.c.l.bf16 %v1696
  %v1953 = vunpack.c.l.bf16 %v1697
  %v1954 = vunpack.c.l.bf16 %v1698
  %v1955 = vunpack.c.l.bf16 %v1699
  %v1956 = vunpack.c.l.bf16 %v1700
  %v1957 = vunpack.c.l.bf16 %v1701
  %v1958 = vunpack.c.l.bf16 %v1702
  %v1959 = vunpack.c.l.bf16 %v1703
  %v1960 = vunpack.c.l.bf16 %v1704
  %v1961 = vunpack.c.l.bf16 %v1705
  %v1962 = vunpack.c.l.bf16 %v1706
  %v1963 = vunpack.c.l.bf16 %v1707
  %v1964 = vunpack.c.l.bf16 %v1708
  %v1965 = vunpack.c.l.bf16 %v1709
  %v1966 = vunpack.c.l.bf16 %v1710
  %v1967 = vunpack.c.l.bf16 %v1711
  %v1968 = vunpack.c.l.bf16 %v1712
  %v1969 = vunpack.c.l.bf16 %v1713
  %v1970 = vunpack.c.l.bf16 %v1714
  %v1971 = vunpack.c.l.bf16 %v1715
  %v1972 = vunpack.c.l.bf16 %v1716
  %v1973 = vunpack.c.l.bf16 %v1717
  %v1974 = vunpack.c.l.bf16 %v1718
  %v1975 = vunpack.c.l.bf16 %v1719
  %v1976 = vunpack.c.l.bf16 %v1720
  %v1977 = vunpack.c.l.bf16 %v1721
  %v1978 = vunpack.c.l.bf16 %v1722
  %v1979 = vunpack.c.l.bf16 %v1723
  %v1980 = vunpack.c.l.bf16 %v1724
  %v1981 = vunpack.c.l.bf16 %v1725
  %v1982 = vunpack.c.l.bf16 %v1726
  %v1983 = vunpack.c.l.bf16 %v1727
  %v1984 = vunpack.c.l.bf16 %v1728
  %v1985 = vunpack.c.l.bf16 %v1729
  %v1986 = vunpack.c.l.bf16 %v1730
  %v1987 = vunpack.c.l.bf16 %v1731
  %v1988 = vunpack.c.l.bf16 %v1732
  %v1989 = vunpack.c.l.bf16 %v1733
  %v1990 = vunpack.c.l.bf16 %v1734
  %v1991 = vunpack.c.l.bf16 %v1735
  %v1992 = vunpack.c.l.bf16 %v1736
  %v1993 = vunpack.c.l.bf16 %v1737
  %v1994 = vunpack.c.l.bf16 %v1738
  %v1995 = vunpack.c.l.bf16 %v1739
  %v1996 = vunpack.c.l.bf16 %v1740
  %v1997 = vunpack.c.l.bf16 %v1741
  %v1998 = vunpack.c.l.bf16 %v1742
  %v1999 = vunpack.c.l.bf16 %v1743
  %v2000 = vunpack.c.l.bf16 %v1744
  %v2001 = vunpack.c.l.bf16 %v1745
  %v2002 = vunpack.c.l.bf16 %v1746
  %v2003 = vunpack.c.l.bf16 %v1747
  %v2004 = vunpack.c.l.bf16 %v1748
  %v2005 = vunpack.c.l.bf16 %v1749
  %v2006 = vunpack.c.l.bf16 %v1750
  %v2007 = vunpack.c.l.bf16 %v1751
  %v2008 = vunpack.c.l.bf16 %v1752
  %v2009 = vunpack.c.l.bf16 %v1753
  %v2010 = vunpack.c.l.bf16 %v1754
  %v2011 = vunpack.c.l.bf16 %v1755
  %v2012 = vunpack.c.l.bf16 %v1756
  %v2013 = vunpack.c.l.bf16 %v1757
  %v2014 = vunpack.c.l.bf16 %v1758
  %v2015 = vunpack.c.l.bf16 %v1759
  %v2016 = vunpack.c.l.bf16 %v1760
  %v2017 = vunpack.c.l.bf16 %v1761
  %v2018 = vunpack.c.l.bf16 %v1762
  %v2019 = vunpack.c.l.bf16 %v1763
  %v2020 = vunpack.c.l.bf16 %v1764
  %v2021 = vunpack.c.l.bf16 %v1765
  %v2022 = vunpack.c.l.bf16 %v1766
  %v2023 = vunpack.c.l.bf16 %v1767
  %v2024 = vunpack.c.l.bf16 %v1768
  %v2025 = vunpack.c.l.bf16 %v1769
  %v2026 = vunpack.c.l.bf16 %v1770
  %v2027 = vunpack.c.l.bf16 %v1771
  %v2028 = vunpack.c.l.bf16 %v1772
  %v2029 = vunpack.c.l.bf16 %v1773
  %v2030 = vunpack.c.l.bf16 %v1774
  %v2031 = vunpack.c.l.bf16 %v1775
  %v2032 = vunpack.c.l.bf16 %v1776
  %v2033 = vunpack.c.l.bf16 %v1777
  %v2034 = vunpack.c.l.bf16 %v1778
  %v2035 = vunpack.c.l.bf16 %v1779
  %v2036 = vunpack.c.l.bf16 %v1780
  %v2037 = vunpack.c.l.bf16 %v1781
  %v2038 = vunpack.c.l.bf16 %v1782
  %v2039 = vunpack.c.l.bf16 %v1783
  %v2040 = vld [vmem:[%s10] sm:$0x1]
  %v2042 = vlaneseq
  %v2043 = vshrl.u32 %v2042, 7
  %v2044 = vsub.s32 0, %v2043
  %v2045 = vrot.slane %v2040, %v2044
  %2047 = vmatprep.subr.mxu0 0.0
  %2048 = vmatpush1.msra.mxu0 %v1784
  %2049 = vmatprep.subr.mxu0 0.0
  %2050 = vmatpush1.msra.mxu0 %v1785
  %2051 = vmatprep.subr.mxu0 0.0
  %2052 = vmatpush1.msra.mxu0 %v1786
  %2053 = vmatprep.subr.mxu0 0.0
  %2054 = vmatpush1.msra.mxu0 %v1787
  %2055 = vmatprep.subr.mxu0 0.0
  %2056 = vmatpush1.msra.mxu0 %v1788
  %2057 = vmatprep.subr.mxu0 0.0
  %2058 = vmatpush1.msra.mxu0 %v1789
  %2059 = vmatprep.subr.mxu0 0.0
  %2060 = vmatpush1.msra.mxu0 %v1790
  %2061 = vmatprep.subr.mxu0 0.0
  %2062 = vmatpush1.msra.mxu0 %v1791
  %2063 = vmatprep.subr.mxu0 0.0
  %2064 = vmatpush1.msra.mxu0 %v1792
  %2065 = vmatprep.subr.mxu0 0.0
  %2066 = vmatpush1.msra.mxu0 %v1793
  %2067 = vmatprep.subr.mxu0 0.0
  %2068 = vmatpush1.msra.mxu0 %v1794
  %2069 = vmatprep.subr.mxu0 0.0
  %2070 = vmatpush1.msra.mxu0 %v1795
  %2071 = vmatprep.subr.mxu0 0.0
  %2072 = vmatpush1.msra.mxu0 %v1796
  %2073 = vmatprep.subr.mxu0 0.0
  %2074 = vmatpush1.msra.mxu0 %v1797
  %2075 = vmatprep.subr.mxu0 0.0
  %2076 = vmatpush1.msra.mxu0 %v1798
  %2077 = vmatprep.subr.mxu0 0.0
  %2078 = vmatpush1.msra.mxu0 %v1799
  %2079 = vmatprep.subr.mxu0 0.0
  %2080 = vmatpush1.msra.mxu0 %v1800
  %2081 = vmatprep.subr.mxu0 0.0
  %2082 = vmatpush1.msra.mxu0 %v1801
  %2083 = vmatprep.subr.mxu0 0.0
  %2084 = vmatpush1.msra.mxu0 %v1802
  %2085 = vmatprep.subr.mxu0 0.0
  %2086 = vmatpush1.msra.mxu0 %v1803
  %2087 = vmatprep.subr.mxu0 0.0
  %2088 = vmatpush1.msra.mxu0 %v1804
  %2089 = vmatprep.subr.mxu0 0.0
  %2090 = vmatpush1.msra.mxu0 %v1805
  %2091 = vmatprep.subr.mxu0 0.0
  %2092 = vmatpush1.msra.mxu0 %v1806
  %2093 = vmatprep.subr.mxu0 0.0
  %2094 = vmatpush1.msra.mxu0 %v1807
  %2095 = vmatprep.subr.mxu0 0.0
  %2096 = vmatpush1.msra.mxu0 %v1808
  %2097 = vmatprep.subr.mxu0 0.0
  %2098 = vmatpush1.msra.mxu0 %v1809
  %2099 = vmatprep.subr.mxu0 0.0
  %2100 = vmatpush1.msra.mxu0 %v1810
  %2101 = vmatprep.subr.mxu0 0.0
  %2102 = vmatpush1.msra.mxu0 %v1811
  %2103 = vmatprep.subr.mxu0 0.0
  %2104 = vmatpush1.msra.mxu0 %v1812
  %2105 = vmatprep.subr.mxu0 0.0
  %2106 = vmatpush1.msra.mxu0 %v1813
  %2107 = vmatprep.subr.mxu0 0.0
  %2108 = vmatpush1.msra.mxu0 %v1814
  %2109 = vmatprep.subr.mxu0 0.0
  %2110 = vmatpush1.msra.mxu0 %v1815
  %2111 = vmatprep.mubr.f32.mxu0 %v1497
  %2112 = vmatmul.mubr.f32.gmra.mrb[0].mxu0 %v1496
  %v2113 = vpop.f32.mrb[0].mxu0
  %v2114 = vadd.f32 %v2045, %v2113
  %v2115 = vpop.f32.mrb[0].mxu0
  %2116 = vmatprep.mubr.f32.mxu0 %v1513
  %2117 = vmatmul.mubr.f32.gmra.mrb[0].mxu0 %v1512
  %v2118 = vpop.f32.mrb[0].mxu0
  %v2119 = vadd.f32 %v2045, %v2118
  %v2120 = vpop.f32.mrb[0].mxu0
  %2121 = vdwg.mxu0
  %2122 = vmatprep.subr.mxu0 0.0
  %2123 = vmatpush1.msra.mxu0 %v1816
  %2124 = vmatprep.subr.mxu0 0.0
  %2125 = vmatpush1.msra.mxu0 %v1817
  %2126 = vmatprep.subr.mxu0 0.0
  %2127 = vmatpush1.msra.mxu0 %v1818
  %2128 = vmatprep.subr.mxu0 0.0
  %2129 = vmatpush1.msra.mxu0 %v1819
  %2130 = vmatprep.subr.mxu0 0.0
  %2131 = vmatpush1.msra.mxu0 %v1820
  %2132 = vmatprep.subr.mxu0 0.0
  %2133 = vmatpush1.msra.mxu0 %v1821
  %2134 = vmatprep.subr.mxu0 0.0
  %2135 = vmatpush1.msra.mxu0 %v1822
  %2136 = vmatprep.subr.mxu0 0.0
  %2137 = vmatpush1.msra.mxu0 %v1823
  %2138 = vmatprep.subr.mxu0 0.0
  %2139 = vmatpush1.msra.mxu0 %v1824
  %2140 = vmatprep.subr.mxu0 0.0
  %2141 = vmatpush1.msra.mxu0 %v1825
  %2142 = vmatprep.subr.mxu0 0.0
  %2143 = vmatpush1.msra.mxu0 %v1826
  %2144 = vmatprep.subr.mxu0 0.0
  %2145 = vmatpush1.msra.mxu0 %v1827
  %2146 = vmatprep.subr.mxu0 0.0
  %2147 = vmatpush1.msra.mxu0 %v1828
  %2148 = vmatprep.subr.mxu0 0.0
  %2149 = vmatpush1.msra.mxu0 %v1829
  %2150 = vmatprep.subr.mxu0 0.0
  %2151 = vmatpush1.msra.mxu0 %v1830
  %2152 = vmatprep.subr.mxu0 0.0
  %2153 = vmatpush1.msra.mxu0 %v1831
  %2154 = vmatprep.subr.mxu0 0.0
  %2155 = vmatpush1.msra.mxu0 %v1832
  %2156 = vmatprep.subr.mxu0 0.0
  %2157 = vmatpush1.msra.mxu0 %v1833
  %2158 = vmatprep.subr.mxu0 0.0
  %2159 = vmatpush1.msra.mxu0 %v1834
  %2160 = vmatprep.subr.mxu0 0.0
  %2161 = vmatpush1.msra.mxu0 %v1835
  %2162 = vmatprep.subr.mxu0 0.0
  %2163 = vmatpush1.msra.mxu0 %v1836
  %2164 = vmatprep.subr.mxu0 0.0
  %2165 = vmatpush1.msra.mxu0 %v1837
  %2166 = vmatprep.subr.mxu0 0.0
  %2167 = vmatpush1.msra.mxu0 %v1838
  %2168 = vmatprep.subr.mxu0 0.0
  %2169 = vmatpush1.msra.mxu0 %v1839
  %2170 = vmatprep.subr.mxu0 0.0
  %2171 = vmatpush1.msra.mxu0 %v1840
  %2172 = vmatprep.subr.mxu0 0.0
  %2173 = vmatpush1.msra.mxu0 %v1841
  %2174 = vmatprep.subr.mxu0 0.0
  %2175 = vmatpush1.msra.mxu0 %v1842
  %2176 = vmatprep.subr.mxu0 0.0
  %2177 = vmatpush1.msra.mxu0 %v1843
  %2178 = vmatprep.subr.mxu0 0.0
  %2179 = vmatpush1.msra.mxu0 %v1844
  %2180 = vmatprep.subr.mxu0 0.0
  %2181 = vmatpush1.msra.mxu0 %v1845
  %2182 = vmatprep.subr.mxu0 0.0
  %2183 = vmatpush1.msra.mxu0 %v1846
  %2184 = vmatprep.subr.mxu0 0.0
  %2185 = vmatpush1.msra.mxu0 %v1847
  %2186 = vmatprep.mubr.f32.mxu0 %v1499
  %2187 = vmatmul.mubr.f32.gmra.mrb[0].mxu0 %v1498
  %v2188 = vpop.f32.mrb[0].mxu0
  %v2189 = vadd.f32 %v2114, %v2188
  %v2190 = vpop.f32.mrb[0].mxu0
  %2191 = vmatprep.mubr.f32.mxu0 %v1515
  %2192 = vmatmul.mubr.f32.gmra.mrb[0].mxu0 %v1514
  %v2193 = vpop.f32.mrb[0].mxu0
  %v2194 = vadd.f32 %v2119, %v2193
  %v2195 = vpop.f32.mrb[0].mxu0
  %2196 = vdwg.mxu0
  %2197 = vmatprep.subr.mxu0 0.0
  %2198 = vmatpush1.msra.mxu0 %v1848
  %2199 = vmatprep.subr.mxu0 0.0
  %2200 = vmatpush1.msra.mxu0 %v1849
  %2201 = vmatprep.subr.mxu0 0.0
  %2202 = vmatpush1.msra.mxu0 %v1850
  %2203 = vmatprep.subr.mxu0 0.0
  %2204 = vmatpush1.msra.mxu0 %v1851
  %2205 = vmatprep.subr.mxu0 0.0
  %2206 = vmatpush1.msra.mxu0 %v1852
  %2207 = vmatprep.subr.mxu0 0.0
  %2208 = vmatpush1.msra.mxu0 %v1853
  %2209 = vmatprep.subr.mxu0 0.0
  %2210 = vmatpush1.msra.mxu0 %v1854
  %2211 = vmatprep.subr.mxu0 0.0
  %2212 = vmatpush1.msra.mxu0 %v1855
  %2213 = vmatprep.subr.mxu0 0.0
  %2214 = vmatpush1.msra.mxu0 %v1856
  %2215 = vmatprep.subr.mxu0 0.0
  %2216 = vmatpush1.msra.mxu0 %v1857
  %2217 = vmatprep.subr.mxu0 0.0
  %2218 = vmatpush1.msra.mxu0 %v1858
  %2219 = vmatprep.subr.mxu0 0.0
  %2220 = vmatpush1.msra.mxu0 %v1859
  %2221 = vmatprep.subr.mxu0 0.0
  %2222 = vmatpush1.msra.mxu0 %v1860
  %2223 = vmatprep.subr.mxu0 0.0
  %2224 = vmatpush1.msra.mxu0 %v1861
  %2225 = vmatprep.subr.mxu0 0.0
  %2226 = vmatpush1.msra.mxu0 %v1862
  %2227 = vmatprep.subr.mxu0 0.0
  %2228 = vmatpush1.msra.mxu0 %v1863
  %2229 = vmatprep.subr.mxu0 0.0
  %2230 = vmatpush1.msra.mxu0 %v1864
  %2231 = vmatprep.subr.mxu0 0.0
  %2232 = vmatpush1.msra.mxu0 %v1865
  %2233 = vmatprep.subr.mxu0 0.0
  %2234 = vmatpush1.msra.mxu0 %v1866
  %2235 = vmatprep.subr.mxu0 0.0
  %2236 = vmatpush1.msra.mxu0 %v1867
  %2237 = vmatprep.subr.mxu0 0.0
  %2238 = vmatpush1.msra.mxu0 %v1868
  %2239 = vmatprep.subr.mxu0 0.0
  %2240 = vmatpush1.msra.mxu0 %v1869
  %2241 = vmatprep.subr.mxu0 0.0
  %2242 = vmatpush1.msra.mxu0 %v1870
  %2243 = vmatprep.subr.mxu0 0.0
  %2244 = vmatpush1.msra.mxu0 %v1871
  %2245 = vmatprep.subr.mxu0 0.0
  %2246 = vmatpush1.msra.mxu0 %v1872
  %2247 = vmatprep.subr.mxu0 0.0
  %2248 = vmatpush1.msra.mxu0 %v1873
  %2249 = vmatprep.subr.mxu0 0.0
  %2250 = vmatpush1.msra.mxu0 %v1874
  %2251 = vmatprep.subr.mxu0 0.0
  %2252 = vmatpush1.msra.mxu0 %v1875
  %2253 = vmatprep.subr.mxu0 0.0
  %2254 = vmatpush1.msra.mxu0 %v1876
  %2255 = vmatprep.subr.mxu0 0.0
  %2256 = vmatpush1.msra.mxu0 %v1877
  %2257 = vmatprep.subr.mxu0 0.0
  %2258 = vmatpush1.msra.mxu0 %v1878
  %2259 = vmatprep.subr.mxu0 0.0
  %2260 = vmatpush1.msra.mxu0 %v1879
  %2261 = vmatprep.mubr.f32.mxu0 %v1501
  %2262 = vmatmul.mubr.f32.gmra.mrb[0].mxu0 %v1500
  %v2263 = vpop.f32.mrb[0].mxu0
  %v2264 = vadd.f32 %v2189, %v2263
  %v2265 = vpop.f32.mrb[0].mxu0
  %2266 = vmatprep.mubr.f32.mxu0 %v1517
  %2267 = vmatmul.mubr.f32.gmra.mrb[0].mxu0 %v1516
  %v2268 = vpop.f32.mrb[0].mxu0
  %v2269 = vadd.f32 %v2194, %v2268
  %v2270 = vpop.f32.mrb[0].mxu0
  %2271 = vdwg.mxu0
  %2272 = vmatprep.subr.mxu0 0.0
  %2273 = vmatpush1.msra.mxu0 %v1880
  %2274 = vmatprep.subr.mxu0 0.0
  %2275 = vmatpush1.msra.mxu0 %v1881
  %2276 = vmatprep.subr.mxu0 0.0
  %2277 = vmatpush1.msra.mxu0 %v1882
  %2278 = vmatprep.subr.mxu0 0.0
  %2279 = vmatpush1.msra.mxu0 %v1883
  %2280 = vmatprep.subr.mxu0 0.0
  %2281 = vmatpush1.msra.mxu0 %v1884
  %2282 = vmatprep.subr.mxu0 0.0
  %2283 = vmatpush1.msra.mxu0 %v1885
  %2284 = vmatprep.subr.mxu0 0.0
  %2285 = vmatpush1.msra.mxu0 %v1886
  %2286 = vmatprep.subr.mxu0 0.0
  %2287 = vmatpush1.msra.mxu0 %v1887
  %2288 = vmatprep.subr.mxu0 0.0
  %2289 = vmatpush1.msra.mxu0 %v1888
  %2290 = vmatprep.subr.mxu0 0.0
  %2291 = vmatpush1.msra.mxu0 %v1889
  %2292 = vmatprep.subr.mxu0 0.0
  %2293 = vmatpush1.msra.mxu0 %v1890
  %2294 = vmatprep.subr.mxu0 0.0
  %2295 = vmatpush1.msra.mxu0 %v1891
  %2296 = vmatprep.subr.mxu0 0.0
  %2297 = vmatpush1.msra.mxu0 %v1892
  %2298 = vmatprep.subr.mxu0 0.0
  %2299 = vmatpush1.msra.mxu0 %v1893
  %2300 = vmatprep.subr.mxu0 0.0
  %2301 = vmatpush1.msra.mxu0 %v1894
  %2302 = vmatprep.subr.mxu0 0.0
  %2303 = vmatpush1.msra.mxu0 %v1895
  %2304 = vmatprep.subr.mxu0 0.0
  %2305 = vmatpush1.msra.mxu0 %v1896
  %2306 = vmatprep.subr.mxu0 0.0
  %2307 = vmatpush1.msra.mxu0 %v1897
  %2308 = vmatprep.subr.mxu0 0.0
  %2309 = vmatpush1.msra.mxu0 %v1898
  %2310 = vmatprep.subr.mxu0 0.0
  %2311 = vmatpush1.msra.mxu0 %v1899
  %2312 = vmatprep.subr.mxu0 0.0
  %2313 = vmatpush1.msra.mxu0 %v1900
  %2314 = vmatprep.subr.mxu0 0.0
  %2315 = vmatpush1.msra.mxu0 %v1901
  %2316 = vmatprep.subr.mxu0 0.0
  %2317 = vmatpush1.msra.mxu0 %v1902
  %2318 = vmatprep.subr.mxu0 0.0
  %2319 = vmatpush1.msra.mxu0 %v1903
  %2320 = vmatprep.subr.mxu0 0.0
  %2321 = vmatpush1.msra.mxu0 %v1904
  %2322 = vmatprep.subr.mxu0 0.0
  %2323 = vmatpush1.msra.mxu0 %v1905
  %2324 = vmatprep.subr.mxu0 0.0
  %2325 = vmatpush1.msra.mxu0 %v1906
  %2326 = vmatprep.subr.mxu0 0.0
  %2327 = vmatpush1.msra.mxu0 %v1907
  %2328 = vmatprep.subr.mxu0 0.0
  %2329 = vmatpush1.msra.mxu0 %v1908
  %2330 = vmatprep.subr.mxu0 0.0
  %2331 = vmatpush1.msra.mxu0 %v1909
  %2332 = vmatprep.subr.mxu0 0.0
  %2333 = vmatpush1.msra.mxu0 %v1910
  %2334 = vmatprep.subr.mxu0 0.0
  %2335 = vmatpush1.msra.mxu0 %v1911
  %2336 = vmatprep.mubr.f32.mxu0 %v1503
  %2337 = vmatmul.mubr.f32.gmra.mrb[0].mxu0 %v1502
  %v2338 = vpop.f32.mrb[0].mxu0
  %v2339 = vadd.f32 %v2264, %v2338
  %v2340 = vpop.f32.mrb[0].mxu0
  %2341 = vmatprep.mubr.f32.mxu0 %v1519
  %2342 = vmatmul.mubr.f32.gmra.mrb[0].mxu0 %v1518
  %v2343 = vpop.f32.mrb[0].mxu0
  %v2344 = vadd.f32 %v2269, %v2343
  %v2345 = vpop.f32.mrb[0].mxu0
  %2346 = vdwg.mxu0
  %2347 = vmatprep.subr.mxu0 0.0
  %2348 = vmatpush1.msra.mxu0 %v1912
  %2349 = vmatprep.subr.mxu0 0.0
  %2350 = vmatpush1.msra.mxu0 %v1913
  %2351 = vmatprep.subr.mxu0 0.0
  %2352 = vmatpush1.msra.mxu0 %v1914
  %2353 = vmatprep.subr.mxu0 0.0
  %2354 = vmatpush1.msra.mxu0 %v1915
  %2355 = vmatprep.subr.mxu0 0.0
  %2356 = vmatpush1.msra.mxu0 %v1916
  %2357 = vmatprep.subr.mxu0 0.0
  %2358 = vmatpush1.msra.mxu0 %v1917
  %2359 = vmatprep.subr.mxu0 0.0
  %2360 = vmatpush1.msra.mxu0 %v1918
  %2361 = vmatprep.subr.mxu0 0.0
  %2362 = vmatpush1.msra.mxu0 %v1919
  %2363 = vmatprep.subr.mxu0 0.0
  %2364 = vmatpush1.msra.mxu0 %v1920
  %2365 = vmatprep.subr.mxu0 0.0
  %2366 = vmatpush1.msra.mxu0 %v1921
  %2367 = vmatprep.subr.mxu0 0.0
  %2368 = vmatpush1.msra.mxu0 %v1922
  %2369 = vmatprep.subr.mxu0 0.0
  %2370 = vmatpush1.msra.mxu0 %v1923
  %2371 = vmatprep.subr.mxu0 0.0
  %2372 = vmatpush1.msra.mxu0 %v1924
  %2373 = vmatprep.subr.mxu0 0.0
  %2374 = vmatpush1.msra.mxu0 %v1925
  %2375 = vmatprep.subr.mxu0 0.0
  %2376 = vmatpush1.msra.mxu0 %v1926
  %2377 = vmatprep.subr.mxu0 0.0
  %2378 = vmatpush1.msra.mxu0 %v1927
  %2379 = vmatprep.subr.mxu0 0.0
  %2380 = vmatpush1.msra.mxu0 %v1928
  %2381 = vmatprep.subr.mxu0 0.0
  %2382 = vmatpush1.msra.mxu0 %v1929
  %2383 = vmatprep.subr.mxu0 0.0
  %2384 = vmatpush1.msra.mxu0 %v1930
  %2385 = vmatprep.subr.mxu0 0.0
  %2386 = vmatpush1.msra.mxu0 %v1931
  %2387 = vmatprep.subr.mxu0 0.0
  %2388 = vmatpush1.msra.mxu0 %v1932
  %2389 = vmatprep.subr.mxu0 0.0
  %2390 = vmatpush1.msra.mxu0 %v1933
  %2391 = vmatprep.subr.mxu0 0.0
  %2392 = vmatpush1.msra.mxu0 %v1934
  %2393 = vmatprep.subr.mxu0 0.0
  %2394 = vmatpush1.msra.mxu0 %v1935
  %2395 = vmatprep.subr.mxu0 0.0
  %2396 = vmatpush1.msra.mxu0 %v1936
  %2397 = vmatprep.subr.mxu0 0.0
  %2398 = vmatpush1.msra.mxu0 %v1937
  %2399 = vmatprep.subr.mxu0 0.0
  %2400 = vmatpush1.msra.mxu0 %v1938
  %2401 = vmatprep.subr.mxu0 0.0
  %2402 = vmatpush1.msra.mxu0 %v1939
  %2403 = vmatprep.subr.mxu0 0.0
  %2404 = vmatpush1.msra.mxu0 %v1940
  %2405 = vmatprep.subr.mxu0 0.0
  %2406 = vmatpush1.msra.mxu0 %v1941
  %2407 = vmatprep.subr.mxu0 0.0
  %2408 = vmatpush1.msra.mxu0 %v1942
  %2409 = vmatprep.subr.mxu0 0.0
  %2410 = vmatpush1.msra.mxu0 %v1943
  %2411 = vmatprep.mubr.f32.mxu0 %v1505
  %2412 = vmatmul.mubr.f32.gmra.mrb[0].mxu0 %v1504
  %v2413 = vpop.f32.mrb[0].mxu0
  %v2414 = vadd.f32 %v2339, %v2413
  %v2415 = vpop.f32.mrb[0].mxu0
  %2416 = vmatprep.mubr.f32.mxu0 %v1521
  %2417 = vmatmul.mubr.f32.gmra.mrb[0].mxu0 %v1520
  %v2418 = vpop.f32.mrb[0].mxu0
  %v2419 = vadd.f32 %v2344, %v2418
  %v2420 = vpop.f32.mrb[0].mxu0
  %2421 = vdwg.mxu0
  %2422 = vmatprep.subr.mxu0 0.0
  %2423 = vmatpush1.msra.mxu0 %v1944
  %2424 = vmatprep.subr.mxu0 0.0
  %2425 = vmatpush1.msra.mxu0 %v1945
  %2426 = vmatprep.subr.mxu0 0.0
  %2427 = vmatpush1.msra.mxu0 %v1946
  %2428 = vmatprep.subr.mxu0 0.0
  %2429 = vmatpush1.msra.mxu0 %v1947
  %2430 = vmatprep.subr.mxu0 0.0
  %2431 = vmatpush1.msra.mxu0 %v1948
  %2432 = vmatprep.subr.mxu0 0.0
  %2433 = vmatpush1.msra.mxu0 %v1949
  %2434 = vmatprep.subr.mxu0 0.0
  %2435 = vmatpush1.msra.mxu0 %v1950
  %2436 = vmatprep.subr.mxu0 0.0
  %2437 = vmatpush1.msra.mxu0 %v1951
  %2438 = vmatprep.subr.mxu0 0.0
  %2439 = vmatpush1.msra.mxu0 %v1952
  %2440 = vmatprep.subr.mxu0 0.0
  %2441 = vmatpush1.msra.mxu0 %v1953
  %2442 = vmatprep.subr.mxu0 0.0
  %2443 = vmatpush1.msra.mxu0 %v1954
  %2444 = vmatprep.subr.mxu0 0.0
  %2445 = vmatpush1.msra.mxu0 %v1955
  %2446 = vmatprep.subr.mxu0 0.0
  %2447 = vmatpush1.msra.mxu0 %v1956
  %2448 = vmatprep.subr.mxu0 0.0
  %2449 = vmatpush1.msra.mxu0 %v1957
  %2450 = vmatprep.subr.mxu0 0.0
  %2451 = vmatpush1.msra.mxu0 %v1958
  %2452 = vmatprep.subr.mxu0 0.0
  %2453 = vmatpush1.msra.mxu0 %v1959
  %2454 = vmatprep.subr.mxu0 0.0
  %2455 = vmatpush1.msra.mxu0 %v1960
  %2456 = vmatprep.subr.mxu0 0.0
  %2457 = vmatpush1.msra.mxu0 %v1961
  %2458 = vmatprep.subr.mxu0 0.0
  %2459 = vmatpush1.msra.mxu0 %v1962
  %2460 = vmatprep.subr.mxu0 0.0
  %2461 = vmatpush1.msra.mxu0 %v1963
  %2462 = vmatprep.subr.mxu0 0.0
  %2463 = vmatpush1.msra.mxu0 %v1964
  %2464 = vmatprep.subr.mxu0 0.0
  %2465 = vmatpush1.msra.mxu0 %v1965
  %2466 = vmatprep.subr.mxu0 0.0
  %2467 = vmatpush1.msra.mxu0 %v1966
  %2468 = vmatprep.subr.mxu0 0.0
  %2469 = vmatpush1.msra.mxu0 %v1967
  %2470 = vmatprep.subr.mxu0 0.0
  %2471 = vmatpush1.msra.mxu0 %v1968
  %2472 = vmatprep.subr.mxu0 0.0
  %2473 = vmatpush1.msra.mxu0 %v1969
  %2474 = vmatprep.subr.mxu0 0.0
  %2475 = vmatpush1.msra.mxu0 %v1970
  %2476 = vmatprep.subr.mxu0 0.0
  %2477 = vmatpush1.msra.mxu0 %v1971
  %2478 = vmatprep.subr.mxu0 0.0
  %2479 = vmatpush1.msra.mxu0 %v1972
  %2480 = vmatprep.subr.mxu0 0.0
  %2481 = vmatpush1.msra.mxu0 %v1973
  %2482 = vmatprep.subr.mxu0 0.0
  %2483 = vmatpush1.msra.mxu0 %v1974
  %2484 = vmatprep.subr.mxu0 0.0
  %2485 = vmatpush1.msra.mxu0 %v1975
  %2486 = vmatprep.mubr.f32.mxu0 %v1507
  %2487 = vmatmul.mubr.f32.gmra.mrb[0].mxu0 %v1506
  %v2488 = vpop.f32.mrb[0].mxu0
  %v2489 = vadd.f32 %v2414, %v2488
  %v2490 = vpop.f32.mrb[0].mxu0
  %2491 = vmatprep.mubr.f32.mxu0 %v1523
  %2492 = vmatmul.mubr.f32.gmra.mrb[0].mxu0 %v1522
  %v2493 = vpop.f32.mrb[0].mxu0
  %v2494 = vadd.f32 %v2419, %v2493
  %v2495 = vpop.f32.mrb[0].mxu0
  %2496 = vdwg.mxu0
  %2497 = vmatprep.subr.mxu0 0.0
  %2498 = vmatpush1.msra.mxu0 %v1976
  %2499 = vmatprep.subr.mxu0 0.0
  %2500 = vmatpush1.msra.mxu0 %v1977
  %2501 = vmatprep.subr.mxu0 0.0
  %2502 = vmatpush1.msra.mxu0 %v1978
  %2503 = vmatprep.subr.mxu0 0.0
  %2504 = vmatpush1.msra.mxu0 %v1979
  %2505 = vmatprep.subr.mxu0 0.0
  %2506 = vmatpush1.msra.mxu0 %v1980
  %2507 = vmatprep.subr.mxu0 0.0
  %2508 = vmatpush1.msra.mxu0 %v1981
  %2509 = vmatprep.subr.mxu0 0.0
  %2510 = vmatpush1.msra.mxu0 %v1982
  %2511 = vmatprep.subr.mxu0 0.0
  %2512 = vmatpush1.msra.mxu0 %v1983
  %2513 = vmatprep.subr.mxu0 0.0
  %2514 = vmatpush1.msra.mxu0 %v1984
  %2515 = vmatprep.subr.mxu0 0.0
  %2516 = vmatpush1.msra.mxu0 %v1985
  %2517 = vmatprep.subr.mxu0 0.0
  %2518 = vmatpush1.msra.mxu0 %v1986
  %2519 = vmatprep.subr.mxu0 0.0
  %2520 = vmatpush1.msra.mxu0 %v1987
  %2521 = vmatprep.subr.mxu0 0.0
  %2522 = vmatpush1.msra.mxu0 %v1988
  %2523 = vmatprep.subr.mxu0 0.0
  %2524 = vmatpush1.msra.mxu0 %v1989
  %2525 = vmatprep.subr.mxu0 0.0
  %2526 = vmatpush1.msra.mxu0 %v1990
  %2527 = vmatprep.subr.mxu0 0.0
  %2528 = vmatpush1.msra.mxu0 %v1991
  %2529 = vmatprep.subr.mxu0 0.0
  %2530 = vmatpush1.msra.mxu0 %v1992
  %2531 = vmatprep.subr.mxu0 0.0
  %2532 = vmatpush1.msra.mxu0 %v1993
  %2533 = vmatprep.subr.mxu0 0.0
  %2534 = vmatpush1.msra.mxu0 %v1994
  %2535 = vmatprep.subr.mxu0 0.0
  %2536 = vmatpush1.msra.mxu0 %v1995
  %2537 = vmatprep.subr.mxu0 0.0
  %2538 = vmatpush1.msra.mxu0 %v1996
  %2539 = vmatprep.subr.mxu0 0.0
  %2540 = vmatpush1.msra.mxu0 %v1997
  %2541 = vmatprep.subr.mxu0 0.0
  %2542 = vmatpush1.msra.mxu0 %v1998
  %2543 = vmatprep.subr.mxu0 0.0
  %2544 = vmatpush1.msra.mxu0 %v1999
  %2545 = vmatprep.subr.mxu0 0.0
  %2546 = vmatpush1.msra.mxu0 %v2000
  %2547 = vmatprep.subr.mxu0 0.0
  %2548 = vmatpush1.msra.mxu0 %v2001
  %2549 = vmatprep.subr.mxu0 0.0
  %2550 = vmatpush1.msra.mxu0 %v2002
  %2551 = vmatprep.subr.mxu0 0.0
  %2552 = vmatpush1.msra.mxu0 %v2003
  %2553 = vmatprep.subr.mxu0 0.0
  %2554 = vmatpush1.msra.mxu0 %v2004
  %2555 = vmatprep.subr.mxu0 0.0
  %2556 = vmatpush1.msra.mxu0 %v2005
  %2557 = vmatprep.subr.mxu0 0.0
  %2558 = vmatpush1.msra.mxu0 %v2006
  %2559 = vmatprep.subr.mxu0 0.0
  %2560 = vmatpush1.msra.mxu0 %v2007
  %2561 = vmatprep.mubr.f32.mxu0 %v1509
  %2562 = vmatmul.mubr.f32.gmra.mrb[0].mxu0 %v1508
  %v2563 = vpop.f32.mrb[0].mxu0
  %v2564 = vadd.f32 %v2489, %v2563
  %v2565 = vpop.f32.mrb[0].mxu0
  %2566 = vmatprep.mubr.f32.mxu0 %v1525
  %2567 = vmatmul.mubr.f32.gmra.mrb[0].mxu0 %v1524
  %v2568 = vpop.f32.mrb[0].mxu0
  %v2569 = vadd.f32 %v2494, %v2568
  %v2570 = vpop.f32.mrb[0].mxu0
  %2571 = vdwg.mxu0
  %2572 = vmatprep.subr.mxu0 0.0
  %2573 = vmatpush1.msra.mxu0 %v2008
  %2574 = vmatprep.subr.mxu0 0.0
  %2575 = vmatpush1.msra.mxu0 %v2009
  %2576 = vmatprep.subr.mxu0 0.0
  %2577 = vmatpush1.msra.mxu0 %v2010
  %2578 = vmatprep.subr.mxu0 0.0
  %2579 = vmatpush1.msra.mxu0 %v2011
  %2580 = vmatprep.subr.mxu0 0.0
  %2581 = vmatpush1.msra.mxu0 %v2012
  %2582 = vmatprep.subr.mxu0 0.0
  %2583 = vmatpush1.msra.mxu0 %v2013
  %2584 = vmatprep.subr.mxu0 0.0
  %2585 = vmatpush1.msra.mxu0 %v2014
  %2586 = vmatprep.subr.mxu0 0.0
  %2587 = vmatpush1.msra.mxu0 %v2015
  %2588 = vmatprep.subr.mxu0 0.0
  %2589 = vmatpush1.msra.mxu0 %v2016
  %2590 = vmatprep.subr.mxu0 0.0
  %2591 = vmatpush1.msra.mxu0 %v2017
  %2592 = vmatprep.subr.mxu0 0.0
  %2593 = vmatpush1.msra.mxu0 %v2018
  %2594 = vmatprep.subr.mxu0 0.0
  %2595 = vmatpush1.msra.mxu0 %v2019
  %2596 = vmatprep.subr.mxu0 0.0
  %2597 = vmatpush1.msra.mxu0 %v2020
  %2598 = vmatprep.subr.mxu0 0.0
  %2599 = vmatpush1.msra.mxu0 %v2021
  %2600 = vmatprep.subr.mxu0 0.0
  %2601 = vmatpush1.msra.mxu0 %v2022
  %2602 = vmatprep.subr.mxu0 0.0
  %2603 = vmatpush1.msra.mxu0 %v2023
  %2604 = vmatprep.subr.mxu0 0.0
  %2605 = vmatpush1.msra.mxu0 %v2024
  %2606 = vmatprep.subr.mxu0 0.0
  %2607 = vmatpush1.msra.mxu0 %v2025
  %2608 = vmatprep.subr.mxu0 0.0
  %2609 = vmatpush1.msra.mxu0 %v2026
  %2610 = vmatprep.subr.mxu0 0.0
  %2611 = vmatpush1.msra.mxu0 %v2027
  %2612 = vmatprep.subr.mxu0 0.0
  %2613 = vmatpush1.msra.mxu0 %v2028
  %2614 = vmatprep.subr.mxu0 0.0
  %2615 = vmatpush1.msra.mxu0 %v2029
  %2616 = vmatprep.subr.mxu0 0.0
  %2617 = vmatpush1.msra.mxu0 %v2030
  %2618 = vmatprep.subr.mxu0 0.0
  %2619 = vmatpush1.msra.mxu0 %v2031
  %2620 = vmatprep.subr.mxu0 0.0
  %2621 = vmatpush1.msra.mxu0 %v2032
  %2622 = vmatprep.subr.mxu0 0.0
  %2623 = vmatpush1.msra.mxu0 %v2033
  %2624 = vmatprep.subr.mxu0 0.0
  %2625 = vmatpush1.msra.mxu0 %v2034
  %2626 = vmatprep.subr.mxu0 0.0
  %2627 = vmatpush1.msra.mxu0 %v2035
  %2628 = vmatprep.subr.mxu0 0.0
  %2629 = vmatpush1.msra.mxu0 %v2036
  %2630 = vmatprep.subr.mxu0 0.0
  %2631 = vmatpush1.msra.mxu0 %v2037
  %2632 = vmatprep.subr.mxu0 0.0
  %2633 = vmatpush1.msra.mxu0 %v2038
  %2634 = vmatprep.subr.mxu0 0.0
  %2635 = vmatpush1.msra.mxu0 %v2039
  %2636 = vmatprep.mubr.f32.mxu0 %v1511
  %2637 = vmatmul.mubr.f32.gmra.mrb[0].mxu0 %v1510
  %v2638 = vpop.f32.mrb[0].mxu0
  %v2639 = vadd.f32 %v2564, %v2638
  %v2640 = vpop.f32.mrb[0].mxu0
  %2641 = vmatprep.mubr.f32.mxu0 %v1527
  %2642 = vmatmul.mubr.f32.gmra.mrb[0].mxu0 %v1526
  %v2643 = vpop.f32.mrb[0].mxu0
  %v2644 = vadd.f32 %v2569, %v2643
  %v2645 = vpop.f32.mrb[0].mxu0
  %2646 = vdwg.mxu0
  %v2647 = vadd.f32 %v740, %v2639
  %v2648 = vadd.f32 %v741, %v2644
  %v2649 = vld [vmem:[%s11] sm:$0x1]
  %v2650 = vld [vmem:[%s12] sm:$0x1]
  %v2651 = vsel %vm106, %v2647, 0.0
  %2652 = vadd.xlane.f32.xlu0 %v2651
  %v2653 = vpop.xlane.xlu0 %2652
  %v2654 = vsel %vm106, %v2648, 0.0
  %2655 = vadd.xlane.f32.xlu0 %v2654
  %v2656 = vpop.xlane.xlu0 %2655
  %v2657 = vmul.f32 %v2653, %v705
  %v2658 = vmul.f32 %v2656, %v705
  %v2659 = vsub.f32 %v2647, %v2657
  %v2660 = vsub.f32 %v2648, %v2658
  %v2661 = vmul.f32 %v2659, %v2659
  %v2662 = vmul.f32 %v2660, %v2660
  %v2663 = vsel %vm106, %v2661, 0.0
  %2664 = vadd.xlane.f32.xlu0 %v2663
  %v2665 = vpop.xlane.xlu0 %2664
  %v2666 = vsel %vm106, %v2662, 0.0
  %2667 = vadd.xlane.f32.xlu0 %v2666
  %v2668 = vpop.xlane.xlu0 %2667
  %v2669 = vmul.f32 %v2665, %v705
  %v2670 = vmul.f32 %v2668, %v705
  %v2671 = vadd.f32 %v2669, 1e-05
  %v2672 = vadd.f32 %v2670, 1e-05
  %v2673 = vrsqrt.pop %v2671
  %v2674 = vrsqrt.pop %v2672
  %v2675 = vmul.f32 %v2659, %v2673
  %v2676 = vmul.f32 %v2660, %v2674
  %v2678 = vlaneseq
  %v2679 = vshrl.u32 %v2678, 7
  %v2680 = vsub.s32 0, %v2679
  %v2681 = vrot.slane %v2649, %v2680
  %v2683 = vmul.f32 %v2675, %v2681
  %v2684 = vmul.f32 %v2676, %v2681
  %v2686 = vlaneseq
  %v2687 = vshrl.u32 %v2686, 7
  %v2688 = vsub.s32 0, %v2687
  %v2689 = vrot.slane %v2650, %v2688
  %v2691 = vadd.f32 %v2683, %v2689
  %v2692 = vadd.f32 %v2684, %v2689
  %s2693 = scalar_lea.vmem %s1, 16
  %v2694 = vld [vmem:[%s2693] sm:$0xff]
  %v2695 = vld [vmem:[%s2693 + $0x8] sm:$0xff]
  %s2696 = scalar_lea.vmem %s2, 1
  %v2697 = vld [vmem:[%s2696] sm:$0x1]
  %v2699 = vlaneseq
  %v2700 = vshrl.u32 %v2699, 7
  %v2701 = vsub.s32 0, %v2700
  %v2702 = vrot.slane %v2697, %v2701
  %v2705 = vsel %vm106, %v2691, 0
  %v2708 = vsel %vm106, %v2692, 0
  %2710 = vmatprep.subr.mxu0 0.0
  %2711 = vmatpush1.msra.mxu0 %v2694
  %2712 = vmatprep.subr.mxu0 0.0
  %2713 = vmatpush1.msra.mxu0 %v2695
  %2714 = vmatprep.subr.mxu0 0.0
  %2715 = vmatpush1.msra.mxu0 0.0
  %2716 = vmatprep.subr.mxu0 0.0
  %2717 = vmatpush1.msra.mxu0 0.0
  %2718 = vmatprep.subr.mxu0 0.0
  %2719 = vmatpush1.msra.mxu0 0.0
  %2720 = vmatprep.subr.mxu0 0.0
  %2721 = vmatpush1.msra.mxu0 0.0
  %2722 = vmatprep.subr.mxu0 0.0
  %2723 = vmatpush1.msra.mxu0 0.0
  %2724 = vmatprep.subr.mxu0 0.0
  %2725 = vmatpush1.msra.mxu0 0.0
  %2726 = vmatprep.subr.mxu0 0.0
  %2727 = vmatpush1.msra.mxu0 0.0
  %2728 = vmatprep.subr.mxu0 0.0
  %2729 = vmatpush1.msra.mxu0 0.0
  %2730 = vmatprep.subr.mxu0 0.0
  %2731 = vmatpush1.msra.mxu0 0.0
  %2732 = vmatprep.subr.mxu0 0.0
  %2733 = vmatpush1.msra.mxu0 0.0
  %2734 = vmatprep.subr.mxu0 0.0
  %2735 = vmatpush1.msra.mxu0 0.0
  %2736 = vmatprep.subr.mxu0 0.0
  %2737 = vmatpush1.msra.mxu0 0.0
  %2738 = vmatprep.subr.mxu0 0.0
  %2739 = vmatpush1.msra.mxu0 0.0
  %2740 = vmatprep.subr.mxu0 0.0
  %2741 = vmatpush1.msra.mxu0 0.0
  %2742 = vmatprep.subr.mxu0 0.0
  %2743 = vmatpush1.msra.mxu0 0.0
  %2744 = vmatprep.subr.mxu0 0.0
  %2745 = vmatpush1.msra.mxu0 0.0
  %2746 = vmatprep.subr.mxu0 0.0
  %2747 = vmatpush1.msra.mxu0 0.0
  %2748 = vmatprep.subr.mxu0 0.0
  %2749 = vmatpush1.msra.mxu0 0.0
  %2750 = vmatprep.subr.mxu0 0.0
  %2751 = vmatpush1.msra.mxu0 0.0
  %2752 = vmatprep.subr.mxu0 0.0
  %2753 = vmatpush1.msra.mxu0 0.0
  %2754 = vmatprep.subr.mxu0 0.0
  %2755 = vmatpush1.msra.mxu0 0.0
  %2756 = vmatprep.subr.mxu0 0.0
  %2757 = vmatpush1.msra.mxu0 0.0
  %2758 = vmatprep.subr.mxu0 0.0
  %2759 = vmatpush1.msra.mxu0 0.0
  %2760 = vmatprep.subr.mxu0 0.0
  %2761 = vmatpush1.msra.mxu0 0.0
  %2762 = vmatprep.subr.mxu0 0.0
  %2763 = vmatpush1.msra.mxu0 0.0
  %2764 = vmatprep.subr.mxu0 0.0
  %2765 = vmatpush1.msra.mxu0 0.0
  %2766 = vmatprep.subr.mxu0 0.0
  %2767 = vmatpush1.msra.mxu0 0.0
  %2768 = vmatprep.subr.mxu0 0.0
  %2769 = vmatpush1.msra.mxu0 0.0
  %2770 = vmatprep.subr.mxu0 0.0
  %2771 = vmatpush1.msra.mxu0 0.0
  %2772 = vmatprep.subr.mxu0 0.0
  %2773 = vmatpush1.msra.mxu0 0.0
  %2774 = vmatprep.mubr.f32.mxu0 0.0
  %2775 = vmatmul.mubr.f32.gmra.mrb[0].mxu0 %v2705
  %v2776 = vpop.f32.mrb[0].mxu0
  %v2777 = vadd.f32 %v2702, %v2776
  %v2778 = vpop.f32.mrb[0].mxu0
  %2779 = vmatprep.mubr.f32.mxu0 0.0
  %2780 = vmatmul.mubr.f32.gmra.mrb[0].mxu0 %v2708
  %v2781 = vpop.f32.mrb[0].mxu0
  %v2782 = vadd.f32 %v2702, %v2781
  %v2783 = vpop.f32.mrb[0].mxu0
  %2784 = vdwg.mxu0
  %2787 = vrot.lane.b32.xlu0 %v2777, 112
  %v2788 = vpop.permute.xlu0 %2787
  %2789 = vrot.lane.b32.xlu0 %v2782, 112
  %v2790 = vpop.permute.xlu0 %2789
  %v2791 = vsel %vm194, %v2777, 0
  %v2793 = vsel %vm194, %v2782, 0
  %v2795 = vsel %vm194, %v2788, 0
  %v2797 = vsel %vm194, %v2790, 0
  %2799 = vmatprep.subr.mxu0 0.0
  %2800 = vmatpush1.xpose.msra.mxu0 %v2795
  %2801 = vmatprep.subr.mxu0 0.0
  %2802 = vmatpush1.xpose.msra.mxu0 %v2797
  %2803 = vmatprep.subr.mxu0 0.0
  %2804 = vmatpush1.xpose.msra.mxu0 0.0
  %2805 = vmatprep.subr.mxu0 0.0
  %2806 = vmatpush1.xpose.msra.mxu0 0.0
  %2807 = vmatprep.subr.mxu0 0.0
  %2808 = vmatpush1.xpose.msra.mxu0 0.0
  %2809 = vmatprep.subr.mxu0 0.0
  %2810 = vmatpush1.xpose.msra.mxu0 0.0
  %2811 = vmatprep.subr.mxu0 0.0
  %2812 = vmatpush1.xpose.msra.mxu0 0.0
  %2813 = vmatprep.subr.mxu0 0.0
  %2814 = vmatpush1.xpose.msra.mxu0 0.0
  %2815 = vmatprep.subr.mxu0 0.0
  %2816 = vmatpush1.xpose.msra.mxu0 0.0
  %2817 = vmatprep.subr.mxu0 0.0
  %2818 = vmatpush1.xpose.msra.mxu0 0.0
  %2819 = vmatprep.subr.mxu0 0.0
  %2820 = vmatpush1.xpose.msra.mxu0 0.0
  %2821 = vmatprep.subr.mxu0 0.0
  %2822 = vmatpush1.xpose.msra.mxu0 0.0
  %2823 = vmatprep.subr.mxu0 0.0
  %2824 = vmatpush1.xpose.msra.mxu0 0.0
  %2825 = vmatprep.subr.mxu0 0.0
  %2826 = vmatpush1.xpose.msra.mxu0 0.0
  %2827 = vmatprep.subr.mxu0 0.0
  %2828 = vmatpush1.xpose.msra.mxu0 0.0
  %2829 = vmatprep.subr.mxu0 0.0
  %2830 = vmatpush1.xpose.msra.mxu0 0.0
  %2831 = vmatprep.subr.mxu0 0.0
  %2832 = vmatpush1.xpose.msra.mxu0 0.0
  %2833 = vmatprep.subr.mxu0 0.0
  %2834 = vmatpush1.xpose.msra.mxu0 0.0
  %2835 = vmatprep.subr.mxu0 0.0
  %2836 = vmatpush1.xpose.msra.mxu0 0.0
  %2837 = vmatprep.subr.mxu0 0.0
  %2838 = vmatpush1.xpose.msra.mxu0 0.0
  %2839 = vmatprep.subr.mxu0 0.0
  %2840 = vmatpush1.xpose.msra.mxu0 0.0
  %2841 = vmatprep.subr.mxu0 0.0
  %2842 = vmatpush1.xpose.msra.mxu0 0.0
  %2843 = vmatprep.subr.mxu0 0.0
  %2844 = vmatpush1.xpose.msra.mxu0 0.0
  %2845 = vmatprep.subr.mxu0 0.0
  %2846 = vmatpush1.xpose.msra.mxu0 0.0
  %2847 = vmatprep.subr.mxu0 0.0
  %2848 = vmatpush1.xpose.msra.mxu0 0.0
  %2849 = vmatprep.subr.mxu0 0.0
  %2850 = vmatpush1.xpose.msra.mxu0 0.0
  %2851 = vmatprep.subr.mxu0 0.0
  %2852 = vmatpush1.xpose.msra.mxu0 0.0
  %2853 = vmatprep.subr.mxu0 0.0
  %2854 = vmatpush1.xpose.msra.mxu0 0.0
  %2855 = vmatprep.subr.mxu0 0.0
  %2856 = vmatpush1.xpose.msra.mxu0 0.0
  %2857 = vmatprep.subr.mxu0 0.0
  %2858 = vmatpush1.xpose.msra.mxu0 0.0
  %2859 = vmatprep.subr.mxu0 0.0
  %2860 = vmatpush1.xpose.msra.mxu0 0.0
  %2861 = vmatprep.subr.mxu0 0.0
  %2862 = vmatpush1.xpose.msra.mxu0 0.0
  %2863 = vmatprep.mubr.f32.mxu0 0.0
  %2864 = vmatmul.mubr.f32.gmra.mrb[0].mxu0 %v2791
  %v2865 = vpop.f32.mrb[0].mxu0
  %v2866 = vadd.f32 0.0, %v2865
  %v2867 = vpop.f32.mrb[0].mxu0
  %2868 = vmatprep.mubr.f32.mxu0 0.0
  %2869 = vmatmul.mubr.f32.gmra.mrb[0].mxu0 %v2793
  %v2870 = vpop.f32.mrb[0].mxu0
  %v2871 = vadd.f32 0.0, %v2870
  %v2872 = vpop.f32.mrb[0].mxu0
  %2873 = vdwg.mxu0
  %v2874 = vmul.f32 %v2866, 0.35355338
  %v2875 = vmul.f32 %v2871, 0.35355338
  %v2876 = vadd.f32 %v2874, %v93
  %v2877 = vadd.f32 %v2875, %v94
  %v2878 = vsel %vm106, %v2876, -inf
  %2879 = vmax.xlane.f32.xlu0 %v2878
  %v2880 = vpop.xlane.xlu0 %2879
  %v2881 = vsel %vm106, %v2877, -inf
  %2882 = vmax.xlane.f32.xlu0 %v2881
  %v2883 = vpop.xlane.xlu0 %2882
  %v2884 = vsub.f32 %v2876, %v2880
  %v2885 = vsub.f32 %v2877, %v2883
  %v2886 = vmul.f32 %v2884, 1.442695
  %v2887 = vpow.pop %v2886
  %v2888 = vmul.f32 %v2885, 1.442695
  %v2889 = vpow.pop %v2888
  %v2890 = vsel %vm106, %v2887, 0.0
  %2891 = vadd.xlane.f32.xlu0 %v2890
  %v2892 = vpop.xlane.xlu0 %2891
  %v2893 = vsel %vm106, %v2889, 0.0
  %2894 = vadd.xlane.f32.xlu0 %v2893
  %v2895 = vpop.xlane.xlu0 %2894
  %v2896 = vrcp.pop %v2892
  %v2897 = vrcp.pop %v2895
  %v2898 = vmul.f32 %v2887, %v2896
  %v2899 = vmul.f32 %v2889, %v2897
  %2900 = vrot.lane.b32.xlu0 %v2777, 96
  %v2901 = vpop.permute.xlu0 %2900
  %2902 = vrot.lane.b32.xlu0 %v2782, 96
  %v2903 = vpop.permute.xlu0 %2902
  %v2907 = vsel %vm106, %v2898, 0
  %v2910 = vsel %vm106, %v2899, 0
  %2912 = vmatprep.subr.mxu0 0.0
  %2913 = vmatpush1.msra.mxu0 %v2901
  %2914 = vmatprep.subr.mxu0 0.0
  %2915 = vmatpush1.msra.mxu0 %v2903
  %2916 = vmatprep.subr.mxu0 0.0
  %2917 = vmatpush1.msra.mxu0 0.0
  %2918 = vmatprep.subr.mxu0 0.0
  %2919 = vmatpush1.msra.mxu0 0.0
  %2920 = vmatprep.subr.mxu0 0.0
  %2921 = vmatpush1.msra.mxu0 0.0
  %2922 = vmatprep.subr.mxu0 0.0
  %2923 = vmatpush1.msra.mxu0 0.0
  %2924 = vmatprep.subr.mxu0 0.0
  %2925 = vmatpush1.msra.mxu0 0.0
  %2926 = vmatprep.subr.mxu0 0.0
  %2927 = vmatpush1.msra.mxu0 0.0
  %2928 = vmatprep.subr.mxu0 0.0
  %2929 = vmatpush1.msra.mxu0 0.0
  %2930 = vmatprep.subr.mxu0 0.0
  %2931 = vmatpush1.msra.mxu0 0.0
  %2932 = vmatprep.subr.mxu0 0.0
  %2933 = vmatpush1.msra.mxu0 0.0
  %2934 = vmatprep.subr.mxu0 0.0
  %2935 = vmatpush1.msra.mxu0 0.0
  %2936 = vmatprep.subr.mxu0 0.0
  %2937 = vmatpush1.msra.mxu0 0.0
  %2938 = vmatprep.subr.mxu0 0.0
  %2939 = vmatpush1.msra.mxu0 0.0
  %2940 = vmatprep.subr.mxu0 0.0
  %2941 = vmatpush1.msra.mxu0 0.0
  %2942 = vmatprep.subr.mxu0 0.0
  %2943 = vmatpush1.msra.mxu0 0.0
  %2944 = vmatprep.subr.mxu0 0.0
  %2945 = vmatpush1.msra.mxu0 0.0
  %2946 = vmatprep.subr.mxu0 0.0
  %2947 = vmatpush1.msra.mxu0 0.0
  %2948 = vmatprep.subr.mxu0 0.0
  %2949 = vmatpush1.msra.mxu0 0.0
  %2950 = vmatprep.subr.mxu0 0.0
  %2951 = vmatpush1.msra.mxu0 0.0
  %2952 = vmatprep.subr.mxu0 0.0
  %2953 = vmatpush1.msra.mxu0 0.0
  %2954 = vmatprep.subr.mxu0 0.0
  %2955 = vmatpush1.msra.mxu0 0.0
  %2956 = vmatprep.subr.mxu0 0.0
  %2957 = vmatpush1.msra.mxu0 0.0
  %2958 = vmatprep.subr.mxu0 0.0
  %2959 = vmatpush1.msra.mxu0 0.0
  %2960 = vmatprep.subr.mxu0 0.0
  %2961 = vmatpush1.msra.mxu0 0.0
  %2962 = vmatprep.subr.mxu0 0.0
  %2963 = vmatpush1.msra.mxu0 0.0
  %2964 = vmatprep.subr.mxu0 0.0
  %2965 = vmatpush1.msra.mxu0 0.0
  %2966 = vmatprep.subr.mxu0 0.0
  %2967 = vmatpush1.msra.mxu0 0.0
  %2968 = vmatprep.subr.mxu0 0.0
  %2969 = vmatpush1.msra.mxu0 0.0
  %2970 = vmatprep.subr.mxu0 0.0
  %2971 = vmatpush1.msra.mxu0 0.0
  %2972 = vmatprep.subr.mxu0 0.0
  %2973 = vmatpush1.msra.mxu0 0.0
  %2974 = vmatprep.subr.mxu0 0.0
  %2975 = vmatpush1.msra.mxu0 0.0
  %2976 = vmatprep.mubr.f32.mxu0 0.0
  %2977 = vmatmul.mubr.f32.gmra.mrb[0].mxu0 %v2907
  %v2978 = vpop.f32.mrb[0].mxu0
  %v2979 = vadd.f32 0.0, %v2978
  %v2980 = vpop.f32.mrb[0].mxu0
  %2981 = vmatprep.mubr.f32.mxu0 0.0
  %2982 = vmatmul.mubr.f32.gmra.mrb[0].mxu0 %v2910
  %v2983 = vpop.f32.mrb[0].mxu0
  %v2984 = vadd.f32 0.0, %v2983
  %v2985 = vpop.f32.mrb[0].mxu0
  %2986 = vdwg.mxu0
  %2987 = vrot.lane.b32.xlu0 %v2777, 120
  %v2988 = vpop.permute.xlu0 %2987
  %2989 = vrot.lane.b32.xlu0 %v2782, 120
  %v2990 = vpop.permute.xlu0 %2989
  %2991 = vrot.lane.b32.xlu0 %v2777, 104
  %v2992 = vpop.permute.xlu0 %2991
  %2993 = vrot.lane.b32.xlu0 %v2782, 104
  %v2994 = vpop.permute.xlu0 %2993
  %v2995 = vsel %vm194, %v2988, 0
  %v2997 = vsel %vm194, %v2990, 0
  %v2999 = vsel %vm194, %v2992, 0
  %v3001 = vsel %vm194, %v2994, 0
  %3003 = vmatprep.subr.mxu0 0.0
  %3004 = vmatpush1.xpose.msra.mxu0 %v2999
  %3005 = vmatprep.subr.mxu0 0.0
  %3006 = vmatpush1.xpose.msra.mxu0 %v3001
  %3007 = vmatprep.subr.mxu0 0.0
  %3008 = vmatpush1.xpose.msra.mxu0 0.0
  %3009 = vmatprep.subr.mxu0 0.0
  %3010 = vmatpush1.xpose.msra.mxu0 0.0
  %3011 = vmatprep.subr.mxu0 0.0
  %3012 = vmatpush1.xpose.msra.mxu0 0.0
  %3013 = vmatprep.subr.mxu0 0.0
  %3014 = vmatpush1.xpose.msra.mxu0 0.0
  %3015 = vmatprep.subr.mxu0 0.0
  %3016 = vmatpush1.xpose.msra.mxu0 0.0
  %3017 = vmatprep.subr.mxu0 0.0
  %3018 = vmatpush1.xpose.msra.mxu0 0.0
  %3019 = vmatprep.subr.mxu0 0.0
  %3020 = vmatpush1.xpose.msra.mxu0 0.0
  %3021 = vmatprep.subr.mxu0 0.0
  %3022 = vmatpush1.xpose.msra.mxu0 0.0
  %3023 = vmatprep.subr.mxu0 0.0
  %3024 = vmatpush1.xpose.msra.mxu0 0.0
  %3025 = vmatprep.subr.mxu0 0.0
  %3026 = vmatpush1.xpose.msra.mxu0 0.0
  %3027 = vmatprep.subr.mxu0 0.0
  %3028 = vmatpush1.xpose.msra.mxu0 0.0
  %3029 = vmatprep.subr.mxu0 0.0
  %3030 = vmatpush1.xpose.msra.mxu0 0.0
  %3031 = vmatprep.subr.mxu0 0.0
  %3032 = vmatpush1.xpose.msra.mxu0 0.0
  %3033 = vmatprep.subr.mxu0 0.0
  %3034 = vmatpush1.xpose.msra.mxu0 0.0
  %3035 = vmatprep.subr.mxu0 0.0
  %3036 = vmatpush1.xpose.msra.mxu0 0.0
  %3037 = vmatprep.subr.mxu0 0.0
  %3038 = vmatpush1.xpose.msra.mxu0 0.0
  %3039 = vmatprep.subr.mxu0 0.0
  %3040 = vmatpush1.xpose.msra.mxu0 0.0
  %3041 = vmatprep.subr.mxu0 0.0
  %3042 = vmatpush1.xpose.msra.mxu0 0.0
  %3043 = vmatprep.subr.mxu0 0.0
  %3044 = vmatpush1.xpose.msra.mxu0 0.0
  %3045 = vmatprep.subr.mxu0 0.0
  %3046 = vmatpush1.xpose.msra.mxu0 0.0
  %3047 = vmatprep.subr.mxu0 0.0
  %3048 = vmatpush1.xpose.msra.mxu0 0.0
  %3049 = vmatprep.subr.mxu0 0.0
  %3050 = vmatpush1.xpose.msra.mxu0 0.0
  %3051 = vmatprep.subr.mxu0 0.0
  %3052 = vmatpush1.xpose.msra.mxu0 0.0
  %3053 = vmatprep.subr.mxu0 0.0
  %3054 = vmatpush1.xpose.msra.mxu0 0.0
  %3055 = vmatprep.subr.mxu0 0.0
  %3056 = vmatpush1.xpose.msra.mxu0 0.0
  %3057 = vmatprep.subr.mxu0 0.0
  %3058 = vmatpush1.xpose.msra.mxu0 0.0
  %3059 = vmatprep.subr.mxu0 0.0
  %3060 = vmatpush1.xpose.msra.mxu0 0.0
  %3061 = vmatprep.subr.mxu0 0.0
  %3062 = vmatpush1.xpose.msra.mxu0 0.0
  %3063 = vmatprep.subr.mxu0 0.0
  %3064 = vmatpush1.xpose.msra.mxu0 0.0
  %3065 = vmatprep.subr.mxu0 0.0
  %3066 = vmatpush1.xpose.msra.mxu0 0.0
  %3067 = vmatprep.mubr.f32.mxu0 0.0
  %3068 = vmatmul.mubr.f32.gmra.mrb[0].mxu0 %v2995
  %v3069 = vpop.f32.mrb[0].mxu0
  %v3070 = vadd.f32 0.0, %v3069
  %v3071 = vpop.f32.mrb[0].mxu0
  %3072 = vmatprep.mubr.f32.mxu0 0.0
  %3073 = vmatmul.mubr.f32.gmra.mrb[0].mxu0 %v2997
  %v3074 = vpop.f32.mrb[0].mxu0
  %v3075 = vadd.f32 0.0, %v3074
  %v3076 = vpop.f32.mrb[0].mxu0
  %3077 = vdwg.mxu0
  %v3078 = vmul.f32 %v3070, 0.35355338
  %v3079 = vmul.f32 %v3075, 0.35355338
  %v3080 = vadd.f32 %v3078, %v93
  %v3081 = vadd.f32 %v3079, %v94
  %v3082 = vsel %vm106, %v3080, -inf
  %3083 = vmax.xlane.f32.xlu0 %v3082
  %v3084 = vpop.xlane.xlu0 %3083
  %v3085 = vsel %vm106, %v3081, -inf
  %3086 = vmax.xlane.f32.xlu0 %v3085
  %v3087 = vpop.xlane.xlu0 %3086
  %v3088 = vsub.f32 %v3080, %v3084
  %v3089 = vsub.f32 %v3081, %v3087
  %v3090 = vmul.f32 %v3088, 1.442695
  %v3091 = vpow.pop %v3090
  %v3092 = vmul.f32 %v3089, 1.442695
  %v3093 = vpow.pop %v3092
  %v3094 = vsel %vm106, %v3091, 0.0
  %3095 = vadd.xlane.f32.xlu0 %v3094
  %v3096 = vpop.xlane.xlu0 %3095
  %v3097 = vsel %vm106, %v3093, 0.0
  %3098 = vadd.xlane.f32.xlu0 %v3097
  %v3099 = vpop.xlane.xlu0 %3098
  %v3100 = vrcp.pop %v3096
  %v3101 = vrcp.pop %v3099
  %v3102 = vmul.f32 %v3091, %v3100
  %v3103 = vmul.f32 %v3093, %v3101
  %3104 = vrot.lane.b32.xlu0 %v2777, 88
  %v3105 = vpop.permute.xlu0 %3104
  %3106 = vrot.lane.b32.xlu0 %v2782, 88
  %v3107 = vpop.permute.xlu0 %3106
  %v3111 = vsel %vm106, %v3102, 0
  %v3114 = vsel %vm106, %v3103, 0
  %3116 = vmatprep.subr.mxu0 0.0
  %3117 = vmatpush1.msra.mxu0 %v3105
  %3118 = vmatprep.subr.mxu0 0.0
  %3119 = vmatpush1.msra.mxu0 %v3107
  %3120 = vmatprep.subr.mxu0 0.0
  %3121 = vmatpush1.msra.mxu0 0.0
  %3122 = vmatprep.subr.mxu0 0.0
  %3123 = vmatpush1.msra.mxu0 0.0
  %3124 = vmatprep.subr.mxu0 0.0
  %3125 = vmatpush1.msra.mxu0 0.0
  %3126 = vmatprep.subr.mxu0 0.0
  %3127 = vmatpush1.msra.mxu0 0.0
  %3128 = vmatprep.subr.mxu0 0.0
  %3129 = vmatpush1.msra.mxu0 0.0
  %3130 = vmatprep.subr.mxu0 0.0
  %3131 = vmatpush1.msra.mxu0 0.0
  %3132 = vmatprep.subr.mxu0 0.0
  %3133 = vmatpush1.msra.mxu0 0.0
  %3134 = vmatprep.subr.mxu0 0.0
  %3135 = vmatpush1.msra.mxu0 0.0
  %3136 = vmatprep.subr.mxu0 0.0
  %3137 = vmatpush1.msra.mxu0 0.0
  %3138 = vmatprep.subr.mxu0 0.0
  %3139 = vmatpush1.msra.mxu0 0.0
  %3140 = vmatprep.subr.mxu0 0.0
  %3141 = vmatpush1.msra.mxu0 0.0
  %3142 = vmatprep.subr.mxu0 0.0
  %3143 = vmatpush1.msra.mxu0 0.0
  %3144 = vmatprep.subr.mxu0 0.0
  %3145 = vmatpush1.msra.mxu0 0.0
  %3146 = vmatprep.subr.mxu0 0.0
  %3147 = vmatpush1.msra.mxu0 0.0
  %3148 = vmatprep.subr.mxu0 0.0
  %3149 = vmatpush1.msra.mxu0 0.0
  %3150 = vmatprep.subr.mxu0 0.0
  %3151 = vmatpush1.msra.mxu0 0.0
  %3152 = vmatprep.subr.mxu0 0.0
  %3153 = vmatpush1.msra.mxu0 0.0
  %3154 = vmatprep.subr.mxu0 0.0
  %3155 = vmatpush1.msra.mxu0 0.0
  %3156 = vmatprep.subr.mxu0 0.0
  %3157 = vmatpush1.msra.mxu0 0.0
  %3158 = vmatprep.subr.mxu0 0.0
  %3159 = vmatpush1.msra.mxu0 0.0
  %3160 = vmatprep.subr.mxu0 0.0
  %3161 = vmatpush1.msra.mxu0 0.0
  %3162 = vmatprep.subr.mxu0 0.0
  %3163 = vmatpush1.msra.mxu0 0.0
  %3164 = vmatprep.subr.mxu0 0.0
  %3165 = vmatpush1.msra.mxu0 0.0
  %3166 = vmatprep.subr.mxu0 0.0
  %3167 = vmatpush1.msra.mxu0 0.0
  %3168 = vmatprep.subr.mxu0 0.0
  %3169 = vmatpush1.msra.mxu0 0.0
  %3170 = vmatprep.subr.mxu0 0.0
  %3171 = vmatpush1.msra.mxu0 0.0
  %3172 = vmatprep.subr.mxu0 0.0
  %3173 = vmatpush1.msra.mxu0 0.0
  %3174 = vmatprep.subr.mxu0 0.0
  %3175 = vmatpush1.msra.mxu0 0.0
  %3176 = vmatprep.subr.mxu0 0.0
  %3177 = vmatpush1.msra.mxu0 0.0
  %3178 = vmatprep.subr.mxu0 0.0
  %3179 = vmatpush1.msra.mxu0 0.0
  %3180 = vmatprep.mubr.f32.mxu0 0.0
  %3181 = vmatmul.mubr.f32.gmra.mrb[0].mxu0 %v3111
  %v3182 = vpop.f32.mrb[0].mxu0
  %v3183 = vadd.f32 0.0, %v3182
  %v3184 = vpop.f32.mrb[0].mxu0
  %3185 = vmatprep.mubr.f32.mxu0 0.0
  %3186 = vmatmul.mubr.f32.gmra.mrb[0].mxu0 %v3114
  %v3187 = vpop.f32.mrb[0].mxu0
  %v3188 = vadd.f32 0.0, %v3187
  %v3189 = vpop.f32.mrb[0].mxu0
  %3190 = vdwg.mxu0
  %3193 = vrot.lane.b32.xlu0 %v3183, 8
  %v3194 = vpop.permute.xlu0 %3193
  %3195 = vrot.lane.b32.xlu0 %v3188, 8
  %v3196 = vpop.permute.xlu0 %3195
  %v3199 = vsel %vm194, %v2979, %v3194
  %v3200 = vsel %vm194, %v2984, %v3196
  %s3201 = scalar_lea.vmem %s3, 16
  %v3202 = vld [vmem:[%s3201] sm:$0xff]
  %v3203 = vld [vmem:[%s3201 + $0x8] sm:$0xff]
  %s3204 = scalar_lea.vmem %s4, 1
  %v3205 = vld [vmem:[%s3204] sm:$0x1]
  %v3207 = vlaneseq
  %v3208 = vshrl.u32 %v3207, 7
  %v3209 = vsub.s32 0, %v3208
  %v3210 = vrot.slane %v3205, %v3209
  %v3213 = vsel %vm106, %v3199, 0
  %v3216 = vsel %vm106, %v3200, 0
  %3218 = vmatprep.subr.mxu0 0.0
  %3219 = vmatpush1.msra.mxu0 %v3202
  %3220 = vmatprep.subr.mxu0 0.0
  %3221 = vmatpush1.msra.mxu0 %v3203
  %3222 = vmatprep.subr.mxu0 0.0
  %3223 = vmatpush1.msra.mxu0 0.0
  %3224 = vmatprep.subr.mxu0 0.0
  %3225 = vmatpush1.msra.mxu0 0.0
  %3226 = vmatprep.subr.mxu0 0.0
  %3227 = vmatpush1.msra.mxu0 0.0
  %3228 = vmatprep.subr.mxu0 0.0
  %3229 = vmatpush1.msra.mxu0 0.0
  %3230 = vmatprep.subr.mxu0 0.0
  %3231 = vmatpush1.msra.mxu0 0.0
  %3232 = vmatprep.subr.mxu0 0.0
  %3233 = vmatpush1.msra.mxu0 0.0
  %3234 = vmatprep.subr.mxu0 0.0
  %3235 = vmatpush1.msra.mxu0 0.0
  %3236 = vmatprep.subr.mxu0 0.0
  %3237 = vmatpush1.msra.mxu0 0.0
  %3238 = vmatprep.subr.mxu0 0.0
  %3239 = vmatpush1.msra.mxu0 0.0
  %3240 = vmatprep.subr.mxu0 0.0
  %3241 = vmatpush1.msra.mxu0 0.0
  %3242 = vmatprep.subr.mxu0 0.0
  %3243 = vmatpush1.msra.mxu0 0.0
  %3244 = vmatprep.subr.mxu0 0.0
  %3245 = vmatpush1.msra.mxu0 0.0
  %3246 = vmatprep.subr.mxu0 0.0
  %3247 = vmatpush1.msra.mxu0 0.0
  %3248 = vmatprep.subr.mxu0 0.0
  %3249 = vmatpush1.msra.mxu0 0.0
  %3250 = vmatprep.subr.mxu0 0.0
  %3251 = vmatpush1.msra.mxu0 0.0
  %3252 = vmatprep.subr.mxu0 0.0
  %3253 = vmatpush1.msra.mxu0 0.0
  %3254 = vmatprep.subr.mxu0 0.0
  %3255 = vmatpush1.msra.mxu0 0.0
  %3256 = vmatprep.subr.mxu0 0.0
  %3257 = vmatpush1.msra.mxu0 0.0
  %3258 = vmatprep.subr.mxu0 0.0
  %3259 = vmatpush1.msra.mxu0 0.0
  %3260 = vmatprep.subr.mxu0 0.0
  %3261 = vmatpush1.msra.mxu0 0.0
  %3262 = vmatprep.subr.mxu0 0.0
  %3263 = vmatpush1.msra.mxu0 0.0
  %3264 = vmatprep.subr.mxu0 0.0
  %3265 = vmatpush1.msra.mxu0 0.0
  %3266 = vmatprep.subr.mxu0 0.0
  %3267 = vmatpush1.msra.mxu0 0.0
  %3268 = vmatprep.subr.mxu0 0.0
  %3269 = vmatpush1.msra.mxu0 0.0
  %3270 = vmatprep.subr.mxu0 0.0
  %3271 = vmatpush1.msra.mxu0 0.0
  %3272 = vmatprep.subr.mxu0 0.0
  %3273 = vmatpush1.msra.mxu0 0.0
  %3274 = vmatprep.subr.mxu0 0.0
  %3275 = vmatpush1.msra.mxu0 0.0
  %3276 = vmatprep.subr.mxu0 0.0
  %3277 = vmatpush1.msra.mxu0 0.0
  %3278 = vmatprep.subr.mxu0 0.0
  %3279 = vmatpush1.msra.mxu0 0.0
  %3280 = vmatprep.subr.mxu0 0.0
  %3281 = vmatpush1.msra.mxu0 0.0
  %3282 = vmatprep.mubr.f32.mxu0 0.0
  %3283 = vmatmul.mubr.f32.gmra.mrb[0].mxu0 %v3213
  %v3284 = vpop.f32.mrb[0].mxu0
  %v3285 = vadd.f32 %v3210, %v3284
  %v3286 = vpop.f32.mrb[0].mxu0
  %3287 = vmatprep.mubr.f32.mxu0 0.0
  %3288 = vmatmul.mubr.f32.gmra.mrb[0].mxu0 %v3216
  %v3289 = vpop.f32.mrb[0].mxu0
  %v3290 = vadd.f32 %v3210, %v3289
  %v3291 = vpop.f32.mrb[0].mxu0
  %3292 = vdwg.mxu0
  %v3293 = vadd.f32 %v2691, %v3285
  %v3294 = vadd.f32 %v2692, %v3290
  %s3295 = scalar_lea.vmem %s5, 1
  %v3296 = vld [vmem:[%s3295] sm:$0x1]
  %s3297 = scalar_lea.vmem %s6, 1
  %v3298 = vld [vmem:[%s3297] sm:$0x1]
  %v3299 = vsel %vm106, %v3293, 0.0
  %3300 = vadd.xlane.f32.xlu0 %v3299
  %v3301 = vpop.xlane.xlu0 %3300
  %v3302 = vsel %vm106, %v3294, 0.0
  %3303 = vadd.xlane.f32.xlu0 %v3302
  %v3304 = vpop.xlane.xlu0 %3303
  %v3305 = vmul.f32 %v3301, %v705
  %v3306 = vmul.f32 %v3304, %v705
  %v3307 = vsub.f32 %v3293, %v3305
  %v3308 = vsub.f32 %v3294, %v3306
  %v3309 = vmul.f32 %v3307, %v3307
  %v3310 = vmul.f32 %v3308, %v3308
  %v3311 = vsel %vm106, %v3309, 0.0
  %3312 = vadd.xlane.f32.xlu0 %v3311
  %v3313 = vpop.xlane.xlu0 %3312
  %v3314 = vsel %vm106, %v3310, 0.0
  %3315 = vadd.xlane.f32.xlu0 %v3314
  %v3316 = vpop.xlane.xlu0 %3315
  %v3317 = vmul.f32 %v3313, %v705
  %v3318 = vmul.f32 %v3316, %v705
  %v3319 = vadd.f32 %v3317, 1e-05
  %v3320 = vadd.f32 %v3318, 1e-05
  %v3321 = vrsqrt.pop %v3319
  %v3322 = vrsqrt.pop %v3320
  %v3323 = vmul.f32 %v3307, %v3321
  %v3324 = vmul.f32 %v3308, %v3322
  %v3326 = vlaneseq
  %v3327 = vshrl.u32 %v3326, 7
  %v3328 = vsub.s32 0, %v3327
  %v3329 = vrot.slane %v3296, %v3328
  %v3331 = vmul.f32 %v3323, %v3329
  %v3332 = vmul.f32 %v3324, %v3329
  %v3334 = vlaneseq
  %v3335 = vshrl.u32 %v3334, 7
  %v3336 = vsub.s32 0, %v3335
  %v3337 = vrot.slane %v3298, %v3336
  %v3339 = vadd.f32 %v3331, %v3337
  %v3340 = vadd.f32 %v3332, %v3337
  %s3341 = scalar_lea.vmem %s7, 128
  %v3342 = vld [vmem:[%s3341] sm:$0xff]
  %v3343 = vld [vmem:[%s3341 + $0x8] sm:$0xff]
  %v3344 = vld [vmem:[%s3341 + $0x10] sm:$0xff]
  %v3345 = vld [vmem:[%s3341 + $0x18] sm:$0xff]
  %v3346 = vld [vmem:[%s3341 + $0x20] sm:$0xff]
  %v3347 = vld [vmem:[%s3341 + $0x28] sm:$0xff]
  %v3348 = vld [vmem:[%s3341 + $0x30] sm:$0xff]
  %v3349 = vld [vmem:[%s3341 + $0x38] sm:$0xff]
  %v3350 = vld [vmem:[%s3341 + $0x40] sm:$0xff]
  %v3351 = vld [vmem:[%s3341 + $0x48] sm:$0xff]
  %v3352 = vld [vmem:[%s3341 + $0x50] sm:$0xff]
  %v3353 = vld [vmem:[%s3341 + $0x58] sm:$0xff]
  %v3354 = vld [vmem:[%s3341 + $0x60] sm:$0xff]
  %v3355 = vld [vmem:[%s3341 + $0x68] sm:$0xff]
  %v3356 = vld [vmem:[%s3341 + $0x70] sm:$0xff]
  %v3357 = vld [vmem:[%s3341 + $0x78] sm:$0xff]
  %v3358 = vunpack.c.l.bf16 %v3342
  %v3359 = vunpack.c.h.bf16 %v3342
  %v3360 = vunpack.c.l.bf16 %v3343
  %v3361 = vunpack.c.h.bf16 %v3343
  %v3362 = vunpack.c.l.bf16 %v3344
  %v3363 = vunpack.c.h.bf16 %v3344
  %v3364 = vunpack.c.l.bf16 %v3345
  %v3365 = vunpack.c.h.bf16 %v3345
  %v3366 = vunpack.c.l.bf16 %v3346
  %v3367 = vunpack.c.h.bf16 %v3346
  %v3368 = vunpack.c.l.bf16 %v3347
  %v3369 = vunpack.c.h.bf16 %v3347
  %v3370 = vunpack.c.l.bf16 %v3348
  %v3371 = vunpack.c.h.bf16 %v3348
  %v3372 = vunpack.c.l.bf16 %v3349
  %v3373 = vunpack.c.h.bf16 %v3349
  %v3374 = vunpack.c.l.bf16 %v3350
  %v3375 = vunpack.c.h.bf16 %v3350
  %v3376 = vunpack.c.l.bf16 %v3351
  %v3377 = vunpack.c.h.bf16 %v3351
  %v3378 = vunpack.c.l.bf16 %v3352
  %v3379 = vunpack.c.h.bf16 %v3352
  %v3380 = vunpack.c.l.bf16 %v3353
  %v3381 = vunpack.c.h.bf16 %v3353
  %v3382 = vunpack.c.l.bf16 %v3354
  %v3383 = vunpack.c.h.bf16 %v3354
  %v3384 = vunpack.c.l.bf16 %v3355
  %v3385 = vunpack.c.h.bf16 %v3355
  %v3386 = vunpack.c.l.bf16 %v3356
  %v3387 = vunpack.c.h.bf16 %v3356
  %v3388 = vunpack.c.l.bf16 %v3357
  %v3389 = vunpack.c.h.bf16 %v3357
  %s3390 = scalar_lea.vmem %s8, 16
  %v3391 = vld [vmem:[%s3390] sm:$0xff]
  %v3392 = vld [vmem:[%s3390 + $0x8] sm:$0xff]
  %v3395 = vlaneseq
  %v3396 = vshrl.u32 %v3395, 7
  %v3397 = vsub.s32 0, %v3396
  %v3398 = vrot.slane %v3391, %v3397
  %v3399 = vlaneseq
  %v3400 = vshrl.u32 %v3399, 7
  %v3401 = vsub.s32 1, %v3400
  %v3402 = vrot.slane %v3391, %v3401
  %v3403 = vlaneseq
  %v3404 = vshrl.u32 %v3403, 7
  %v3405 = vsub.s32 2, %v3404
  %v3406 = vrot.slane %v3391, %v3405
  %v3407 = vlaneseq
  %v3408 = vshrl.u32 %v3407, 7
  %v3409 = vsub.s32 3, %v3408
  %v3410 = vrot.slane %v3391, %v3409
  %v3411 = vlaneseq
  %v3412 = vshrl.u32 %v3411, 7
  %v3413 = vsub.s32 4, %v3412
  %v3414 = vrot.slane %v3391, %v3413
  %v3415 = vlaneseq
  %v3416 = vshrl.u32 %v3415, 7
  %v3417 = vsub.s32 5, %v3416
  %v3418 = vrot.slane %v3391, %v3417
  %v3419 = vlaneseq
  %v3420 = vshrl.u32 %v3419, 7
  %v3421 = vsub.s32 6, %v3420
  %v3422 = vrot.slane %v3391, %v3421
  %v3423 = vlaneseq
  %v3424 = vshrl.u32 %v3423, 7
  %v3425 = vsub.s32 7, %v3424
  %v3426 = vrot.slane %v3391, %v3425
  %v3427 = vlaneseq
  %v3428 = vshrl.u32 %v3427, 7
  %v3429 = vsub.s32 0, %v3428
  %v3430 = vrot.slane %v3392, %v3429
  %v3431 = vlaneseq
  %v3432 = vshrl.u32 %v3431, 7
  %v3433 = vsub.s32 1, %v3432
  %v3434 = vrot.slane %v3392, %v3433
  %v3435 = vlaneseq
  %v3436 = vshrl.u32 %v3435, 7
  %v3437 = vsub.s32 2, %v3436
  %v3438 = vrot.slane %v3392, %v3437
  %v3439 = vlaneseq
  %v3440 = vshrl.u32 %v3439, 7
  %v3441 = vsub.s32 3, %v3440
  %v3442 = vrot.slane %v3392, %v3441
  %v3443 = vlaneseq
  %v3444 = vshrl.u32 %v3443, 7
  %v3445 = vsub.s32 4, %v3444
  %v3446 = vrot.slane %v3392, %v3445
  %v3447 = vlaneseq
  %v3448 = vshrl.u32 %v3447, 7
  %v3449 = vsub.s32 5, %v3448
  %v3450 = vrot.slane %v3392, %v3449
  %v3451 = vlaneseq
  %v3452 = vshrl.u32 %v3451, 7
  %v3453 = vsub.s32 6, %v3452
  %v3454 = vrot.slane %v3392, %v3453
  %v3455 = vlaneseq
  %v3456 = vshrl.u32 %v3455, 7
  %v3457 = vsub.s32 7, %v3456
  %v3458 = vrot.slane %v3392, %v3457
  %v3476 = vsel %vm106, %v3339, 0
  %v3479 = vsel %vm106, %v3340, 0
  %3481 = vmatprep.subr.mxu0 %v3359
  %3482 = vmatpush1.msra.mxu0 %v3358
  %3483 = vmatprep.subr.mxu0 %v3375
  %3484 = vmatpush1.msra.mxu0 %v3374
  %3485 = vmatprep.subr.mxu0 0.0
  %3486 = vmatpush1.msra.mxu0 0.0
  %3487 = vmatprep.subr.mxu0 0.0
  %3488 = vmatpush1.msra.mxu0 0.0
  %3489 = vmatprep.subr.mxu0 0.0
  %3490 = vmatpush1.msra.mxu0 0.0
  %3491 = vmatprep.subr.mxu0 0.0
  %3492 = vmatpush1.msra.mxu0 0.0
  %3493 = vmatprep.subr.mxu0 0.0
  %3494 = vmatpush1.msra.mxu0 0.0
  %3495 = vmatprep.subr.mxu0 0.0
  %3496 = vmatpush1.msra.mxu0 0.0
  %3497 = vmatprep.subr.mxu0 0.0
  %3498 = vmatpush1.msra.mxu0 0.0
  %3499 = vmatprep.subr.mxu0 0.0
  %3500 = vmatpush1.msra.mxu0 0.0
  %3501 = vmatprep.subr.mxu0 0.0
  %3502 = vmatpush1.msra.mxu0 0.0
  %3503 = vmatprep.subr.mxu0 0.0
  %3504 = vmatpush1.msra.mxu0 0.0
  %3505 = vmatprep.subr.mxu0 0.0
  %3506 = vmatpush1.msra.mxu0 0.0
  %3507 = vmatprep.subr.mxu0 0.0
  %3508 = vmatpush1.msra.mxu0 0.0
  %3509 = vmatprep.subr.mxu0 0.0
  %3510 = vmatpush1.msra.mxu0 0.0
  %3511 = vmatprep.subr.mxu0 0.0
  %3512 = vmatpush1.msra.mxu0 0.0
  %3513 = vmatprep.subr.mxu0 0.0
  %3514 = vmatpush1.msra.mxu0 0.0
  %3515 = vmatprep.subr.mxu0 0.0
  %3516 = vmatpush1.msra.mxu0 0.0
  %3517 = vmatprep.subr.mxu0 0.0
  %3518 = vmatpush1.msra.mxu0 0.0
  %3519 = vmatprep.subr.mxu0 0.0
  %3520 = vmatpush1.msra.mxu0 0.0
  %3521 = vmatprep.subr.mxu0 0.0
  %3522 = vmatpush1.msra.mxu0 0.0
  %3523 = vmatprep.subr.mxu0 0.0
  %3524 = vmatpush1.msra.mxu0 0.0
  %3525 = vmatprep.subr.mxu0 0.0
  %3526 = vmatpush1.msra.mxu0 0.0
  %3527 = vmatprep.subr.mxu0 0.0
  %3528 = vmatpush1.msra.mxu0 0.0
  %3529 = vmatprep.subr.mxu0 0.0
  %3530 = vmatpush1.msra.mxu0 0.0
  %3531 = vmatprep.subr.mxu0 0.0
  %3532 = vmatpush1.msra.mxu0 0.0
  %3533 = vmatprep.subr.mxu0 0.0
  %3534 = vmatpush1.msra.mxu0 0.0
  %3535 = vmatprep.subr.mxu0 0.0
  %3536 = vmatpush1.msra.mxu0 0.0
  %3537 = vmatprep.subr.mxu0 0.0
  %3538 = vmatpush1.msra.mxu0 0.0
  %3539 = vmatprep.subr.mxu0 0.0
  %3540 = vmatpush1.msra.mxu0 0.0
  %3541 = vmatprep.subr.mxu0 0.0
  %3542 = vmatpush1.msra.mxu0 0.0
  %3543 = vmatprep.subr.mxu0 0.0
  %3544 = vmatpush1.msra.mxu0 0.0
  %3545 = vmatprep.mubr.f32.mxu0 0.0
  %3546 = vmatmul.mubr.f32.gmra.mrb[0].mxu0 %v3476
  %v3547 = vpop.f32.mrb[0].mxu0
  %v3548 = vadd.f32 %v3398, %v3547
  %v3549 = vpop.f32.mrb[0].mxu0
  %v3550 = vadd.f32 %v3402, %v3549
  %3551 = vmatprep.mubr.f32.mxu0 0.0
  %3552 = vmatmul.mubr.f32.gmra.mrb[0].mxu0 %v3479
  %v3553 = vpop.f32.mrb[0].mxu0
  %v3554 = vadd.f32 %v3398, %v3553
  %v3555 = vpop.f32.mrb[0].mxu0
  %v3556 = vadd.f32 %v3402, %v3555
  %3557 = vdwg.mxu0
  %3558 = vmatprep.subr.mxu0 %v3361
  %3559 = vmatpush1.msra.mxu0 %v3360
  %3560 = vmatprep.subr.mxu0 %v3377
  %3561 = vmatpush1.msra.mxu0 %v3376
  %3562 = vmatprep.subr.mxu0 0.0
  %3563 = vmatpush1.msra.mxu0 0.0
  %3564 = vmatprep.subr.mxu0 0.0
  %3565 = vmatpush1.msra.mxu0 0.0
  %3566 = vmatprep.subr.mxu0 0.0
  %3567 = vmatpush1.msra.mxu0 0.0
  %3568 = vmatprep.subr.mxu0 0.0
  %3569 = vmatpush1.msra.mxu0 0.0
  %3570 = vmatprep.subr.mxu0 0.0
  %3571 = vmatpush1.msra.mxu0 0.0
  %3572 = vmatprep.subr.mxu0 0.0
  %3573 = vmatpush1.msra.mxu0 0.0
  %3574 = vmatprep.subr.mxu0 0.0
  %3575 = vmatpush1.msra.mxu0 0.0
  %3576 = vmatprep.subr.mxu0 0.0
  %3577 = vmatpush1.msra.mxu0 0.0
  %3578 = vmatprep.subr.mxu0 0.0
  %3579 = vmatpush1.msra.mxu0 0.0
  %3580 = vmatprep.subr.mxu0 0.0
  %3581 = vmatpush1.msra.mxu0 0.0
  %3582 = vmatprep.subr.mxu0 0.0
  %3583 = vmatpush1.msra.mxu0 0.0
  %3584 = vmatprep.subr.mxu0 0.0
  %3585 = vmatpush1.msra.mxu0 0.0
  %3586 = vmatprep.subr.mxu0 0.0
  %3587 = vmatpush1.msra.mxu0 0.0
  %3588 = vmatprep.subr.mxu0 0.0
  %3589 = vmatpush1.msra.mxu0 0.0
  %3590 = vmatprep.subr.mxu0 0.0
  %3591 = vmatpush1.msra.mxu0 0.0
  %3592 = vmatprep.subr.mxu0 0.0
  %3593 = vmatpush1.msra.mxu0 0.0
  %3594 = vmatprep.subr.mxu0 0.0
  %3595 = vmatpush1.msra.mxu0 0.0
  %3596 = vmatprep.subr.mxu0 0.0
  %3597 = vmatpush1.msra.mxu0 0.0
  %3598 = vmatprep.subr.mxu0 0.0
  %3599 = vmatpush1.msra.mxu0 0.0
  %3600 = vmatprep.subr.mxu0 0.0
  %3601 = vmatpush1.msra.mxu0 0.0
  %3602 = vmatprep.subr.mxu0 0.0
  %3603 = vmatpush1.msra.mxu0 0.0
  %3604 = vmatprep.subr.mxu0 0.0
  %3605 = vmatpush1.msra.mxu0 0.0
  %3606 = vmatprep.subr.mxu0 0.0
  %3607 = vmatpush1.msra.mxu0 0.0
  %3608 = vmatprep.subr.mxu0 0.0
  %3609 = vmatpush1.msra.mxu0 0.0
  %3610 = vmatprep.subr.mxu0 0.0
  %3611 = vmatpush1.msra.mxu0 0.0
  %3612 = vmatprep.subr.mxu0 0.0
  %3613 = vmatpush1.msra.mxu0 0.0
  %3614 = vmatprep.subr.mxu0 0.0
  %3615 = vmatpush1.msra.mxu0 0.0
  %3616 = vmatprep.subr.mxu0 0.0
  %3617 = vmatpush1.msra.mxu0 0.0
  %3618 = vmatprep.subr.mxu0 0.0
  %3619 = vmatpush1.msra.mxu0 0.0
  %3620 = vmatprep.subr.mxu0 0.0
  %3621 = vmatpush1.msra.mxu0 0.0
  %3622 = vmatprep.mubr.f32.mxu0 0.0
  %3623 = vmatmul.mubr.f32.gmra.mrb[0].mxu0 %v3476
  %v3624 = vpop.f32.mrb[0].mxu0
  %v3625 = vadd.f32 %v3406, %v3624
  %v3626 = vpop.f32.mrb[0].mxu0
  %v3627 = vadd.f32 %v3410, %v3626
  %3628 = vmatprep.mubr.f32.mxu0 0.0
  %3629 = vmatmul.mubr.f32.gmra.mrb[0].mxu0 %v3479
  %v3630 = vpop.f32.mrb[0].mxu0
  %v3631 = vadd.f32 %v3406, %v3630
  %v3632 = vpop.f32.mrb[0].mxu0
  %v3633 = vadd.f32 %v3410, %v3632
  %3634 = vdwg.mxu0
  %3635 = vmatprep.subr.mxu0 %v3363
  %3636 = vmatpush1.msra.mxu0 %v3362
  %3637 = vmatprep.subr.mxu0 %v3379
  %3638 = vmatpush1.msra.mxu0 %v3378
  %3639 = vmatprep.subr.mxu0 0.0
  %3640 = vmatpush1.msra.mxu0 0.0
  %3641 = vmatprep.subr.mxu0 0.0
  %3642 = vmatpush1.msra.mxu0 0.0
  %3643 = vmatprep.subr.mxu0 0.0
  %3644 = vmatpush1.msra.mxu0 0.0
  %3645 = vmatprep.subr.mxu0 0.0
  %3646 = vmatpush1.msra.mxu0 0.0
  %3647 = vmatprep.subr.mxu0 0.0
  %3648 = vmatpush1.msra.mxu0 0.0
  %3649 = vmatprep.subr.mxu0 0.0
  %3650 = vmatpush1.msra.mxu0 0.0
  %3651 = vmatprep.subr.mxu0 0.0
  %3652 = vmatpush1.msra.mxu0 0.0
  %3653 = vmatprep.subr.mxu0 0.0
  %3654 = vmatpush1.msra.mxu0 0.0
  %3655 = vmatprep.subr.mxu0 0.0
  %3656 = vmatpush1.msra.mxu0 0.0
  %3657 = vmatprep.subr.mxu0 0.0
  %3658 = vmatpush1.msra.mxu0 0.0
  %3659 = vmatprep.subr.mxu0 0.0
  %3660 = vmatpush1.msra.mxu0 0.0
  %3661 = vmatprep.subr.mxu0 0.0
  %3662 = vmatpush1.msra.mxu0 0.0
  %3663 = vmatprep.subr.mxu0 0.0
  %3664 = vmatpush1.msra.mxu0 0.0
  %3665 = vmatprep.subr.mxu0 0.0
  %3666 = vmatpush1.msra.mxu0 0.0
  %3667 = vmatprep.subr.mxu0 0.0
  %3668 = vmatpush1.msra.mxu0 0.0
  %3669 = vmatprep.subr.mxu0 0.0
  %3670 = vmatpush1.msra.mxu0 0.0
  %3671 = vmatprep.subr.mxu0 0.0
  %3672 = vmatpush1.msra.mxu0 0.0
  %3673 = vmatprep.subr.mxu0 0.0
  %3674 = vmatpush1.msra.mxu0 0.0
  %3675 = vmatprep.subr.mxu0 0.0
  %3676 = vmatpush1.msra.mxu0 0.0
  %3677 = vmatprep.subr.mxu0 0.0
  %3678 = vmatpush1.msra.mxu0 0.0
  %3679 = vmatprep.subr.mxu0 0.0
  %3680 = vmatpush1.msra.mxu0 0.0
  %3681 = vmatprep.subr.mxu0 0.0
  %3682 = vmatpush1.msra.mxu0 0.0
  %3683 = vmatprep.subr.mxu0 0.0
  %3684 = vmatpush1.msra.mxu0 0.0
  %3685 = vmatprep.subr.mxu0 0.0
  %3686 = vmatpush1.msra.mxu0 0.0
  %3687 = vmatprep.subr.mxu0 0.0
  %3688 = vmatpush1.msra.mxu0 0.0
  %3689 = vmatprep.subr.mxu0 0.0
  %3690 = vmatpush1.msra.mxu0 0.0
  %3691 = vmatprep.subr.mxu0 0.0
  %3692 = vmatpush1.msra.mxu0 0.0
  %3693 = vmatprep.subr.mxu0 0.0
  %3694 = vmatpush1.msra.mxu0 0.0
  %3695 = vmatprep.subr.mxu0 0.0
  %3696 = vmatpush1.msra.mxu0 0.0
  %3697 = vmatprep.subr.mxu0 0.0
  %3698 = vmatpush1.msra.mxu0 0.0
  %3699 = vmatprep.mubr.f32.mxu0 0.0
  %3700 = vmatmul.mubr.f32.gmra.mrb[0].mxu0 %v3476
  %v3701 = vpop.f32.mrb[0].mxu0
  %v3702 = vadd.f32 %v3414, %v3701
  %v3703 = vpop.f32.mrb[0].mxu0
  %v3704 = vadd.f32 %v3418, %v3703
  %3705 = vmatprep.mubr.f32.mxu0 0.0
  %3706 = vmatmul.mubr.f32.gmra.mrb[0].mxu0 %v3479
  %v3707 = vpop.f32.mrb[0].mxu0
  %v3708 = vadd.f32 %v3414, %v3707
  %v3709 = vpop.f32.mrb[0].mxu0
  %v3710 = vadd.f32 %v3418, %v3709
  %3711 = vdwg.mxu0
  %3712 = vmatprep.subr.mxu0 %v3365
  %3713 = vmatpush1.msra.mxu0 %v3364
  %3714 = vmatprep.subr.mxu0 %v3381
  %3715 = vmatpush1.msra.mxu0 %v3380
  %3716 = vmatprep.subr.mxu0 0.0
  %3717 = vmatpush1.msra.mxu0 0.0
  %3718 = vmatprep.subr.mxu0 0.0
  %3719 = vmatpush1.msra.mxu0 0.0
  %3720 = vmatprep.subr.mxu0 0.0
  %3721 = vmatpush1.msra.mxu0 0.0
  %3722 = vmatprep.subr.mxu0 0.0
  %3723 = vmatpush1.msra.mxu0 0.0
  %3724 = vmatprep.subr.mxu0 0.0
  %3725 = vmatpush1.msra.mxu0 0.0
  %3726 = vmatprep.subr.mxu0 0.0
  %3727 = vmatpush1.msra.mxu0 0.0
  %3728 = vmatprep.subr.mxu0 0.0
  %3729 = vmatpush1.msra.mxu0 0.0
  %3730 = vmatprep.subr.mxu0 0.0
  %3731 = vmatpush1.msra.mxu0 0.0
  %3732 = vmatprep.subr.mxu0 0.0
  %3733 = vmatpush1.msra.mxu0 0.0
  %3734 = vmatprep.subr.mxu0 0.0
  %3735 = vmatpush1.msra.mxu0 0.0
  %3736 = vmatprep.subr.mxu0 0.0
  %3737 = vmatpush1.msra.mxu0 0.0
  %3738 = vmatprep.subr.mxu0 0.0
  %3739 = vmatpush1.msra.mxu0 0.0
  %3740 = vmatprep.subr.mxu0 0.0
  %3741 = vmatpush1.msra.mxu0 0.0
  %3742 = vmatprep.subr.mxu0 0.0
  %3743 = vmatpush1.msra.mxu0 0.0
  %3744 = vmatprep.subr.mxu0 0.0
  %3745 = vmatpush1.msra.mxu0 0.0
  %3746 = vmatprep.subr.mxu0 0.0
  %3747 = vmatpush1.msra.mxu0 0.0
  %3748 = vmatprep.subr.mxu0 0.0
  %3749 = vmatpush1.msra.mxu0 0.0
  %3750 = vmatprep.subr.mxu0 0.0
  %3751 = vmatpush1.msra.mxu0 0.0
  %3752 = vmatprep.subr.mxu0 0.0
  %3753 = vmatpush1.msra.mxu0 0.0
  %3754 = vmatprep.subr.mxu0 0.0
  %3755 = vmatpush1.msra.mxu0 0.0
  %3756 = vmatprep.subr.mxu0 0.0
  %3757 = vmatpush1.msra.mxu0 0.0
  %3758 = vmatprep.subr.mxu0 0.0
  %3759 = vmatpush1.msra.mxu0 0.0
  %3760 = vmatprep.subr.mxu0 0.0
  %3761 = vmatpush1.msra.mxu0 0.0
  %3762 = vmatprep.subr.mxu0 0.0
  %3763 = vmatpush1.msra.mxu0 0.0
  %3764 = vmatprep.subr.mxu0 0.0
  %3765 = vmatpush1.msra.mxu0 0.0
  %3766 = vmatprep.subr.mxu0 0.0
  %3767 = vmatpush1.msra.mxu0 0.0
  %3768 = vmatprep.subr.mxu0 0.0
  %3769 = vmatpush1.msra.mxu0 0.0
  %3770 = vmatprep.subr.mxu0 0.0
  %3771 = vmatpush1.msra.mxu0 0.0
  %3772 = vmatprep.subr.mxu0 0.0
  %3773 = vmatpush1.msra.mxu0 0.0
  %3774 = vmatprep.subr.mxu0 0.0
  %3775 = vmatpush1.msra.mxu0 0.0
  %3776 = vmatprep.mubr.f32.mxu0 0.0
  %3777 = vmatmul.mubr.f32.gmra.mrb[0].mxu0 %v3476
  %v3778 = vpop.f32.mrb[0].mxu0
  %v3779 = vadd.f32 %v3422, %v3778
  %v3780 = vpop.f32.mrb[0].mxu0
  %v3781 = vadd.f32 %v3426, %v3780
  %3782 = vmatprep.mubr.f32.mxu0 0.0
  %3783 = vmatmul.mubr.f32.gmra.mrb[0].mxu0 %v3479
  %v3784 = vpop.f32.mrb[0].mxu0
  %v3785 = vadd.f32 %v3422, %v3784
  %v3786 = vpop.f32.mrb[0].mxu0
  %v3787 = vadd.f32 %v3426, %v3786
  %3788 = vdwg.mxu0
  %3789 = vmatprep.subr.mxu0 %v3367
  %3790 = vmatpush1.msra.mxu0 %v3366
  %3791 = vmatprep.subr.mxu0 %v3383
  %3792 = vmatpush1.msra.mxu0 %v3382
  %3793 = vmatprep.subr.mxu0 0.0
  %3794 = vmatpush1.msra.mxu0 0.0
  %3795 = vmatprep.subr.mxu0 0.0
  %3796 = vmatpush1.msra.mxu0 0.0
  %3797 = vmatprep.subr.mxu0 0.0
  %3798 = vmatpush1.msra.mxu0 0.0
  %3799 = vmatprep.subr.mxu0 0.0
  %3800 = vmatpush1.msra.mxu0 0.0
  %3801 = vmatprep.subr.mxu0 0.0
  %3802 = vmatpush1.msra.mxu0 0.0
  %3803 = vmatprep.subr.mxu0 0.0
  %3804 = vmatpush1.msra.mxu0 0.0
  %3805 = vmatprep.subr.mxu0 0.0
  %3806 = vmatpush1.msra.mxu0 0.0
  %3807 = vmatprep.subr.mxu0 0.0
  %3808 = vmatpush1.msra.mxu0 0.0
  %3809 = vmatprep.subr.mxu0 0.0
  %3810 = vmatpush1.msra.mxu0 0.0
  %3811 = vmatprep.subr.mxu0 0.0
  %3812 = vmatpush1.msra.mxu0 0.0
  %3813 = vmatprep.subr.mxu0 0.0
  %3814 = vmatpush1.msra.mxu0 0.0
  %3815 = vmatprep.subr.mxu0 0.0
  %3816 = vmatpush1.msra.mxu0 0.0
  %3817 = vmatprep.subr.mxu0 0.0
  %3818 = vmatpush1.msra.mxu0 0.0
  %3819 = vmatprep.subr.mxu0 0.0
  %3820 = vmatpush1.msra.mxu0 0.0
  %3821 = vmatprep.subr.mxu0 0.0
  %3822 = vmatpush1.msra.mxu0 0.0
  %3823 = vmatprep.subr.mxu0 0.0
  %3824 = vmatpush1.msra.mxu0 0.0
  %3825 = vmatprep.subr.mxu0 0.0
  %3826 = vmatpush1.msra.mxu0 0.0
  %3827 = vmatprep.subr.mxu0 0.0
  %3828 = vmatpush1.msra.mxu0 0.0
  %3829 = vmatprep.subr.mxu0 0.0
  %3830 = vmatpush1.msra.mxu0 0.0
  %3831 = vmatprep.subr.mxu0 0.0
  %3832 = vmatpush1.msra.mxu0 0.0
  %3833 = vmatprep.subr.mxu0 0.0
  %3834 = vmatpush1.msra.mxu0 0.0
  %3835 = vmatprep.subr.mxu0 0.0
  %3836 = vmatpush1.msra.mxu0 0.0
  %3837 = vmatprep.subr.mxu0 0.0
  %3838 = vmatpush1.msra.mxu0 0.0
  %3839 = vmatprep.subr.mxu0 0.0
  %3840 = vmatpush1.msra.mxu0 0.0
  %3841 = vmatprep.subr.mxu0 0.0
  %3842 = vmatpush1.msra.mxu0 0.0
  %3843 = vmatprep.subr.mxu0 0.0
  %3844 = vmatpush1.msra.mxu0 0.0
  %3845 = vmatprep.subr.mxu0 0.0
  %3846 = vmatpush1.msra.mxu0 0.0
  %3847 = vmatprep.subr.mxu0 0.0
  %3848 = vmatpush1.msra.mxu0 0.0
  %3849 = vmatprep.subr.mxu0 0.0
  %3850 = vmatpush1.msra.mxu0 0.0
  %3851 = vmatprep.subr.mxu0 0.0
  %3852 = vmatpush1.msra.mxu0 0.0
  %3853 = vmatprep.mubr.f32.mxu0 0.0
  %3854 = vmatmul.mubr.f32.gmra.mrb[0].mxu0 %v3476
  %v3855 = vpop.f32.mrb[0].mxu0
  %v3856 = vadd.f32 %v3430, %v3855
  %v3857 = vpop.f32.mrb[0].mxu0
  %v3858 = vadd.f32 %v3434, %v3857
  %3859 = vmatprep.mubr.f32.mxu0 0.0
  %3860 = vmatmul.mubr.f32.gmra.mrb[0].mxu0 %v3479
  %v3861 = vpop.f32.mrb[0].mxu0
  %v3862 = vadd.f32 %v3430, %v3861
  %v3863 = vpop.f32.mrb[0].mxu0
  %v3864 = vadd.f32 %v3434, %v3863
  %3865 = vdwg.mxu0
  %3866 = vmatprep.subr.mxu0 %v3369
  %3867 = vmatpush1.msra.mxu0 %v3368
  %3868 = vmatprep.subr.mxu0 %v3385
  %3869 = vmatpush1.msra.mxu0 %v3384
  %3870 = vmatprep.subr.mxu0 0.0
  %3871 = vmatpush1.msra.mxu0 0.0
  %3872 = vmatprep.subr.mxu0 0.0
  %3873 = vmatpush1.msra.mxu0 0.0
  %3874 = vmatprep.subr.mxu0 0.0
  %3875 = vmatpush1.msra.mxu0 0.0
  %3876 = vmatprep.subr.mxu0 0.0
  %3877 = vmatpush1.msra.mxu0 0.0
  %3878 = vmatprep.subr.mxu0 0.0
  %3879 = vmatpush1.msra.mxu0 0.0
  %3880 = vmatprep.subr.mxu0 0.0
  %3881 = vmatpush1.msra.mxu0 0.0
  %3882 = vmatprep.subr.mxu0 0.0
  %3883 = vmatpush1.msra.mxu0 0.0
  %3884 = vmatprep.subr.mxu0 0.0
  %3885 = vmatpush1.msra.mxu0 0.0
  %3886 = vmatprep.subr.mxu0 0.0
  %3887 = vmatpush1.msra.mxu0 0.0
  %3888 = vmatprep.subr.mxu0 0.0
  %3889 = vmatpush1.msra.mxu0 0.0
  %3890 = vmatprep.subr.mxu0 0.0
  %3891 = vmatpush1.msra.mxu0 0.0
  %3892 = vmatprep.subr.mxu0 0.0
  %3893 = vmatpush1.msra.mxu0 0.0
  %3894 = vmatprep.subr.mxu0 0.0
  %3895 = vmatpush1.msra.mxu0 0.0
  %3896 = vmatprep.subr.mxu0 0.0
  %3897 = vmatpush1.msra.mxu0 0.0
  %3898 = vmatprep.subr.mxu0 0.0
  %3899 = vmatpush1.msra.mxu0 0.0
  %3900 = vmatprep.subr.mxu0 0.0
  %3901 = vmatpush1.msra.mxu0 0.0
  %3902 = vmatprep.subr.mxu0 0.0
  %3903 = vmatpush1.msra.mxu0 0.0
  %3904 = vmatprep.subr.mxu0 0.0
  %3905 = vmatpush1.msra.mxu0 0.0
  %3906 = vmatprep.subr.mxu0 0.0
  %3907 = vmatpush1.msra.mxu0 0.0
  %3908 = vmatprep.subr.mxu0 0.0
  %3909 = vmatpush1.msra.mxu0 0.0
  %3910 = vmatprep.subr.mxu0 0.0
  %3911 = vmatpush1.msra.mxu0 0.0
  %3912 = vmatprep.subr.mxu0 0.0
  %3913 = vmatpush1.msra.mxu0 0.0
  %3914 = vmatprep.subr.mxu0 0.0
  %3915 = vmatpush1.msra.mxu0 0.0
  %3916 = vmatprep.subr.mxu0 0.0
  %3917 = vmatpush1.msra.mxu0 0.0
  %3918 = vmatprep.subr.mxu0 0.0
  %3919 = vmatpush1.msra.mxu0 0.0
  %3920 = vmatprep.subr.mxu0 0.0
  %3921 = vmatpush1.msra.mxu0 0.0
  %3922 = vmatprep.subr.mxu0 0.0
  %3923 = vmatpush1.msra.mxu0 0.0
  %3924 = vmatprep.subr.mxu0 0.0
  %3925 = vmatpush1.msra.mxu0 0.0
  %3926 = vmatprep.subr.mxu0 0.0
  %3927 = vmatpush1.msra.mxu0 0.0
  %3928 = vmatprep.subr.mxu0 0.0
  %3929 = vmatpush1.msra.mxu0 0.0
  %3930 = vmatprep.mubr.f32.mxu0 0.0
  %3931 = vmatmul.mubr.f32.gmra.mrb[0].mxu0 %v3476
  %v3932 = vpop.f32.mrb[0].mxu0
  %v3933 = vadd.f32 %v3438, %v3932
  %v3934 = vpop.f32.mrb[0].mxu0
  %v3935 = vadd.f32 %v3442, %v3934
  %3936 = vmatprep.mubr.f32.mxu0 0.0
  %3937 = vmatmul.mubr.f32.gmra.mrb[0].mxu0 %v3479
  %v3938 = vpop.f32.mrb[0].mxu0
  %v3939 = vadd.f32 %v3438, %v3938
  %v3940 = vpop.f32.mrb[0].mxu0
  %v3941 = vadd.f32 %v3442, %v3940
  %3942 = vdwg.mxu0
  %3943 = vmatprep.subr.mxu0 %v3371
  %3944 = vmatpush1.msra.mxu0 %v3370
  %3945 = vmatprep.subr.mxu0 %v3387
  %3946 = vmatpush1.msra.mxu0 %v3386
  %3947 = vmatprep.subr.mxu0 0.0
  %3948 = vmatpush1.msra.mxu0 0.0
  %3949 = vmatprep.subr.mxu0 0.0
  %3950 = vmatpush1.msra.mxu0 0.0
  %3951 = vmatprep.subr.mxu0 0.0
  %3952 = vmatpush1.msra.mxu0 0.0
  %3953 = vmatprep.subr.mxu0 0.0
  %3954 = vmatpush1.msra.mxu0 0.0
  %3955 = vmatprep.subr.mxu0 0.0
  %3956 = vmatpush1.msra.mxu0 0.0
  %3957 = vmatprep.subr.mxu0 0.0
  %3958 = vmatpush1.msra.mxu0 0.0
  %3959 = vmatprep.subr.mxu0 0.0
  %3960 = vmatpush1.msra.mxu0 0.0
  %3961 = vmatprep.subr.mxu0 0.0
  %3962 = vmatpush1.msra.mxu0 0.0
  %3963 = vmatprep.subr.mxu0 0.0
  %3964 = vmatpush1.msra.mxu0 0.0
  %3965 = vmatprep.subr.mxu0 0.0
  %3966 = vmatpush1.msra.mxu0 0.0
  %3967 = vmatprep.subr.mxu0 0.0
  %3968 = vmatpush1.msra.mxu0 0.0
  %3969 = vmatprep.subr.mxu0 0.0
  %3970 = vmatpush1.msra.mxu0 0.0
  %3971 = vmatprep.subr.mxu0 0.0
  %3972 = vmatpush1.msra.mxu0 0.0
  %3973 = vmatprep.subr.mxu0 0.0
  %3974 = vmatpush1.msra.mxu0 0.0
  %3975 = vmatprep.subr.mxu0 0.0
  %3976 = vmatpush1.msra.mxu0 0.0
  %3977 = vmatprep.subr.mxu0 0.0
  %3978 = vmatpush1.msra.mxu0 0.0
  %3979 = vmatprep.subr.mxu0 0.0
  %3980 = vmatpush1.msra.mxu0 0.0
  %3981 = vmatprep.subr.mxu0 0.0
  %3982 = vmatpush1.msra.mxu0 0.0
  %3983 = vmatprep.subr.mxu0 0.0
  %3984 = vmatpush1.msra.mxu0 0.0
  %3985 = vmatprep.subr.mxu0 0.0
  %3986 = vmatpush1.msra.mxu0 0.0
  %3987 = vmatprep.subr.mxu0 0.0
  %3988 = vmatpush1.msra.mxu0 0.0
  %3989 = vmatprep.subr.mxu0 0.0
  %3990 = vmatpush1.msra.mxu0 0.0
  %3991 = vmatprep.subr.mxu0 0.0
  %3992 = vmatpush1.msra.mxu0 0.0
  %3993 = vmatprep.subr.mxu0 0.0
  %3994 = vmatpush1.msra.mxu0 0.0
  %3995 = vmatprep.subr.mxu0 0.0
  %3996 = vmatpush1.msra.mxu0 0.0
  %3997 = vmatprep.subr.mxu0 0.0
  %3998 = vmatpush1.msra.mxu0 0.0
  %3999 = vmatprep.subr.mxu0 0.0
  %4000 = vmatpush1.msra.mxu0 0.0
  %4001 = vmatprep.subr.mxu0 0.0
  %4002 = vmatpush1.msra.mxu0 0.0
  %4003 = vmatprep.subr.mxu0 0.0
  %4004 = vmatpush1.msra.mxu0 0.0
  %4005 = vmatprep.subr.mxu0 0.0
  %4006 = vmatpush1.msra.mxu0 0.0
  %4007 = vmatprep.mubr.f32.mxu0 0.0
  %4008 = vmatmul.mubr.f32.gmra.mrb[0].mxu0 %v3476
  %v4009 = vpop.f32.mrb[0].mxu0
  %v4010 = vadd.f32 %v3446, %v4009
  %v4011 = vpop.f32.mrb[0].mxu0
  %v4012 = vadd.f32 %v3450, %v4011
  %4013 = vmatprep.mubr.f32.mxu0 0.0
  %4014 = vmatmul.mubr.f32.gmra.mrb[0].mxu0 %v3479
  %v4015 = vpop.f32.mrb[0].mxu0
  %v4016 = vadd.f32 %v3446, %v4015
  %v4017 = vpop.f32.mrb[0].mxu0
  %v4018 = vadd.f32 %v3450, %v4017
  %4019 = vdwg.mxu0
  %4020 = vmatprep.subr.mxu0 %v3373
  %4021 = vmatpush1.msra.mxu0 %v3372
  %4022 = vmatprep.subr.mxu0 %v3389
  %4023 = vmatpush1.msra.mxu0 %v3388
  %4024 = vmatprep.subr.mxu0 0.0
  %4025 = vmatpush1.msra.mxu0 0.0
  %4026 = vmatprep.subr.mxu0 0.0
  %4027 = vmatpush1.msra.mxu0 0.0
  %4028 = vmatprep.subr.mxu0 0.0
  %4029 = vmatpush1.msra.mxu0 0.0
  %4030 = vmatprep.subr.mxu0 0.0
  %4031 = vmatpush1.msra.mxu0 0.0
  %4032 = vmatprep.subr.mxu0 0.0
  %4033 = vmatpush1.msra.mxu0 0.0
  %4034 = vmatprep.subr.mxu0 0.0
  %4035 = vmatpush1.msra.mxu0 0.0
  %4036 = vmatprep.subr.mxu0 0.0
  %4037 = vmatpush1.msra.mxu0 0.0
  %4038 = vmatprep.subr.mxu0 0.0
  %4039 = vmatpush1.msra.mxu0 0.0
  %4040 = vmatprep.subr.mxu0 0.0
  %4041 = vmatpush1.msra.mxu0 0.0
  %4042 = vmatprep.subr.mxu0 0.0
  %4043 = vmatpush1.msra.mxu0 0.0
  %4044 = vmatprep.subr.mxu0 0.0
  %4045 = vmatpush1.msra.mxu0 0.0
  %4046 = vmatprep.subr.mxu0 0.0
  %4047 = vmatpush1.msra.mxu0 0.0
  %4048 = vmatprep.subr.mxu0 0.0
  %4049 = vmatpush1.msra.mxu0 0.0
  %4050 = vmatprep.subr.mxu0 0.0
  %4051 = vmatpush1.msra.mxu0 0.0
  %4052 = vmatprep.subr.mxu0 0.0
  %4053 = vmatpush1.msra.mxu0 0.0
  %4054 = vmatprep.subr.mxu0 0.0
  %4055 = vmatpush1.msra.mxu0 0.0
  %4056 = vmatprep.subr.mxu0 0.0
  %4057 = vmatpush1.msra.mxu0 0.0
  %4058 = vmatprep.subr.mxu0 0.0
  %4059 = vmatpush1.msra.mxu0 0.0
  %4060 = vmatprep.subr.mxu0 0.0
  %4061 = vmatpush1.msra.mxu0 0.0
  %4062 = vmatprep.subr.mxu0 0.0
  %4063 = vmatpush1.msra.mxu0 0.0
  %4064 = vmatprep.subr.mxu0 0.0
  %4065 = vmatpush1.msra.mxu0 0.0
  %4066 = vmatprep.subr.mxu0 0.0
  %4067 = vmatpush1.msra.mxu0 0.0
  %4068 = vmatprep.subr.mxu0 0.0
  %4069 = vmatpush1.msra.mxu0 0.0
  %4070 = vmatprep.subr.mxu0 0.0
  %4071 = vmatpush1.msra.mxu0 0.0
  %4072 = vmatprep.subr.mxu0 0.0
  %4073 = vmatpush1.msra.mxu0 0.0
  %4074 = vmatprep.subr.mxu0 0.0
  %4075 = vmatpush1.msra.mxu0 0.0
  %4076 = vmatprep.subr.mxu0 0.0
  %4077 = vmatpush1.msra.mxu0 0.0
  %4078 = vmatprep.subr.mxu0 0.0
  %4079 = vmatpush1.msra.mxu0 0.0
  %4080 = vmatprep.subr.mxu0 0.0
  %4081 = vmatpush1.msra.mxu0 0.0
  %4082 = vmatprep.subr.mxu0 0.0
  %4083 = vmatpush1.msra.mxu0 0.0
  %4084 = vmatprep.mubr.f32.mxu0 0.0
  %4085 = vmatmul.mubr.f32.gmra.mrb[0].mxu0 %v3476
  %v4086 = vpop.f32.mrb[0].mxu0
  %v4087 = vadd.f32 %v3454, %v4086
  %v4088 = vpop.f32.mrb[0].mxu0
  %v4089 = vadd.f32 %v3458, %v4088
  %4090 = vmatprep.mubr.f32.mxu0 0.0
  %4091 = vmatmul.mubr.f32.gmra.mrb[0].mxu0 %v3479
  %v4092 = vpop.f32.mrb[0].mxu0
  %v4093 = vadd.f32 %v3454, %v4092
  %v4094 = vpop.f32.mrb[0].mxu0
  %v4095 = vadd.f32 %v3458, %v4094
  %4096 = vdwg.mxu0
  %v4097 = vmax.f32 %v3548, 0.0
  %v4098 = vmax.f32 %v3550, 0.0
  %v4099 = vmax.f32 %v3625, 0.0
  %v4100 = vmax.f32 %v3627, 0.0
  %v4101 = vmax.f32 %v3702, 0.0
  %v4102 = vmax.f32 %v3704, 0.0
  %v4103 = vmax.f32 %v3779, 0.0
  %v4104 = vmax.f32 %v3781, 0.0
  %v4105 = vmax.f32 %v3856, 0.0
  %v4106 = vmax.f32 %v3858, 0.0
  %v4107 = vmax.f32 %v3933, 0.0
  %v4108 = vmax.f32 %v3935, 0.0
  %v4109 = vmax.f32 %v4010, 0.0
  %v4110 = vmax.f32 %v4012, 0.0
  %v4111 = vmax.f32 %v4087, 0.0
  %v4112 = vmax.f32 %v4089, 0.0
  %v4113 = vmax.f32 %v3554, 0.0
  %v4114 = vmax.f32 %v3556, 0.0
  %v4115 = vmax.f32 %v3631, 0.0
  %v4116 = vmax.f32 %v3633, 0.0
  %v4117 = vmax.f32 %v3708, 0.0
  %v4118 = vmax.f32 %v3710, 0.0
  %v4119 = vmax.f32 %v3785, 0.0
  %v4120 = vmax.f32 %v3787, 0.0
  %v4121 = vmax.f32 %v3862, 0.0
  %v4122 = vmax.f32 %v3864, 0.0
  %v4123 = vmax.f32 %v3939, 0.0
  %v4124 = vmax.f32 %v3941, 0.0
  %v4125 = vmax.f32 %v4016, 0.0
  %v4126 = vmax.f32 %v4018, 0.0
  %v4127 = vmax.f32 %v4093, 0.0
  %v4128 = vmax.f32 %v4095, 0.0
  %s4129 = scalar_lea.vmem %s9, 1024
  %v4130 = vld [vmem:[%s4129] sm:$0xf]
  %v4131 = vld [vmem:[%s4129 + $0x4] sm:$0xf]
  %v4132 = vld [vmem:[%s4129 + $0x8] sm:$0xf]
  %v4133 = vld [vmem:[%s4129 + $0xc] sm:$0xf]
  %v4134 = vld [vmem:[%s4129 + $0x10] sm:$0xf]
  %v4135 = vld [vmem:[%s4129 + $0x14] sm:$0xf]
  %v4136 = vld [vmem:[%s4129 + $0x18] sm:$0xf]
  %v4137 = vld [vmem:[%s4129 + $0x1c] sm:$0xf]
  %v4138 = vld [vmem:[%s4129 + $0x20] sm:$0xf]
  %v4139 = vld [vmem:[%s4129 + $0x24] sm:$0xf]
  %v4140 = vld [vmem:[%s4129 + $0x28] sm:$0xf]
  %v4141 = vld [vmem:[%s4129 + $0x2c] sm:$0xf]
  %v4142 = vld [vmem:[%s4129 + $0x30] sm:$0xf]
  %v4143 = vld [vmem:[%s4129 + $0x34] sm:$0xf]
  %v4144 = vld [vmem:[%s4129 + $0x38] sm:$0xf]
  %v4145 = vld [vmem:[%s4129 + $0x3c] sm:$0xf]
  %v4146 = vld [vmem:[%s4129 + $0x40] sm:$0xf]
  %v4147 = vld [vmem:[%s4129 + $0x44] sm:$0xf]
  %v4148 = vld [vmem:[%s4129 + $0x48] sm:$0xf]
  %v4149 = vld [vmem:[%s4129 + $0x4c] sm:$0xf]
  %v4150 = vld [vmem:[%s4129 + $0x50] sm:$0xf]
  %v4151 = vld [vmem:[%s4129 + $0x54] sm:$0xf]
  %v4152 = vld [vmem:[%s4129 + $0x58] sm:$0xf]
  %v4153 = vld [vmem:[%s4129 + $0x5c] sm:$0xf]
  %v4154 = vld [vmem:[%s4129 + $0x60] sm:$0xf]
  %v4155 = vld [vmem:[%s4129 + $0x64] sm:$0xf]
  %v4156 = vld [vmem:[%s4129 + $0x68] sm:$0xf]
  %v4157 = vld [vmem:[%s4129 + $0x6c] sm:$0xf]
  %v4158 = vld [vmem:[%s4129 + $0x70] sm:$0xf]
  %v4159 = vld [vmem:[%s4129 + $0x74] sm:$0xf]
  %v4160 = vld [vmem:[%s4129 + $0x78] sm:$0xf]
  %v4161 = vld [vmem:[%s4129 + $0x7c] sm:$0xf]
  %v4162 = vld [vmem:[%s4129 + $0x80] sm:$0xf]
  %v4163 = vld [vmem:[%s4129 + $0x84] sm:$0xf]
  %v4164 = vld [vmem:[%s4129 + $0x88] sm:$0xf]
  %v4165 = vld [vmem:[%s4129 + $0x8c] sm:$0xf]
  %v4166 = vld [vmem:[%s4129 + $0x90] sm:$0xf]
  %v4167 = vld [vmem:[%s4129 + $0x94] sm:$0xf]
  %v4168 = vld [vmem:[%s4129 + $0x98] sm:$0xf]
  %v4169 = vld [vmem:[%s4129 + $0x9c] sm:$0xf]
  %v4170 = vld [vmem:[%s4129 + $0xa0] sm:$0xf]
  %v4171 = vld [vmem:[%s4129 + $0xa4] sm:$0xf]
  %v4172 = vld [vmem:[%s4129 + $0xa8] sm:$0xf]
  %v4173 = vld [vmem:[%s4129 + $0xac] sm:$0xf]
  %v4174 = vld [vmem:[%s4129 + $0xb0] sm:$0xf]
  %v4175 = vld [vmem:[%s4129 + $0xb4] sm:$0xf]
  %v4176 = vld [vmem:[%s4129 + $0xb8] sm:$0xf]
  %v4177 = vld [vmem:[%s4129 + $0xbc] sm:$0xf]
  %v4178 = vld [vmem:[%s4129 + $0xc0] sm:$0xf]
  %v4179 = vld [vmem:[%s4129 + $0xc4] sm:$0xf]
  %v4180 = vld [vmem:[%s4129 + $0xc8] sm:$0xf]
  %v4181 = vld [vmem:[%s4129 + $0xcc] sm:$0xf]
  %v4182 = vld [vmem:[%s4129 + $0xd0] sm:$0xf]
  %v4183 = vld [vmem:[%s4129 + $0xd4] sm:$0xf]
  %v4184 = vld [vmem:[%s4129 + $0xd8] sm:$0xf]
  %v4185 = vld [vmem:[%s4129 + $0xdc] sm:$0xf]
  %v4186 = vld [vmem:[%s4129 + $0xe0] sm:$0xf]
  %v4187 = vld [vmem:[%s4129 + $0xe4] sm:$0xf]
  %v4188 = vld [vmem:[%s4129 + $0xe8] sm:$0xf]
  %v4189 = vld [vmem:[%s4129 + $0xec] sm:$0xf]
  %v4190 = vld [vmem:[%s4129 + $0xf0] sm:$0xf]
  %v4191 = vld [vmem:[%s4129 + $0xf4] sm:$0xf]
  %v4192 = vld [vmem:[%s4129 + $0xf8] sm:$0xf]
  %v4193 = vld [vmem:[%s4129 + $0xfc] sm:$0xf]
  %v4194 = vld [vmem:[%s4129 + $0x100] sm:$0xf]
  %v4195 = vld [vmem:[%s4129 + $0x104] sm:$0xf]
  %v4196 = vld [vmem:[%s4129 + $0x108] sm:$0xf]
  %v4197 = vld [vmem:[%s4129 + $0x10c] sm:$0xf]
  %v4198 = vld [vmem:[%s4129 + $0x110] sm:$0xf]
  %v4199 = vld [vmem:[%s4129 + $0x114] sm:$0xf]
  %v4200 = vld [vmem:[%s4129 + $0x118] sm:$0xf]
  %v4201 = vld [vmem:[%s4129 + $0x11c] sm:$0xf]
  %v4202 = vld [vmem:[%s4129 + $0x120] sm:$0xf]
  %v4203 = vld [vmem:[%s4129 + $0x124] sm:$0xf]
  %v4204 = vld [vmem:[%s4129 + $0x128] sm:$0xf]
  %v4205 = vld [vmem:[%s4129 + $0x12c] sm:$0xf]
  %v4206 = vld [vmem:[%s4129 + $0x130] sm:$0xf]
  %v4207 = vld [vmem:[%s4129 + $0x134] sm:$0xf]
  %v4208 = vld [vmem:[%s4129 + $0x138] sm:$0xf]
  %v4209 = vld [vmem:[%s4129 + $0x13c] sm:$0xf]
  %v4210 = vld [vmem:[%s4129 + $0x140] sm:$0xf]
  %v4211 = vld [vmem:[%s4129 + $0x144] sm:$0xf]
  %v4212 = vld [vmem:[%s4129 + $0x148] sm:$0xf]
  %v4213 = vld [vmem:[%s4129 + $0x14c] sm:$0xf]
  %v4214 = vld [vmem:[%s4129 + $0x150] sm:$0xf]
  %v4215 = vld [vmem:[%s4129 + $0x154] sm:$0xf]
  %v4216 = vld [vmem:[%s4129 + $0x158] sm:$0xf]
  %v4217 = vld [vmem:[%s4129 + $0x15c] sm:$0xf]
  %v4218 = vld [vmem:[%s4129 + $0x160] sm:$0xf]
  %v4219 = vld [vmem:[%s4129 + $0x164] sm:$0xf]
  %v4220 = vld [vmem:[%s4129 + $0x168] sm:$0xf]
  %v4221 = vld [vmem:[%s4129 + $0x16c] sm:$0xf]
  %v4222 = vld [vmem:[%s4129 + $0x170] sm:$0xf]
  %v4223 = vld [vmem:[%s4129 + $0x174] sm:$0xf]
  %v4224 = vld [vmem:[%s4129 + $0x178] sm:$0xf]
  %v4225 = vld [vmem:[%s4129 + $0x17c] sm:$0xf]
  %v4226 = vld [vmem:[%s4129 + $0x180] sm:$0xf]
  %v4227 = vld [vmem:[%s4129 + $0x184] sm:$0xf]
  %v4228 = vld [vmem:[%s4129 + $0x188] sm:$0xf]
  %v4229 = vld [vmem:[%s4129 + $0x18c] sm:$0xf]
  %v4230 = vld [vmem:[%s4129 + $0x190] sm:$0xf]
  %v4231 = vld [vmem:[%s4129 + $0x194] sm:$0xf]
  %v4232 = vld [vmem:[%s4129 + $0x198] sm:$0xf]
  %v4233 = vld [vmem:[%s4129 + $0x19c] sm:$0xf]
  %v4234 = vld [vmem:[%s4129 + $0x1a0] sm:$0xf]
  %v4235 = vld [vmem:[%s4129 + $0x1a4] sm:$0xf]
  %v4236 = vld [vmem:[%s4129 + $0x1a8] sm:$0xf]
  %v4237 = vld [vmem:[%s4129 + $0x1ac] sm:$0xf]
  %v4238 = vld [vmem:[%s4129 + $0x1b0] sm:$0xf]
  %v4239 = vld [vmem:[%s4129 + $0x1b4] sm:$0xf]
  %v4240 = vld [vmem:[%s4129 + $0x1b8] sm:$0xf]
  %v4241 = vld [vmem:[%s4129 + $0x1bc] sm:$0xf]
  %v4242 = vld [vmem:[%s4129 + $0x1c0] sm:$0xf]
  %v4243 = vld [vmem:[%s4129 + $0x1c4] sm:$0xf]
  %v4244 = vld [vmem:[%s4129 + $0x1c8] sm:$0xf]
  %v4245 = vld [vmem:[%s4129 + $0x1cc] sm:$0xf]
  %v4246 = vld [vmem:[%s4129 + $0x1d0] sm:$0xf]
  %v4247 = vld [vmem:[%s4129 + $0x1d4] sm:$0xf]
  %v4248 = vld [vmem:[%s4129 + $0x1d8] sm:$0xf]
  %v4249 = vld [vmem:[%s4129 + $0x1dc] sm:$0xf]
  %v4250 = vld [vmem:[%s4129 + $0x1e0] sm:$0xf]
  %v4251 = vld [vmem:[%s4129 + $0x1e4] sm:$0xf]
  %v4252 = vld [vmem:[%s4129 + $0x1e8] sm:$0xf]
  %v4253 = vld [vmem:[%s4129 + $0x1ec] sm:$0xf]
  %v4254 = vld [vmem:[%s4129 + $0x1f0] sm:$0xf]
  %v4255 = vld [vmem:[%s4129 + $0x1f4] sm:$0xf]
  %v4256 = vld [vmem:[%s4129 + $0x1f8] sm:$0xf]
  %v4257 = vld [vmem:[%s4129 + $0x1fc] sm:$0xf]
  %v4258 = vld [vmem:[%s4129 + $0x200] sm:$0xf]
  %v4259 = vld [vmem:[%s4129 + $0x204] sm:$0xf]
  %v4260 = vld [vmem:[%s4129 + $0x208] sm:$0xf]
  %v4261 = vld [vmem:[%s4129 + $0x20c] sm:$0xf]
  %v4262 = vld [vmem:[%s4129 + $0x210] sm:$0xf]
  %v4263 = vld [vmem:[%s4129 + $0x214] sm:$0xf]
  %v4264 = vld [vmem:[%s4129 + $0x218] sm:$0xf]
  %v4265 = vld [vmem:[%s4129 + $0x21c] sm:$0xf]
  %v4266 = vld [vmem:[%s4129 + $0x220] sm:$0xf]
  %v4267 = vld [vmem:[%s4129 + $0x224] sm:$0xf]
  %v4268 = vld [vmem:[%s4129 + $0x228] sm:$0xf]
  %v4269 = vld [vmem:[%s4129 + $0x22c] sm:$0xf]
  %v4270 = vld [vmem:[%s4129 + $0x230] sm:$0xf]
  %v4271 = vld [vmem:[%s4129 + $0x234] sm:$0xf]
  %v4272 = vld [vmem:[%s4129 + $0x238] sm:$0xf]
  %v4273 = vld [vmem:[%s4129 + $0x23c] sm:$0xf]
  %v4274 = vld [vmem:[%s4129 + $0x240] sm:$0xf]
  %v4275 = vld [vmem:[%s4129 + $0x244] sm:$0xf]
  %v4276 = vld [vmem:[%s4129 + $0x248] sm:$0xf]
  %v4277 = vld [vmem:[%s4129 + $0x24c] sm:$0xf]
  %v4278 = vld [vmem:[%s4129 + $0x250] sm:$0xf]
  %v4279 = vld [vmem:[%s4129 + $0x254] sm:$0xf]
  %v4280 = vld [vmem:[%s4129 + $0x258] sm:$0xf]
  %v4281 = vld [vmem:[%s4129 + $0x25c] sm:$0xf]
  %v4282 = vld [vmem:[%s4129 + $0x260] sm:$0xf]
  %v4283 = vld [vmem:[%s4129 + $0x264] sm:$0xf]
  %v4284 = vld [vmem:[%s4129 + $0x268] sm:$0xf]
  %v4285 = vld [vmem:[%s4129 + $0x26c] sm:$0xf]
  %v4286 = vld [vmem:[%s4129 + $0x270] sm:$0xf]
  %v4287 = vld [vmem:[%s4129 + $0x274] sm:$0xf]
  %v4288 = vld [vmem:[%s4129 + $0x278] sm:$0xf]
  %v4289 = vld [vmem:[%s4129 + $0x27c] sm:$0xf]
  %v4290 = vld [vmem:[%s4129 + $0x280] sm:$0xf]
  %v4291 = vld [vmem:[%s4129 + $0x284] sm:$0xf]
  %v4292 = vld [vmem:[%s4129 + $0x288] sm:$0xf]
  %v4293 = vld [vmem:[%s4129 + $0x28c] sm:$0xf]
  %v4294 = vld [vmem:[%s4129 + $0x290] sm:$0xf]
  %v4295 = vld [vmem:[%s4129 + $0x294] sm:$0xf]
  %v4296 = vld [vmem:[%s4129 + $0x298] sm:$0xf]
  %v4297 = vld [vmem:[%s4129 + $0x29c] sm:$0xf]
  %v4298 = vld [vmem:[%s4129 + $0x2a0] sm:$0xf]
  %v4299 = vld [vmem:[%s4129 + $0x2a4] sm:$0xf]
  %v4300 = vld [vmem:[%s4129 + $0x2a8] sm:$0xf]
  %v4301 = vld [vmem:[%s4129 + $0x2ac] sm:$0xf]
  %v4302 = vld [vmem:[%s4129 + $0x2b0] sm:$0xf]
  %v4303 = vld [vmem:[%s4129 + $0x2b4] sm:$0xf]
  %v4304 = vld [vmem:[%s4129 + $0x2b8] sm:$0xf]
  %v4305 = vld [vmem:[%s4129 + $0x2bc] sm:$0xf]
  %v4306 = vld [vmem:[%s4129 + $0x2c0] sm:$0xf]
  %v4307 = vld [vmem:[%s4129 + $0x2c4] sm:$0xf]
  %v4308 = vld [vmem:[%s4129 + $0x2c8] sm:$0xf]
  %v4309 = vld [vmem:[%s4129 + $0x2cc] sm:$0xf]
  %v4310 = vld [vmem:[%s4129 + $0x2d0] sm:$0xf]
  %v4311 = vld [vmem:[%s4129 + $0x2d4] sm:$0xf]
  %v4312 = vld [vmem:[%s4129 + $0x2d8] sm:$0xf]
  %v4313 = vld [vmem:[%s4129 + $0x2dc] sm:$0xf]
  %v4314 = vld [vmem:[%s4129 + $0x2e0] sm:$0xf]
  %v4315 = vld [vmem:[%s4129 + $0x2e4] sm:$0xf]
  %v4316 = vld [vmem:[%s4129 + $0x2e8] sm:$0xf]
  %v4317 = vld [vmem:[%s4129 + $0x2ec] sm:$0xf]
  %v4318 = vld [vmem:[%s4129 + $0x2f0] sm:$0xf]
  %v4319 = vld [vmem:[%s4129 + $0x2f4] sm:$0xf]
  %v4320 = vld [vmem:[%s4129 + $0x2f8] sm:$0xf]
  %v4321 = vld [vmem:[%s4129 + $0x2fc] sm:$0xf]
  %v4322 = vld [vmem:[%s4129 + $0x300] sm:$0xf]
  %v4323 = vld [vmem:[%s4129 + $0x304] sm:$0xf]
  %v4324 = vld [vmem:[%s4129 + $0x308] sm:$0xf]
  %v4325 = vld [vmem:[%s4129 + $0x30c] sm:$0xf]
  %v4326 = vld [vmem:[%s4129 + $0x310] sm:$0xf]
  %v4327 = vld [vmem:[%s4129 + $0x314] sm:$0xf]
  %v4328 = vld [vmem:[%s4129 + $0x318] sm:$0xf]
  %v4329 = vld [vmem:[%s4129 + $0x31c] sm:$0xf]
  %v4330 = vld [vmem:[%s4129 + $0x320] sm:$0xf]
  %v4331 = vld [vmem:[%s4129 + $0x324] sm:$0xf]
  %v4332 = vld [vmem:[%s4129 + $0x328] sm:$0xf]
  %v4333 = vld [vmem:[%s4129 + $0x32c] sm:$0xf]
  %v4334 = vld [vmem:[%s4129 + $0x330] sm:$0xf]
  %v4335 = vld [vmem:[%s4129 + $0x334] sm:$0xf]
  %v4336 = vld [vmem:[%s4129 + $0x338] sm:$0xf]
  %v4337 = vld [vmem:[%s4129 + $0x33c] sm:$0xf]
  %v4338 = vld [vmem:[%s4129 + $0x340] sm:$0xf]
  %v4339 = vld [vmem:[%s4129 + $0x344] sm:$0xf]
  %v4340 = vld [vmem:[%s4129 + $0x348] sm:$0xf]
  %v4341 = vld [vmem:[%s4129 + $0x34c] sm:$0xf]
  %v4342 = vld [vmem:[%s4129 + $0x350] sm:$0xf]
  %v4343 = vld [vmem:[%s4129 + $0x354] sm:$0xf]
  %v4344 = vld [vmem:[%s4129 + $0x358] sm:$0xf]
  %v4345 = vld [vmem:[%s4129 + $0x35c] sm:$0xf]
  %v4346 = vld [vmem:[%s4129 + $0x360] sm:$0xf]
  %v4347 = vld [vmem:[%s4129 + $0x364] sm:$0xf]
  %v4348 = vld [vmem:[%s4129 + $0x368] sm:$0xf]
  %v4349 = vld [vmem:[%s4129 + $0x36c] sm:$0xf]
  %v4350 = vld [vmem:[%s4129 + $0x370] sm:$0xf]
  %v4351 = vld [vmem:[%s4129 + $0x374] sm:$0xf]
  %v4352 = vld [vmem:[%s4129 + $0x378] sm:$0xf]
  %v4353 = vld [vmem:[%s4129 + $0x37c] sm:$0xf]
  %v4354 = vld [vmem:[%s4129 + $0x380] sm:$0xf]
  %v4355 = vld [vmem:[%s4129 + $0x384] sm:$0xf]
  %v4356 = vld [vmem:[%s4129 + $0x388] sm:$0xf]
  %v4357 = vld [vmem:[%s4129 + $0x38c] sm:$0xf]
  %v4358 = vld [vmem:[%s4129 + $0x390] sm:$0xf]
  %v4359 = vld [vmem:[%s4129 + $0x394] sm:$0xf]
  %v4360 = vld [vmem:[%s4129 + $0x398] sm:$0xf]
  %v4361 = vld [vmem:[%s4129 + $0x39c] sm:$0xf]
  %v4362 = vld [vmem:[%s4129 + $0x3a0] sm:$0xf]
  %v4363 = vld [vmem:[%s4129 + $0x3a4] sm:$0xf]
  %v4364 = vld [vmem:[%s4129 + $0x3a8] sm:$0xf]
  %v4365 = vld [vmem:[%s4129 + $0x3ac] sm:$0xf]
  %v4366 = vld [vmem:[%s4129 + $0x3b0] sm:$0xf]
  %v4367 = vld [vmem:[%s4129 + $0x3b4] sm:$0xf]
  %v4368 = vld [vmem:[%s4129 + $0x3b8] sm:$0xf]
  %v4369 = vld [vmem:[%s4129 + $0x3bc] sm:$0xf]
  %v4370 = vld [vmem:[%s4129 + $0x3c0] sm:$0xf]
  %v4371 = vld [vmem:[%s4129 + $0x3c4] sm:$0xf]
  %v4372 = vld [vmem:[%s4129 + $0x3c8] sm:$0xf]
  %v4373 = vld [vmem:[%s4129 + $0x3cc] sm:$0xf]
  %v4374 = vld [vmem:[%s4129 + $0x3d0] sm:$0xf]
  %v4375 = vld [vmem:[%s4129 + $0x3d4] sm:$0xf]
  %v4376 = vld [vmem:[%s4129 + $0x3d8] sm:$0xf]
  %v4377 = vld [vmem:[%s4129 + $0x3dc] sm:$0xf]
  %v4378 = vld [vmem:[%s4129 + $0x3e0] sm:$0xf]
  %v4379 = vld [vmem:[%s4129 + $0x3e4] sm:$0xf]
  %v4380 = vld [vmem:[%s4129 + $0x3e8] sm:$0xf]
  %v4381 = vld [vmem:[%s4129 + $0x3ec] sm:$0xf]
  %v4382 = vld [vmem:[%s4129 + $0x3f0] sm:$0xf]
  %v4383 = vld [vmem:[%s4129 + $0x3f4] sm:$0xf]
  %v4384 = vld [vmem:[%s4129 + $0x3f8] sm:$0xf]
  %v4385 = vld [vmem:[%s4129 + $0x3fc] sm:$0xf]
  %v4386 = vunpack.c.l.bf16 %v4130
  %v4387 = vunpack.c.l.bf16 %v4131
  %v4388 = vunpack.c.l.bf16 %v4132
  %v4389 = vunpack.c.l.bf16 %v4133
  %v4390 = vunpack.c.l.bf16 %v4134
  %v4391 = vunpack.c.l.bf16 %v4135
  %v4392 = vunpack.c.l.bf16 %v4136
  %v4393 = vunpack.c.l.bf16 %v4137
  %v4394 = vunpack.c.l.bf16 %v4138
  %v4395 = vunpack.c.l.bf16 %v4139
  %v4396 = vunpack.c.l.bf16 %v4140
  %v4397 = vunpack.c.l.bf16 %v4141
  %v4398 = vunpack.c.l.bf16 %v4142
  %v4399 = vunpack.c.l.bf16 %v4143
  %v4400 = vunpack.c.l.bf16 %v4144
  %v4401 = vunpack.c.l.bf16 %v4145
  %v4402 = vunpack.c.l.bf16 %v4146
  %v4403 = vunpack.c.l.bf16 %v4147
  %v4404 = vunpack.c.l.bf16 %v4148
  %v4405 = vunpack.c.l.bf16 %v4149
  %v4406 = vunpack.c.l.bf16 %v4150
  %v4407 = vunpack.c.l.bf16 %v4151
  %v4408 = vunpack.c.l.bf16 %v4152
  %v4409 = vunpack.c.l.bf16 %v4153
  %v4410 = vunpack.c.l.bf16 %v4154
  %v4411 = vunpack.c.l.bf16 %v4155
  %v4412 = vunpack.c.l.bf16 %v4156
  %v4413 = vunpack.c.l.bf16 %v4157
  %v4414 = vunpack.c.l.bf16 %v4158
  %v4415 = vunpack.c.l.bf16 %v4159
  %v4416 = vunpack.c.l.bf16 %v4160
  %v4417 = vunpack.c.l.bf16 %v4161
  %v4418 = vunpack.c.l.bf16 %v4162
  %v4419 = vunpack.c.l.bf16 %v4163
  %v4420 = vunpack.c.l.bf16 %v4164
  %v4421 = vunpack.c.l.bf16 %v4165
  %v4422 = vunpack.c.l.bf16 %v4166
  %v4423 = vunpack.c.l.bf16 %v4167
  %v4424 = vunpack.c.l.bf16 %v4168
  %v4425 = vunpack.c.l.bf16 %v4169
  %v4426 = vunpack.c.l.bf16 %v4170
  %v4427 = vunpack.c.l.bf16 %v4171
  %v4428 = vunpack.c.l.bf16 %v4172
  %v4429 = vunpack.c.l.bf16 %v4173
  %v4430 = vunpack.c.l.bf16 %v4174
  %v4431 = vunpack.c.l.bf16 %v4175
  %v4432 = vunpack.c.l.bf16 %v4176
  %v4433 = vunpack.c.l.bf16 %v4177
  %v4434 = vunpack.c.l.bf16 %v4178
  %v4435 = vunpack.c.l.bf16 %v4179
  %v4436 = vunpack.c.l.bf16 %v4180
  %v4437 = vunpack.c.l.bf16 %v4181
  %v4438 = vunpack.c.l.bf16 %v4182
  %v4439 = vunpack.c.l.bf16 %v4183
  %v4440 = vunpack.c.l.bf16 %v4184
  %v4441 = vunpack.c.l.bf16 %v4185
  %v4442 = vunpack.c.l.bf16 %v4186
  %v4443 = vunpack.c.l.bf16 %v4187
  %v4444 = vunpack.c.l.bf16 %v4188
  %v4445 = vunpack.c.l.bf16 %v4189
  %v4446 = vunpack.c.l.bf16 %v4190
  %v4447 = vunpack.c.l.bf16 %v4191
  %v4448 = vunpack.c.l.bf16 %v4192
  %v4449 = vunpack.c.l.bf16 %v4193
  %v4450 = vunpack.c.l.bf16 %v4194
  %v4451 = vunpack.c.l.bf16 %v4195
  %v4452 = vunpack.c.l.bf16 %v4196
  %v4453 = vunpack.c.l.bf16 %v4197
  %v4454 = vunpack.c.l.bf16 %v4198
  %v4455 = vunpack.c.l.bf16 %v4199
  %v4456 = vunpack.c.l.bf16 %v4200
  %v4457 = vunpack.c.l.bf16 %v4201
  %v4458 = vunpack.c.l.bf16 %v4202
  %v4459 = vunpack.c.l.bf16 %v4203
  %v4460 = vunpack.c.l.bf16 %v4204
  %v4461 = vunpack.c.l.bf16 %v4205
  %v4462 = vunpack.c.l.bf16 %v4206
  %v4463 = vunpack.c.l.bf16 %v4207
  %v4464 = vunpack.c.l.bf16 %v4208
  %v4465 = vunpack.c.l.bf16 %v4209
  %v4466 = vunpack.c.l.bf16 %v4210
  %v4467 = vunpack.c.l.bf16 %v4211
  %v4468 = vunpack.c.l.bf16 %v4212
  %v4469 = vunpack.c.l.bf16 %v4213
  %v4470 = vunpack.c.l.bf16 %v4214
  %v4471 = vunpack.c.l.bf16 %v4215
  %v4472 = vunpack.c.l.bf16 %v4216
  %v4473 = vunpack.c.l.bf16 %v4217
  %v4474 = vunpack.c.l.bf16 %v4218
  %v4475 = vunpack.c.l.bf16 %v4219
  %v4476 = vunpack.c.l.bf16 %v4220
  %v4477 = vunpack.c.l.bf16 %v4221
  %v4478 = vunpack.c.l.bf16 %v4222
  %v4479 = vunpack.c.l.bf16 %v4223
  %v4480 = vunpack.c.l.bf16 %v4224
  %v4481 = vunpack.c.l.bf16 %v4225
  %v4482 = vunpack.c.l.bf16 %v4226
  %v4483 = vunpack.c.l.bf16 %v4227
  %v4484 = vunpack.c.l.bf16 %v4228
  %v4485 = vunpack.c.l.bf16 %v4229
  %v4486 = vunpack.c.l.bf16 %v4230
  %v4487 = vunpack.c.l.bf16 %v4231
  %v4488 = vunpack.c.l.bf16 %v4232
  %v4489 = vunpack.c.l.bf16 %v4233
  %v4490 = vunpack.c.l.bf16 %v4234
  %v4491 = vunpack.c.l.bf16 %v4235
  %v4492 = vunpack.c.l.bf16 %v4236
  %v4493 = vunpack.c.l.bf16 %v4237
  %v4494 = vunpack.c.l.bf16 %v4238
  %v4495 = vunpack.c.l.bf16 %v4239
  %v4496 = vunpack.c.l.bf16 %v4240
  %v4497 = vunpack.c.l.bf16 %v4241
  %v4498 = vunpack.c.l.bf16 %v4242
  %v4499 = vunpack.c.l.bf16 %v4243
  %v4500 = vunpack.c.l.bf16 %v4244
  %v4501 = vunpack.c.l.bf16 %v4245
  %v4502 = vunpack.c.l.bf16 %v4246
  %v4503 = vunpack.c.l.bf16 %v4247
  %v4504 = vunpack.c.l.bf16 %v4248
  %v4505 = vunpack.c.l.bf16 %v4249
  %v4506 = vunpack.c.l.bf16 %v4250
  %v4507 = vunpack.c.l.bf16 %v4251
  %v4508 = vunpack.c.l.bf16 %v4252
  %v4509 = vunpack.c.l.bf16 %v4253
  %v4510 = vunpack.c.l.bf16 %v4254
  %v4511 = vunpack.c.l.bf16 %v4255
  %v4512 = vunpack.c.l.bf16 %v4256
  %v4513 = vunpack.c.l.bf16 %v4257
  %v4514 = vunpack.c.l.bf16 %v4258
  %v4515 = vunpack.c.l.bf16 %v4259
  %v4516 = vunpack.c.l.bf16 %v4260
  %v4517 = vunpack.c.l.bf16 %v4261
  %v4518 = vunpack.c.l.bf16 %v4262
  %v4519 = vunpack.c.l.bf16 %v4263
  %v4520 = vunpack.c.l.bf16 %v4264
  %v4521 = vunpack.c.l.bf16 %v4265
  %v4522 = vunpack.c.l.bf16 %v4266
  %v4523 = vunpack.c.l.bf16 %v4267
  %v4524 = vunpack.c.l.bf16 %v4268
  %v4525 = vunpack.c.l.bf16 %v4269
  %v4526 = vunpack.c.l.bf16 %v4270
  %v4527 = vunpack.c.l.bf16 %v4271
  %v4528 = vunpack.c.l.bf16 %v4272
  %v4529 = vunpack.c.l.bf16 %v4273
  %v4530 = vunpack.c.l.bf16 %v4274
  %v4531 = vunpack.c.l.bf16 %v4275
  %v4532 = vunpack.c.l.bf16 %v4276
  %v4533 = vunpack.c.l.bf16 %v4277
  %v4534 = vunpack.c.l.bf16 %v4278
  %v4535 = vunpack.c.l.bf16 %v4279
  %v4536 = vunpack.c.l.bf16 %v4280
  %v4537 = vunpack.c.l.bf16 %v4281
  %v4538 = vunpack.c.l.bf16 %v4282
  %v4539 = vunpack.c.l.bf16 %v4283
  %v4540 = vunpack.c.l.bf16 %v4284
  %v4541 = vunpack.c.l.bf16 %v4285
  %v4542 = vunpack.c.l.bf16 %v4286
  %v4543 = vunpack.c.l.bf16 %v4287
  %v4544 = vunpack.c.l.bf16 %v4288
  %v4545 = vunpack.c.l.bf16 %v4289
  %v4546 = vunpack.c.l.bf16 %v4290
  %v4547 = vunpack.c.l.bf16 %v4291
  %v4548 = vunpack.c.l.bf16 %v4292
  %v4549 = vunpack.c.l.bf16 %v4293
  %v4550 = vunpack.c.l.bf16 %v4294
  %v4551 = vunpack.c.l.bf16 %v4295
  %v4552 = vunpack.c.l.bf16 %v4296
  %v4553 = vunpack.c.l.bf16 %v4297
  %v4554 = vunpack.c.l.bf16 %v4298
  %v4555 = vunpack.c.l.bf16 %v4299
  %v4556 = vunpack.c.l.bf16 %v4300
  %v4557 = vunpack.c.l.bf16 %v4301
  %v4558 = vunpack.c.l.bf16 %v4302
  %v4559 = vunpack.c.l.bf16 %v4303
  %v4560 = vunpack.c.l.bf16 %v4304
  %v4561 = vunpack.c.l.bf16 %v4305
  %v4562 = vunpack.c.l.bf16 %v4306
  %v4563 = vunpack.c.l.bf16 %v4307
  %v4564 = vunpack.c.l.bf16 %v4308
  %v4565 = vunpack.c.l.bf16 %v4309
  %v4566 = vunpack.c.l.bf16 %v4310
  %v4567 = vunpack.c.l.bf16 %v4311
  %v4568 = vunpack.c.l.bf16 %v4312
  %v4569 = vunpack.c.l.bf16 %v4313
  %v4570 = vunpack.c.l.bf16 %v4314
  %v4571 = vunpack.c.l.bf16 %v4315
  %v4572 = vunpack.c.l.bf16 %v4316
  %v4573 = vunpack.c.l.bf16 %v4317
  %v4574 = vunpack.c.l.bf16 %v4318
  %v4575 = vunpack.c.l.bf16 %v4319
  %v4576 = vunpack.c.l.bf16 %v4320
  %v4577 = vunpack.c.l.bf16 %v4321
  %v4578 = vunpack.c.l.bf16 %v4322
  %v4579 = vunpack.c.l.bf16 %v4323
  %v4580 = vunpack.c.l.bf16 %v4324
  %v4581 = vunpack.c.l.bf16 %v4325
  %v4582 = vunpack.c.l.bf16 %v4326
  %v4583 = vunpack.c.l.bf16 %v4327
  %v4584 = vunpack.c.l.bf16 %v4328
  %v4585 = vunpack.c.l.bf16 %v4329
  %v4586 = vunpack.c.l.bf16 %v4330
  %v4587 = vunpack.c.l.bf16 %v4331
  %v4588 = vunpack.c.l.bf16 %v4332
  %v4589 = vunpack.c.l.bf16 %v4333
  %v4590 = vunpack.c.l.bf16 %v4334
  %v4591 = vunpack.c.l.bf16 %v4335
  %v4592 = vunpack.c.l.bf16 %v4336
  %v4593 = vunpack.c.l.bf16 %v4337
  %v4594 = vunpack.c.l.bf16 %v4338
  %v4595 = vunpack.c.l.bf16 %v4339
  %v4596 = vunpack.c.l.bf16 %v4340
  %v4597 = vunpack.c.l.bf16 %v4341
  %v4598 = vunpack.c.l.bf16 %v4342
  %v4599 = vunpack.c.l.bf16 %v4343
  %v4600 = vunpack.c.l.bf16 %v4344
  %v4601 = vunpack.c.l.bf16 %v4345
  %v4602 = vunpack.c.l.bf16 %v4346
  %v4603 = vunpack.c.l.bf16 %v4347
  %v4604 = vunpack.c.l.bf16 %v4348
  %v4605 = vunpack.c.l.bf16 %v4349
  %v4606 = vunpack.c.l.bf16 %v4350
  %v4607 = vunpack.c.l.bf16 %v4351
  %v4608 = vunpack.c.l.bf16 %v4352
  %v4609 = vunpack.c.l.bf16 %v4353
  %v4610 = vunpack.c.l.bf16 %v4354
  %v4611 = vunpack.c.l.bf16 %v4355
  %v4612 = vunpack.c.l.bf16 %v4356
  %v4613 = vunpack.c.l.bf16 %v4357
  %v4614 = vunpack.c.l.bf16 %v4358
  %v4615 = vunpack.c.l.bf16 %v4359
  %v4616 = vunpack.c.l.bf16 %v4360
  %v4617 = vunpack.c.l.bf16 %v4361
  %v4618 = vunpack.c.l.bf16 %v4362
  %v4619 = vunpack.c.l.bf16 %v4363
  %v4620 = vunpack.c.l.bf16 %v4364
  %v4621 = vunpack.c.l.bf16 %v4365
  %v4622 = vunpack.c.l.bf16 %v4366
  %v4623 = vunpack.c.l.bf16 %v4367
  %v4624 = vunpack.c.l.bf16 %v4368
  %v4625 = vunpack.c.l.bf16 %v4369
  %v4626 = vunpack.c.l.bf16 %v4370
  %v4627 = vunpack.c.l.bf16 %v4371
  %v4628 = vunpack.c.l.bf16 %v4372
  %v4629 = vunpack.c.l.bf16 %v4373
  %v4630 = vunpack.c.l.bf16 %v4374
  %v4631 = vunpack.c.l.bf16 %v4375
  %v4632 = vunpack.c.l.bf16 %v4376
  %v4633 = vunpack.c.l.bf16 %v4377
  %v4634 = vunpack.c.l.bf16 %v4378
  %v4635 = vunpack.c.l.bf16 %v4379
  %v4636 = vunpack.c.l.bf16 %v4380
  %v4637 = vunpack.c.l.bf16 %v4381
  %v4638 = vunpack.c.l.bf16 %v4382
  %v4639 = vunpack.c.l.bf16 %v4383
  %v4640 = vunpack.c.l.bf16 %v4384
  %v4641 = vunpack.c.l.bf16 %v4385
  %s4642 = scalar_lea.vmem %s10, 1
  %v4643 = vld [vmem:[%s4642] sm:$0x1]
  %v4645 = vlaneseq
  %v4646 = vshrl.u32 %v4645, 7
  %v4647 = vsub.s32 0, %v4646
  %v4648 = vrot.slane %v4643, %v4647
  %4650 = vmatprep.subr.mxu0 0.0
  %4651 = vmatpush1.msra.mxu0 %v4386
  %4652 = vmatprep.subr.mxu0 0.0
  %4653 = vmatpush1.msra.mxu0 %v4387
  %4654 = vmatprep.subr.mxu0 0.0
  %4655 = vmatpush1.msra.mxu0 %v4388
  %4656 = vmatprep.subr.mxu0 0.0
  %4657 = vmatpush1.msra.mxu0 %v4389
  %4658 = vmatprep.subr.mxu0 0.0
  %4659 = vmatpush1.msra.mxu0 %v4390
  %4660 = vmatprep.subr.mxu0 0.0
  %4661 = vmatpush1.msra.mxu0 %v4391
  %4662 = vmatprep.subr.mxu0 0.0
  %4663 = vmatpush1.msra.mxu0 %v4392
  %4664 = vmatprep.subr.mxu0 0.0
  %4665 = vmatpush1.msra.mxu0 %v4393
  %4666 = vmatprep.subr.mxu0 0.0
  %4667 = vmatpush1.msra.mxu0 %v4394
  %4668 = vmatprep.subr.mxu0 0.0
  %4669 = vmatpush1.msra.mxu0 %v4395
  %4670 = vmatprep.subr.mxu0 0.0
  %4671 = vmatpush1.msra.mxu0 %v4396
  %4672 = vmatprep.subr.mxu0 0.0
  %4673 = vmatpush1.msra.mxu0 %v4397
  %4674 = vmatprep.subr.mxu0 0.0
  %4675 = vmatpush1.msra.mxu0 %v4398
  %4676 = vmatprep.subr.mxu0 0.0
  %4677 = vmatpush1.msra.mxu0 %v4399
  %4678 = vmatprep.subr.mxu0 0.0
  %4679 = vmatpush1.msra.mxu0 %v4400
  %4680 = vmatprep.subr.mxu0 0.0
  %4681 = vmatpush1.msra.mxu0 %v4401
  %4682 = vmatprep.subr.mxu0 0.0
  %4683 = vmatpush1.msra.mxu0 %v4402
  %4684 = vmatprep.subr.mxu0 0.0
  %4685 = vmatpush1.msra.mxu0 %v4403
  %4686 = vmatprep.subr.mxu0 0.0
  %4687 = vmatpush1.msra.mxu0 %v4404
  %4688 = vmatprep.subr.mxu0 0.0
  %4689 = vmatpush1.msra.mxu0 %v4405
  %4690 = vmatprep.subr.mxu0 0.0
  %4691 = vmatpush1.msra.mxu0 %v4406
  %4692 = vmatprep.subr.mxu0 0.0
  %4693 = vmatpush1.msra.mxu0 %v4407
  %4694 = vmatprep.subr.mxu0 0.0
  %4695 = vmatpush1.msra.mxu0 %v4408
  %4696 = vmatprep.subr.mxu0 0.0
  %4697 = vmatpush1.msra.mxu0 %v4409
  %4698 = vmatprep.subr.mxu0 0.0
  %4699 = vmatpush1.msra.mxu0 %v4410
  %4700 = vmatprep.subr.mxu0 0.0
  %4701 = vmatpush1.msra.mxu0 %v4411
  %4702 = vmatprep.subr.mxu0 0.0
  %4703 = vmatpush1.msra.mxu0 %v4412
  %4704 = vmatprep.subr.mxu0 0.0
  %4705 = vmatpush1.msra.mxu0 %v4413
  %4706 = vmatprep.subr.mxu0 0.0
  %4707 = vmatpush1.msra.mxu0 %v4414
  %4708 = vmatprep.subr.mxu0 0.0
  %4709 = vmatpush1.msra.mxu0 %v4415
  %4710 = vmatprep.subr.mxu0 0.0
  %4711 = vmatpush1.msra.mxu0 %v4416
  %4712 = vmatprep.subr.mxu0 0.0
  %4713 = vmatpush1.msra.mxu0 %v4417
  %4714 = vmatprep.mubr.f32.mxu0 %v4098
  %4715 = vmatmul.mubr.f32.gmra.mrb[0].mxu0 %v4097
  %v4716 = vpop.f32.mrb[0].mxu0
  %v4717 = vadd.f32 %v4648, %v4716
  %v4718 = vpop.f32.mrb[0].mxu0
  %4719 = vmatprep.mubr.f32.mxu0 %v4114
  %4720 = vmatmul.mubr.f32.gmra.mrb[0].mxu0 %v4113
  %v4721 = vpop.f32.mrb[0].mxu0
  %v4722 = vadd.f32 %v4648, %v4721
  %v4723 = vpop.f32.mrb[0].mxu0
  %4724 = vdwg.mxu0
  %4725 = vmatprep.subr.mxu0 0.0
  %4726 = vmatpush1.msra.mxu0 %v4418
  %4727 = vmatprep.subr.mxu0 0.0
  %4728 = vmatpush1.msra.mxu0 %v4419
  %4729 = vmatprep.subr.mxu0 0.0
  %4730 = vmatpush1.msra.mxu0 %v4420
  %4731 = vmatprep.subr.mxu0 0.0
  %4732 = vmatpush1.msra.mxu0 %v4421
  %4733 = vmatprep.subr.mxu0 0.0
  %4734 = vmatpush1.msra.mxu0 %v4422
  %4735 = vmatprep.subr.mxu0 0.0
  %4736 = vmatpush1.msra.mxu0 %v4423
  %4737 = vmatprep.subr.mxu0 0.0
  %4738 = vmatpush1.msra.mxu0 %v4424
  %4739 = vmatprep.subr.mxu0 0.0
  %4740 = vmatpush1.msra.mxu0 %v4425
  %4741 = vmatprep.subr.mxu0 0.0
  %4742 = vmatpush1.msra.mxu0 %v4426
  %4743 = vmatprep.subr.mxu0 0.0
  %4744 = vmatpush1.msra.mxu0 %v4427
  %4745 = vmatprep.subr.mxu0 0.0
  %4746 = vmatpush1.msra.mxu0 %v4428
  %4747 = vmatprep.subr.mxu0 0.0
  %4748 = vmatpush1.msra.mxu0 %v4429
  %4749 = vmatprep.subr.mxu0 0.0
  %4750 = vmatpush1.msra.mxu0 %v4430
  %4751 = vmatprep.subr.mxu0 0.0
  %4752 = vmatpush1.msra.mxu0 %v4431
  %4753 = vmatprep.subr.mxu0 0.0
  %4754 = vmatpush1.msra.mxu0 %v4432
  %4755 = vmatprep.subr.mxu0 0.0
  %4756 = vmatpush1.msra.mxu0 %v4433
  %4757 = vmatprep.subr.mxu0 0.0
  %4758 = vmatpush1.msra.mxu0 %v4434
  %4759 = vmatprep.subr.mxu0 0.0
  %4760 = vmatpush1.msra.mxu0 %v4435
  %4761 = vmatprep.subr.mxu0 0.0
  %4762 = vmatpush1.msra.mxu0 %v4436
  %4763 = vmatprep.subr.mxu0 0.0
  %4764 = vmatpush1.msra.mxu0 %v4437
  %4765 = vmatprep.subr.mxu0 0.0
  %4766 = vmatpush1.msra.mxu0 %v4438
  %4767 = vmatprep.subr.mxu0 0.0
  %4768 = vmatpush1.msra.mxu0 %v4439
  %4769 = vmatprep.subr.mxu0 0.0
  %4770 = vmatpush1.msra.mxu0 %v4440
  %4771 = vmatprep.subr.mxu0 0.0
  %4772 = vmatpush1.msra.mxu0 %v4441
  %4773 = vmatprep.subr.mxu0 0.0
  %4774 = vmatpush1.msra.mxu0 %v4442
  %4775 = vmatprep.subr.mxu0 0.0
  %4776 = vmatpush1.msra.mxu0 %v4443
  %4777 = vmatprep.subr.mxu0 0.0
  %4778 = vmatpush1.msra.mxu0 %v4444
  %4779 = vmatprep.subr.mxu0 0.0
  %4780 = vmatpush1.msra.mxu0 %v4445
  %4781 = vmatprep.subr.mxu0 0.0
  %4782 = vmatpush1.msra.mxu0 %v4446
  %4783 = vmatprep.subr.mxu0 0.0
  %4784 = vmatpush1.msra.mxu0 %v4447
  %4785 = vmatprep.subr.mxu0 0.0
  %4786 = vmatpush1.msra.mxu0 %v4448
  %4787 = vmatprep.subr.mxu0 0.0
  %4788 = vmatpush1.msra.mxu0 %v4449
  %4789 = vmatprep.mubr.f32.mxu0 %v4100
  %4790 = vmatmul.mubr.f32.gmra.mrb[0].mxu0 %v4099
  %v4791 = vpop.f32.mrb[0].mxu0
  %v4792 = vadd.f32 %v4717, %v4791
  %v4793 = vpop.f32.mrb[0].mxu0
  %4794 = vmatprep.mubr.f32.mxu0 %v4116
  %4795 = vmatmul.mubr.f32.gmra.mrb[0].mxu0 %v4115
  %v4796 = vpop.f32.mrb[0].mxu0
  %v4797 = vadd.f32 %v4722, %v4796
  %v4798 = vpop.f32.mrb[0].mxu0
  %4799 = vdwg.mxu0
  %4800 = vmatprep.subr.mxu0 0.0
  %4801 = vmatpush1.msra.mxu0 %v4450
  %4802 = vmatprep.subr.mxu0 0.0
  %4803 = vmatpush1.msra.mxu0 %v4451
  %4804 = vmatprep.subr.mxu0 0.0
  %4805 = vmatpush1.msra.mxu0 %v4452
  %4806 = vmatprep.subr.mxu0 0.0
  %4807 = vmatpush1.msra.mxu0 %v4453
  %4808 = vmatprep.subr.mxu0 0.0
  %4809 = vmatpush1.msra.mxu0 %v4454
  %4810 = vmatprep.subr.mxu0 0.0
  %4811 = vmatpush1.msra.mxu0 %v4455
  %4812 = vmatprep.subr.mxu0 0.0
  %4813 = vmatpush1.msra.mxu0 %v4456
  %4814 = vmatprep.subr.mxu0 0.0
  %4815 = vmatpush1.msra.mxu0 %v4457
  %4816 = vmatprep.subr.mxu0 0.0
  %4817 = vmatpush1.msra.mxu0 %v4458
  %4818 = vmatprep.subr.mxu0 0.0
  %4819 = vmatpush1.msra.mxu0 %v4459
  %4820 = vmatprep.subr.mxu0 0.0
  %4821 = vmatpush1.msra.mxu0 %v4460
  %4822 = vmatprep.subr.mxu0 0.0
  %4823 = vmatpush1.msra.mxu0 %v4461
  %4824 = vmatprep.subr.mxu0 0.0
  %4825 = vmatpush1.msra.mxu0 %v4462
  %4826 = vmatprep.subr.mxu0 0.0
  %4827 = vmatpush1.msra.mxu0 %v4463
  %4828 = vmatprep.subr.mxu0 0.0
  %4829 = vmatpush1.msra.mxu0 %v4464
  %4830 = vmatprep.subr.mxu0 0.0
  %4831 = vmatpush1.msra.mxu0 %v4465
  %4832 = vmatprep.subr.mxu0 0.0
  %4833 = vmatpush1.msra.mxu0 %v4466
  %4834 = vmatprep.subr.mxu0 0.0
  %4835 = vmatpush1.msra.mxu0 %v4467
  %4836 = vmatprep.subr.mxu0 0.0
  %4837 = vmatpush1.msra.mxu0 %v4468
  %4838 = vmatprep.subr.mxu0 0.0
  %4839 = vmatpush1.msra.mxu0 %v4469
  %4840 = vmatprep.subr.mxu0 0.0
  %4841 = vmatpush1.msra.mxu0 %v4470
  %4842 = vmatprep.subr.mxu0 0.0
  %4843 = vmatpush1.msra.mxu0 %v4471
  %4844 = vmatprep.subr.mxu0 0.0
  %4845 = vmatpush1.msra.mxu0 %v4472
  %4846 = vmatprep.subr.mxu0 0.0
  %4847 = vmatpush1.msra.mxu0 %v4473
  %4848 = vmatprep.subr.mxu0 0.0
  %4849 = vmatpush1.msra.mxu0 %v4474
  %4850 = vmatprep.subr.mxu0 0.0
  %4851 = vmatpush1.msra.mxu0 %v4475
  %4852 = vmatprep.subr.mxu0 0.0
  %4853 = vmatpush1.msra.mxu0 %v4476
  %4854 = vmatprep.subr.mxu0 0.0
  %4855 = vmatpush1.msra.mxu0 %v4477
  %4856 = vmatprep.subr.mxu0 0.0
  %4857 = vmatpush1.msra.mxu0 %v4478
  %4858 = vmatprep.subr.mxu0 0.0
  %4859 = vmatpush1.msra.mxu0 %v4479
  %4860 = vmatprep.subr.mxu0 0.0
  %4861 = vmatpush1.msra.mxu0 %v4480
  %4862 = vmatprep.subr.mxu0 0.0
  %4863 = vmatpush1.msra.mxu0 %v4481
  %4864 = vmatprep.mubr.f32.mxu0 %v4102
  %4865 = vmatmul.mubr.f32.gmra.mrb[0].mxu0 %v4101
  %v4866 = vpop.f32.mrb[0].mxu0
  %v4867 = vadd.f32 %v4792, %v4866
  %v4868 = vpop.f32.mrb[0].mxu0
  %4869 = vmatprep.mubr.f32.mxu0 %v4118
  %4870 = vmatmul.mubr.f32.gmra.mrb[0].mxu0 %v4117
  %v4871 = vpop.f32.mrb[0].mxu0
  %v4872 = vadd.f32 %v4797, %v4871
  %v4873 = vpop.f32.mrb[0].mxu0
  %4874 = vdwg.mxu0
  %4875 = vmatprep.subr.mxu0 0.0
  %4876 = vmatpush1.msra.mxu0 %v4482
  %4877 = vmatprep.subr.mxu0 0.0
  %4878 = vmatpush1.msra.mxu0 %v4483
  %4879 = vmatprep.subr.mxu0 0.0
  %4880 = vmatpush1.msra.mxu0 %v4484
  %4881 = vmatprep.subr.mxu0 0.0
  %4882 = vmatpush1.msra.mxu0 %v4485
  %4883 = vmatprep.subr.mxu0 0.0
  %4884 = vmatpush1.msra.mxu0 %v4486
  %4885 = vmatprep.subr.mxu0 0.0
  %4886 = vmatpush1.msra.mxu0 %v4487
  %4887 = vmatprep.subr.mxu0 0.0
  %4888 = vmatpush1.msra.mxu0 %v4488
  %4889 = vmatprep.subr.mxu0 0.0
  %4890 = vmatpush1.msra.mxu0 %v4489
  %4891 = vmatprep.subr.mxu0 0.0
  %4892 = vmatpush1.msra.mxu0 %v4490
  %4893 = vmatprep.subr.mxu0 0.0
  %4894 = vmatpush1.msra.mxu0 %v4491
  %4895 = vmatprep.subr.mxu0 0.0
  %4896 = vmatpush1.msra.mxu0 %v4492
  %4897 = vmatprep.subr.mxu0 0.0
  %4898 = vmatpush1.msra.mxu0 %v4493
  %4899 = vmatprep.subr.mxu0 0.0
  %4900 = vmatpush1.msra.mxu0 %v4494
  %4901 = vmatprep.subr.mxu0 0.0
  %4902 = vmatpush1.msra.mxu0 %v4495
  %4903 = vmatprep.subr.mxu0 0.0
  %4904 = vmatpush1.msra.mxu0 %v4496
  %4905 = vmatprep.subr.mxu0 0.0
  %4906 = vmatpush1.msra.mxu0 %v4497
  %4907 = vmatprep.subr.mxu0 0.0
  %4908 = vmatpush1.msra.mxu0 %v4498
  %4909 = vmatprep.subr.mxu0 0.0
  %4910 = vmatpush1.msra.mxu0 %v4499
  %4911 = vmatprep.subr.mxu0 0.0
  %4912 = vmatpush1.msra.mxu0 %v4500
  %4913 = vmatprep.subr.mxu0 0.0
  %4914 = vmatpush1.msra.mxu0 %v4501
  %4915 = vmatprep.subr.mxu0 0.0
  %4916 = vmatpush1.msra.mxu0 %v4502
  %4917 = vmatprep.subr.mxu0 0.0
  %4918 = vmatpush1.msra.mxu0 %v4503
  %4919 = vmatprep.subr.mxu0 0.0
  %4920 = vmatpush1.msra.mxu0 %v4504
  %4921 = vmatprep.subr.mxu0 0.0
  %4922 = vmatpush1.msra.mxu0 %v4505
  %4923 = vmatprep.subr.mxu0 0.0
  %4924 = vmatpush1.msra.mxu0 %v4506
  %4925 = vmatprep.subr.mxu0 0.0
  %4926 = vmatpush1.msra.mxu0 %v4507
  %4927 = vmatprep.subr.mxu0 0.0
  %4928 = vmatpush1.msra.mxu0 %v4508
  %4929 = vmatprep.subr.mxu0 0.0
  %4930 = vmatpush1.msra.mxu0 %v4509
  %4931 = vmatprep.subr.mxu0 0.0
  %4932 = vmatpush1.msra.mxu0 %v4510
  %4933 = vmatprep.subr.mxu0 0.0
  %4934 = vmatpush1.msra.mxu0 %v4511
  %4935 = vmatprep.subr.mxu0 0.0
  %4936 = vmatpush1.msra.mxu0 %v4512
  %4937 = vmatprep.subr.mxu0 0.0
  %4938 = vmatpush1.msra.mxu0 %v4513
  %4939 = vmatprep.mubr.f32.mxu0 %v4104
  %4940 = vmatmul.mubr.f32.gmra.mrb[0].mxu0 %v4103
  %v4941 = vpop.f32.mrb[0].mxu0
  %v4942 = vadd.f32 %v4867, %v4941
  %v4943 = vpop.f32.mrb[0].mxu0
  %4944 = vmatprep.mubr.f32.mxu0 %v4120
  %4945 = vmatmul.mubr.f32.gmra.mrb[0].mxu0 %v4119
  %v4946 = vpop.f32.mrb[0].mxu0
  %v4947 = vadd.f32 %v4872, %v4946
  %v4948 = vpop.f32.mrb[0].mxu0
  %4949 = vdwg.mxu0
  %4950 = vmatprep.subr.mxu0 0.0
  %4951 = vmatpush1.msra.mxu0 %v4514
  %4952 = vmatprep.subr.mxu0 0.0
  %4953 = vmatpush1.msra.mxu0 %v4515
  %4954 = vmatprep.subr.mxu0 0.0
  %4955 = vmatpush1.msra.mxu0 %v4516
  %4956 = vmatprep.subr.mxu0 0.0
  %4957 = vmatpush1.msra.mxu0 %v4517
  %4958 = vmatprep.subr.mxu0 0.0
  %4959 = vmatpush1.msra.mxu0 %v4518
  %4960 = vmatprep.subr.mxu0 0.0
  %4961 = vmatpush1.msra.mxu0 %v4519
  %4962 = vmatprep.subr.mxu0 0.0
  %4963 = vmatpush1.msra.mxu0 %v4520
  %4964 = vmatprep.subr.mxu0 0.0
  %4965 = vmatpush1.msra.mxu0 %v4521
  %4966 = vmatprep.subr.mxu0 0.0
  %4967 = vmatpush1.msra.mxu0 %v4522
  %4968 = vmatprep.subr.mxu0 0.0
  %4969 = vmatpush1.msra.mxu0 %v4523
  %4970 = vmatprep.subr.mxu0 0.0
  %4971 = vmatpush1.msra.mxu0 %v4524
  %4972 = vmatprep.subr.mxu0 0.0
  %4973 = vmatpush1.msra.mxu0 %v4525
  %4974 = vmatprep.subr.mxu0 0.0
  %4975 = vmatpush1.msra.mxu0 %v4526
  %4976 = vmatprep.subr.mxu0 0.0
  %4977 = vmatpush1.msra.mxu0 %v4527
  %4978 = vmatprep.subr.mxu0 0.0
  %4979 = vmatpush1.msra.mxu0 %v4528
  %4980 = vmatprep.subr.mxu0 0.0
  %4981 = vmatpush1.msra.mxu0 %v4529
  %4982 = vmatprep.subr.mxu0 0.0
  %4983 = vmatpush1.msra.mxu0 %v4530
  %4984 = vmatprep.subr.mxu0 0.0
  %4985 = vmatpush1.msra.mxu0 %v4531
  %4986 = vmatprep.subr.mxu0 0.0
  %4987 = vmatpush1.msra.mxu0 %v4532
  %4988 = vmatprep.subr.mxu0 0.0
  %4989 = vmatpush1.msra.mxu0 %v4533
  %4990 = vmatprep.subr.mxu0 0.0
  %4991 = vmatpush1.msra.mxu0 %v4534
  %4992 = vmatprep.subr.mxu0 0.0
  %4993 = vmatpush1.msra.mxu0 %v4535
  %4994 = vmatprep.subr.mxu0 0.0
  %4995 = vmatpush1.msra.mxu0 %v4536
  %4996 = vmatprep.subr.mxu0 0.0
  %4997 = vmatpush1.msra.mxu0 %v4537
  %4998 = vmatprep.subr.mxu0 0.0
  %4999 = vmatpush1.msra.mxu0 %v4538
  %5000 = vmatprep.subr.mxu0 0.0
  %5001 = vmatpush1.msra.mxu0 %v4539
  %5002 = vmatprep.subr.mxu0 0.0
  %5003 = vmatpush1.msra.mxu0 %v4540
  %5004 = vmatprep.subr.mxu0 0.0
  %5005 = vmatpush1.msra.mxu0 %v4541
  %5006 = vmatprep.subr.mxu0 0.0
  %5007 = vmatpush1.msra.mxu0 %v4542
  %5008 = vmatprep.subr.mxu0 0.0
  %5009 = vmatpush1.msra.mxu0 %v4543
  %5010 = vmatprep.subr.mxu0 0.0
  %5011 = vmatpush1.msra.mxu0 %v4544
  %5012 = vmatprep.subr.mxu0 0.0
  %5013 = vmatpush1.msra.mxu0 %v4545
  %5014 = vmatprep.mubr.f32.mxu0 %v4106
  %5015 = vmatmul.mubr.f32.gmra.mrb[0].mxu0 %v4105
  %v5016 = vpop.f32.mrb[0].mxu0
  %v5017 = vadd.f32 %v4942, %v5016
  %v5018 = vpop.f32.mrb[0].mxu0
  %5019 = vmatprep.mubr.f32.mxu0 %v4122
  %5020 = vmatmul.mubr.f32.gmra.mrb[0].mxu0 %v4121
  %v5021 = vpop.f32.mrb[0].mxu0
  %v5022 = vadd.f32 %v4947, %v5021
  %v5023 = vpop.f32.mrb[0].mxu0
  %5024 = vdwg.mxu0
  %5025 = vmatprep.subr.mxu0 0.0
  %5026 = vmatpush1.msra.mxu0 %v4546
  %5027 = vmatprep.subr.mxu0 0.0
  %5028 = vmatpush1.msra.mxu0 %v4547
  %5029 = vmatprep.subr.mxu0 0.0
  %5030 = vmatpush1.msra.mxu0 %v4548
  %5031 = vmatprep.subr.mxu0 0.0
  %5032 = vmatpush1.msra.mxu0 %v4549
  %5033 = vmatprep.subr.mxu0 0.0
  %5034 = vmatpush1.msra.mxu0 %v4550
  %5035 = vmatprep.subr.mxu0 0.0
  %5036 = vmatpush1.msra.mxu0 %v4551
  %5037 = vmatprep.subr.mxu0 0.0
  %5038 = vmatpush1.msra.mxu0 %v4552
  %5039 = vmatprep.subr.mxu0 0.0
  %5040 = vmatpush1.msra.mxu0 %v4553
  %5041 = vmatprep.subr.mxu0 0.0
  %5042 = vmatpush1.msra.mxu0 %v4554
  %5043 = vmatprep.subr.mxu0 0.0
  %5044 = vmatpush1.msra.mxu0 %v4555
  %5045 = vmatprep.subr.mxu0 0.0
  %5046 = vmatpush1.msra.mxu0 %v4556
  %5047 = vmatprep.subr.mxu0 0.0
  %5048 = vmatpush1.msra.mxu0 %v4557
  %5049 = vmatprep.subr.mxu0 0.0
  %5050 = vmatpush1.msra.mxu0 %v4558
  %5051 = vmatprep.subr.mxu0 0.0
  %5052 = vmatpush1.msra.mxu0 %v4559
  %5053 = vmatprep.subr.mxu0 0.0
  %5054 = vmatpush1.msra.mxu0 %v4560
  %5055 = vmatprep.subr.mxu0 0.0
  %5056 = vmatpush1.msra.mxu0 %v4561
  %5057 = vmatprep.subr.mxu0 0.0
  %5058 = vmatpush1.msra.mxu0 %v4562
  %5059 = vmatprep.subr.mxu0 0.0
  %5060 = vmatpush1.msra.mxu0 %v4563
  %5061 = vmatprep.subr.mxu0 0.0
  %5062 = vmatpush1.msra.mxu0 %v4564
  %5063 = vmatprep.subr.mxu0 0.0
  %5064 = vmatpush1.msra.mxu0 %v4565
  %5065 = vmatprep.subr.mxu0 0.0
  %5066 = vmatpush1.msra.mxu0 %v4566
  %5067 = vmatprep.subr.mxu0 0.0
  %5068 = vmatpush1.msra.mxu0 %v4567
  %5069 = vmatprep.subr.mxu0 0.0
  %5070 = vmatpush1.msra.mxu0 %v4568
  %5071 = vmatprep.subr.mxu0 0.0
  %5072 = vmatpush1.msra.mxu0 %v4569
  %5073 = vmatprep.subr.mxu0 0.0
  %5074 = vmatpush1.msra.mxu0 %v4570
  %5075 = vmatprep.subr.mxu0 0.0
  %5076 = vmatpush1.msra.mxu0 %v4571
  %5077 = vmatprep.subr.mxu0 0.0
  %5078 = vmatpush1.msra.mxu0 %v4572
  %5079 = vmatprep.subr.mxu0 0.0
  %5080 = vmatpush1.msra.mxu0 %v4573
  %5081 = vmatprep.subr.mxu0 0.0
  %5082 = vmatpush1.msra.mxu0 %v4574
  %5083 = vmatprep.subr.mxu0 0.0
  %5084 = vmatpush1.msra.mxu0 %v4575
  %5085 = vmatprep.subr.mxu0 0.0
  %5086 = vmatpush1.msra.mxu0 %v4576
  %5087 = vmatprep.subr.mxu0 0.0
  %5088 = vmatpush1.msra.mxu0 %v4577
  %5089 = vmatprep.mubr.f32.mxu0 %v4108
  %5090 = vmatmul.mubr.f32.gmra.mrb[0].mxu0 %v4107
  %v5091 = vpop.f32.mrb[0].mxu0
  %v5092 = vadd.f32 %v5017, %v5091
  %v5093 = vpop.f32.mrb[0].mxu0
  %5094 = vmatprep.mubr.f32.mxu0 %v4124
  %5095 = vmatmul.mubr.f32.gmra.mrb[0].mxu0 %v4123
  %v5096 = vpop.f32.mrb[0].mxu0
  %v5097 = vadd.f32 %v5022, %v5096
  %v5098 = vpop.f32.mrb[0].mxu0
  %5099 = vdwg.mxu0
  %5100 = vmatprep.subr.mxu0 0.0
  %5101 = vmatpush1.msra.mxu0 %v4578
  %5102 = vmatprep.subr.mxu0 0.0
  %5103 = vmatpush1.msra.mxu0 %v4579
  %5104 = vmatprep.subr.mxu0 0.0
  %5105 = vmatpush1.msra.mxu0 %v4580
  %5106 = vmatprep.subr.mxu0 0.0
  %5107 = vmatpush1.msra.mxu0 %v4581
  %5108 = vmatprep.subr.mxu0 0.0
  %5109 = vmatpush1.msra.mxu0 %v4582
  %5110 = vmatprep.subr.mxu0 0.0
  %5111 = vmatpush1.msra.mxu0 %v4583
  %5112 = vmatprep.subr.mxu0 0.0
  %5113 = vmatpush1.msra.mxu0 %v4584
  %5114 = vmatprep.subr.mxu0 0.0
  %5115 = vmatpush1.msra.mxu0 %v4585
  %5116 = vmatprep.subr.mxu0 0.0
  %5117 = vmatpush1.msra.mxu0 %v4586
  %5118 = vmatprep.subr.mxu0 0.0
  %5119 = vmatpush1.msra.mxu0 %v4587
  %5120 = vmatprep.subr.mxu0 0.0
  %5121 = vmatpush1.msra.mxu0 %v4588
  %5122 = vmatprep.subr.mxu0 0.0
  %5123 = vmatpush1.msra.mxu0 %v4589
  %5124 = vmatprep.subr.mxu0 0.0
  %5125 = vmatpush1.msra.mxu0 %v4590
  %5126 = vmatprep.subr.mxu0 0.0
  %5127 = vmatpush1.msra.mxu0 %v4591
  %5128 = vmatprep.subr.mxu0 0.0
  %5129 = vmatpush1.msra.mxu0 %v4592
  %5130 = vmatprep.subr.mxu0 0.0
  %5131 = vmatpush1.msra.mxu0 %v4593
  %5132 = vmatprep.subr.mxu0 0.0
  %5133 = vmatpush1.msra.mxu0 %v4594
  %5134 = vmatprep.subr.mxu0 0.0
  %5135 = vmatpush1.msra.mxu0 %v4595
  %5136 = vmatprep.subr.mxu0 0.0
  %5137 = vmatpush1.msra.mxu0 %v4596
  %5138 = vmatprep.subr.mxu0 0.0
  %5139 = vmatpush1.msra.mxu0 %v4597
  %5140 = vmatprep.subr.mxu0 0.0
  %5141 = vmatpush1.msra.mxu0 %v4598
  %5142 = vmatprep.subr.mxu0 0.0
  %5143 = vmatpush1.msra.mxu0 %v4599
  %5144 = vmatprep.subr.mxu0 0.0
  %5145 = vmatpush1.msra.mxu0 %v4600
  %5146 = vmatprep.subr.mxu0 0.0
  %5147 = vmatpush1.msra.mxu0 %v4601
  %5148 = vmatprep.subr.mxu0 0.0
  %5149 = vmatpush1.msra.mxu0 %v4602
  %5150 = vmatprep.subr.mxu0 0.0
  %5151 = vmatpush1.msra.mxu0 %v4603
  %5152 = vmatprep.subr.mxu0 0.0
  %5153 = vmatpush1.msra.mxu0 %v4604
  %5154 = vmatprep.subr.mxu0 0.0
  %5155 = vmatpush1.msra.mxu0 %v4605
  %5156 = vmatprep.subr.mxu0 0.0
  %5157 = vmatpush1.msra.mxu0 %v4606
  %5158 = vmatprep.subr.mxu0 0.0
  %5159 = vmatpush1.msra.mxu0 %v4607
  %5160 = vmatprep.subr.mxu0 0.0
  %5161 = vmatpush1.msra.mxu0 %v4608
  %5162 = vmatprep.subr.mxu0 0.0
  %5163 = vmatpush1.msra.mxu0 %v4609
  %5164 = vmatprep.mubr.f32.mxu0 %v4110
  %5165 = vmatmul.mubr.f32.gmra.mrb[0].mxu0 %v4109
  %v5166 = vpop.f32.mrb[0].mxu0
  %v5167 = vadd.f32 %v5092, %v5166
  %v5168 = vpop.f32.mrb[0].mxu0
  %5169 = vmatprep.mubr.f32.mxu0 %v4126
  %5170 = vmatmul.mubr.f32.gmra.mrb[0].mxu0 %v4125
  %v5171 = vpop.f32.mrb[0].mxu0
  %v5172 = vadd.f32 %v5097, %v5171
  %v5173 = vpop.f32.mrb[0].mxu0
  %5174 = vdwg.mxu0
  %5175 = vmatprep.subr.mxu0 0.0
  %5176 = vmatpush1.msra.mxu0 %v4610
  %5177 = vmatprep.subr.mxu0 0.0
  %5178 = vmatpush1.msra.mxu0 %v4611
  %5179 = vmatprep.subr.mxu0 0.0
  %5180 = vmatpush1.msra.mxu0 %v4612
  %5181 = vmatprep.subr.mxu0 0.0
  %5182 = vmatpush1.msra.mxu0 %v4613
  %5183 = vmatprep.subr.mxu0 0.0
  %5184 = vmatpush1.msra.mxu0 %v4614
  %5185 = vmatprep.subr.mxu0 0.0
  %5186 = vmatpush1.msra.mxu0 %v4615
  %5187 = vmatprep.subr.mxu0 0.0
  %5188 = vmatpush1.msra.mxu0 %v4616
  %5189 = vmatprep.subr.mxu0 0.0
  %5190 = vmatpush1.msra.mxu0 %v4617
  %5191 = vmatprep.subr.mxu0 0.0
  %5192 = vmatpush1.msra.mxu0 %v4618
  %5193 = vmatprep.subr.mxu0 0.0
  %5194 = vmatpush1.msra.mxu0 %v4619
  %5195 = vmatprep.subr.mxu0 0.0
  %5196 = vmatpush1.msra.mxu0 %v4620
  %5197 = vmatprep.subr.mxu0 0.0
  %5198 = vmatpush1.msra.mxu0 %v4621
  %5199 = vmatprep.subr.mxu0 0.0
  %5200 = vmatpush1.msra.mxu0 %v4622
  %5201 = vmatprep.subr.mxu0 0.0
  %5202 = vmatpush1.msra.mxu0 %v4623
  %5203 = vmatprep.subr.mxu0 0.0
  %5204 = vmatpush1.msra.mxu0 %v4624
  %5205 = vmatprep.subr.mxu0 0.0
  %5206 = vmatpush1.msra.mxu0 %v4625
  %5207 = vmatprep.subr.mxu0 0.0
  %5208 = vmatpush1.msra.mxu0 %v4626
  %5209 = vmatprep.subr.mxu0 0.0
  %5210 = vmatpush1.msra.mxu0 %v4627
  %5211 = vmatprep.subr.mxu0 0.0
  %5212 = vmatpush1.msra.mxu0 %v4628
  %5213 = vmatprep.subr.mxu0 0.0
  %5214 = vmatpush1.msra.mxu0 %v4629
  %5215 = vmatprep.subr.mxu0 0.0
  %5216 = vmatpush1.msra.mxu0 %v4630
  %5217 = vmatprep.subr.mxu0 0.0
  %5218 = vmatpush1.msra.mxu0 %v4631
  %5219 = vmatprep.subr.mxu0 0.0
  %5220 = vmatpush1.msra.mxu0 %v4632
  %5221 = vmatprep.subr.mxu0 0.0
  %5222 = vmatpush1.msra.mxu0 %v4633
  %5223 = vmatprep.subr.mxu0 0.0
  %5224 = vmatpush1.msra.mxu0 %v4634
  %5225 = vmatprep.subr.mxu0 0.0
  %5226 = vmatpush1.msra.mxu0 %v4635
  %5227 = vmatprep.subr.mxu0 0.0
  %5228 = vmatpush1.msra.mxu0 %v4636
  %5229 = vmatprep.subr.mxu0 0.0
  %5230 = vmatpush1.msra.mxu0 %v4637
  %5231 = vmatprep.subr.mxu0 0.0
  %5232 = vmatpush1.msra.mxu0 %v4638
  %5233 = vmatprep.subr.mxu0 0.0
  %5234 = vmatpush1.msra.mxu0 %v4639
  %5235 = vmatprep.subr.mxu0 0.0
  %5236 = vmatpush1.msra.mxu0 %v4640
  %5237 = vmatprep.subr.mxu0 0.0
  %5238 = vmatpush1.msra.mxu0 %v4641
  %5239 = vmatprep.mubr.f32.mxu0 %v4112
  %5240 = vmatmul.mubr.f32.gmra.mrb[0].mxu0 %v4111
  %v5241 = vpop.f32.mrb[0].mxu0
  %v5242 = vadd.f32 %v5167, %v5241
  %v5243 = vpop.f32.mrb[0].mxu0
  %5244 = vmatprep.mubr.f32.mxu0 %v4128
  %5245 = vmatmul.mubr.f32.gmra.mrb[0].mxu0 %v4127
  %v5246 = vpop.f32.mrb[0].mxu0
  %v5247 = vadd.f32 %v5172, %v5246
  %v5248 = vpop.f32.mrb[0].mxu0
  %5249 = vdwg.mxu0
  %v5250 = vadd.f32 %v3339, %v5242
  %v5251 = vadd.f32 %v3340, %v5247
  %s5252 = scalar_lea.vmem %s11, 1
  %v5253 = vld [vmem:[%s5252] sm:$0x1]
  %s5254 = scalar_lea.vmem %s12, 1
  %v5255 = vld [vmem:[%s5254] sm:$0x1]
  %v5256 = vsel %vm106, %v5250, 0.0
  %5257 = vadd.xlane.f32.xlu0 %v5256
  %v5258 = vpop.xlane.xlu0 %5257
  %v5259 = vsel %vm106, %v5251, 0.0
  %5260 = vadd.xlane.f32.xlu0 %v5259
  %v5261 = vpop.xlane.xlu0 %5260
  %v5262 = vmul.f32 %v5258, %v705
  %v5263 = vmul.f32 %v5261, %v705
  %v5264 = vsub.f32 %v5250, %v5262
  %v5265 = vsub.f32 %v5251, %v5263
  %v5266 = vmul.f32 %v5264, %v5264
  %v5267 = vmul.f32 %v5265, %v5265
  %v5268 = vsel %vm106, %v5266, 0.0
  %5269 = vadd.xlane.f32.xlu0 %v5268
  %v5270 = vpop.xlane.xlu0 %5269
  %v5271 = vsel %vm106, %v5267, 0.0
  %5272 = vadd.xlane.f32.xlu0 %v5271
  %v5273 = vpop.xlane.xlu0 %5272
  %v5274 = vmul.f32 %v5270, %v705
  %v5275 = vmul.f32 %v5273, %v705
  %v5276 = vadd.f32 %v5274, 1e-05
  %v5277 = vadd.f32 %v5275, 1e-05
  %v5278 = vrsqrt.pop %v5276
  %v5279 = vrsqrt.pop %v5277
  %v5280 = vmul.f32 %v5264, %v5278
  %v5281 = vmul.f32 %v5265, %v5279
  %v5283 = vlaneseq
  %v5284 = vshrl.u32 %v5283, 7
  %v5285 = vsub.s32 0, %v5284
  %v5286 = vrot.slane %v5253, %v5285
  %v5288 = vmul.f32 %v5280, %v5286
  %v5289 = vmul.f32 %v5281, %v5286
  %v5291 = vlaneseq
  %v5292 = vshrl.u32 %v5291, 7
  %v5293 = vsub.s32 0, %v5292
  %v5294 = vrot.slane %v5255, %v5293
  %v5296 = vadd.f32 %v5288, %v5294
  %v5297 = vadd.f32 %v5289, %v5294
  %v5298 = vld [vmem:[%s13] sm:$0xff]
  %v5299 = vld [vmem:[%s13 + $0x8] sm:$0xff]
  %v5300 = vld [vmem:[%s14] sm:$0x1]
  %v5302 = vlaneseq
  %v5303 = vshrl.u32 %v5302, 7
  %v5304 = vsub.s32 0, %v5303
  %v5305 = vrot.slane %v5300, %v5304
  %v5308 = vsel %vm106, %v5296, 0
  %v5311 = vsel %vm106, %v5297, 0
  %5313 = vmatprep.subr.mxu0 0.0
  %5314 = vmatpush1.msra.mxu0 %v5298
  %5315 = vmatprep.subr.mxu0 0.0
  %5316 = vmatpush1.msra.mxu0 %v5299
  %5317 = vmatprep.subr.mxu0 0.0
  %5318 = vmatpush1.msra.mxu0 0.0
  %5319 = vmatprep.subr.mxu0 0.0
  %5320 = vmatpush1.msra.mxu0 0.0
  %5321 = vmatprep.subr.mxu0 0.0
  %5322 = vmatpush1.msra.mxu0 0.0
  %5323 = vmatprep.subr.mxu0 0.0
  %5324 = vmatpush1.msra.mxu0 0.0
  %5325 = vmatprep.subr.mxu0 0.0
  %5326 = vmatpush1.msra.mxu0 0.0
  %5327 = vmatprep.subr.mxu0 0.0
  %5328 = vmatpush1.msra.mxu0 0.0
  %5329 = vmatprep.subr.mxu0 0.0
  %5330 = vmatpush1.msra.mxu0 0.0
  %5331 = vmatprep.subr.mxu0 0.0
  %5332 = vmatpush1.msra.mxu0 0.0
  %5333 = vmatprep.subr.mxu0 0.0
  %5334 = vmatpush1.msra.mxu0 0.0
  %5335 = vmatprep.subr.mxu0 0.0
  %5336 = vmatpush1.msra.mxu0 0.0
  %5337 = vmatprep.subr.mxu0 0.0
  %5338 = vmatpush1.msra.mxu0 0.0
  %5339 = vmatprep.subr.mxu0 0.0
  %5340 = vmatpush1.msra.mxu0 0.0
  %5341 = vmatprep.subr.mxu0 0.0
  %5342 = vmatpush1.msra.mxu0 0.0
  %5343 = vmatprep.subr.mxu0 0.0
  %5344 = vmatpush1.msra.mxu0 0.0
  %5345 = vmatprep.subr.mxu0 0.0
  %5346 = vmatpush1.msra.mxu0 0.0
  %5347 = vmatprep.subr.mxu0 0.0
  %5348 = vmatpush1.msra.mxu0 0.0
  %5349 = vmatprep.subr.mxu0 0.0
  %5350 = vmatpush1.msra.mxu0 0.0
  %5351 = vmatprep.subr.mxu0 0.0
  %5352 = vmatpush1.msra.mxu0 0.0
  %5353 = vmatprep.subr.mxu0 0.0
  %5354 = vmatpush1.msra.mxu0 0.0
  %5355 = vmatprep.subr.mxu0 0.0
  %5356 = vmatpush1.msra.mxu0 0.0
  %5357 = vmatprep.subr.mxu0 0.0
  %5358 = vmatpush1.msra.mxu0 0.0
  %5359 = vmatprep.subr.mxu0 0.0
  %5360 = vmatpush1.msra.mxu0 0.0
  %5361 = vmatprep.subr.mxu0 0.0
  %5362 = vmatpush1.msra.mxu0 0.0
  %5363 = vmatprep.subr.mxu0 0.0
  %5364 = vmatpush1.msra.mxu0 0.0
  %5365 = vmatprep.subr.mxu0 0.0
  %5366 = vmatpush1.msra.mxu0 0.0
  %5367 = vmatprep.subr.mxu0 0.0
  %5368 = vmatpush1.msra.mxu0 0.0
  %5369 = vmatprep.subr.mxu0 0.0
  %5370 = vmatpush1.msra.mxu0 0.0
  %5371 = vmatprep.subr.mxu0 0.0
  %5372 = vmatpush1.msra.mxu0 0.0
  %5373 = vmatprep.subr.mxu0 0.0
  %5374 = vmatpush1.msra.mxu0 0.0
  %5375 = vmatprep.subr.mxu0 0.0
  %5376 = vmatpush1.msra.mxu0 0.0
  %5377 = vmatprep.mubr.f32.mxu0 0.0
  %5378 = vmatmul.mubr.f32.gmra.mrb[0].mxu0 %v5308
  %v5379 = vpop.f32.mrb[0].mxu0
  %v5380 = vadd.f32 %v5305, %v5379
  %v5381 = vpop.f32.mrb[0].mxu0
  %5382 = vmatprep.mubr.f32.mxu0 0.0
  %5383 = vmatmul.mubr.f32.gmra.mrb[0].mxu0 %v5311
  %v5384 = vpop.f32.mrb[0].mxu0
  %v5385 = vadd.f32 %v5305, %v5384
  %v5386 = vpop.f32.mrb[0].mxu0
  %5387 = vdwg.mxu0
  %vm5388 = vcmask 31744
  %5389 = vst.msk [vmem:[%s15] sm:$0xff] %vm5388, %v5380
  %5390 = vst.msk [vmem:[%s15 + $0x8] sm:$0xff] %vm5388, %v5385
  // Predicated region
  $region62: #{transformer_position_prediction.1} parent=0 // pred_check
    _
  $region63: #{transformer_position_prediction.1} parent=0 // pred_check_branch
    %5392 = sbr.rel (0) target = $region65
  $region64: #{transformer_position_prediction.1} parent=0 // pred_region
    _
  $region65: #{transformer_position_prediction.1} parent=0 // pred_fallthru
    _
  // Predicated region
  $region66: #{transformer_position_prediction.1} parent=0 // pred_check
    _
  $region67: #{transformer_position_prediction.1} parent=0 // pred_check_branch
    %5394 = sbr.rel (0) target = $region69
  $region68: #{transformer_position_prediction.1} parent=0 // pred_region
    _
  $region69: #{transformer_position_prediction.1} parent=0 // pred_fallthru
    _

</llo_original>
